<compile_context>
chip_gen: v7x
topology: tpu7x:2x2x1
jax: 0.10.0
libtpu: 0.0.40
codegen_flags: <defaults>
</compile_context>

<pallas_src>
import jax
import jax.numpy as jnp
from jax import lax
from jax.experimental import pallas as pl
from jax.experimental.pallas import tpu as pltpu

LEAK = 0.1      # LeakyReLU negative slope
BN_EPS = 1e-5   # bn_eps in the module

# Row offset (in units of Nt) for tap t = ky*3 + kx under the stride-8 layout.
_TAP_ROW = tuple((t // 3) * 8 + (t % 3) for t in range(9))


def _round_up(x, m):
    return m * ((x + m - 1) // m)


def _sjc_kernel(x_ref,
                w1_ref, s1_ref, t1_ref,
                w2_ref, s2_ref, t2_ref,
                w3_ref, s3_ref, t3_ref,
                w4_ref, s4_ref, t4_ref,
                o_ref):
    """One batch tile.

    x_ref : (1, 64*Nt, 64)  activation slab, row = h*(8*Nt) + w*Nt + n.
    wN_ref: (5, 128, 64)    conv weights, pair p = taps (2p, 2p+1) stacked on Cin
                            (pair 4 = tap 8 with a zero-padded second half).
    w4_ref: (64, 128)       Linear weight, columns zero-padded to 128 lanes.
    sN/tN : (1, C)          per-channel scale/shift (conv bias + inference BN folded).
    o_ref : (1, Nt, 128)
    """
    Nt = x_ref.shape[1] // 64
    cdt = w1_ref.dtype                       # MXU operand dtype (bf16 or f32)

    def conv_bn_lrelu(get_rows, m_rows, w_ref, s_ref, t_ref, out_dtype):
        # 3x3 valid conv = 9 constant-offset shifts of the slab, packed pairwise
        # along the contraction dim: 5 flat (M,128)x(128,64) MXU matmuls,
        # accumulated in f32.  The lane-concat lands on otherwise-idle XLU/VPU.
        acc = None
        for p in range(5):
            ta = 2 * p
            tb = min(2 * p + 1, 8)          # pair 4: reuse tap-8 view (zero weights)
            lhs = jnp.concatenate(
                [get_rows(_TAP_ROW[ta] * Nt, m_rows),
                 get_rows(_TAP_ROW[tb] * Nt, m_rows)], axis=-1)
            d = jnp.dot(lhs, w_ref[p], preferred_element_type=jnp.float32)
            acc = d if acc is None else acc + d
        y = acc * s_ref[...] + t_ref[...]      # folded bias + BN, one broadcast/layer
        y = jnp.where(y > 0, y, LEAK * y)      # LeakyReLU(0.1), f32
        return y.astype(out_dtype)             # fused cast (no standalone astype pass)

    # Valid spatial extents shrink 8->6->4->2 but the row stride stays 8:
    # layer L needs M_L rows with M_L + 18*Nt (max tap offset) fitting into the
    # previous layer's rows:  64*Nt -> 46*Nt -> 28*Nt.
    m1, m2 = 46 * Nt, 28 * Nt

    a1 = conv_bn_lrelu(lambda off, m: x_ref[0, off:off + m, :],
                       m1, w1_ref, s1_ref, t1_ref, cdt)
    a2 = conv_bn_lrelu(lambda off, m: a1[off:off + m, :],
                       m2, w2_ref, s2_ref, t2_ref, cdt)

    # Layer 3: only rows [0, 2Nt) and [8Nt, 10Nt) feed the 2x2 avg-pool, so run
    # the conv on just those two contiguous (sublane-aligned) row ranges.
    a3a = conv_bn_lrelu(lambda off, m: a2[off:off + m, :],
                        2 * Nt, w3_ref, s3_ref, t3_ref, jnp.float32)
    a3b = conv_bn_lrelu(lambda off, m: a2[8 * Nt + off:8 * Nt + off + m, :],
                        2 * Nt, w3_ref, s3_ref, t3_ref, jnp.float32)

    # AvgPool2d(2, 2) over the remaining valid 2x2 window.
    pooled = (a3a[0:Nt] + a3a[Nt:2 * Nt]
              + a3b[0:Nt] + a3b[Nt:2 * Nt]) * 0.25          # (Nt, C) f32

    # Linear(64, 2*nb_class) + folded BatchNorm1d; lane-dense (128-col) store.
    out = jnp.dot(pooled.astype(cdt), w4_ref[...],
                  preferred_element_type=jnp.float32)
    o_ref[0] = out * s4_ref[...] + t4_ref[...]


def small_joint_classifier_forward(x_nchw, params, *, use_bf16=True,
                                   max_batch_tile=256):
    """x_nchw: (N, 64, 8, 8) like the PyTorch module. Returns (N, 2*nb_class)."""
    N, C, H, W = x_nchw.shape
    assert (C, H, W) == (64, 8, 8), "module implies 64x8x8 input"
    nb2 = params['w4'].shape[1]
    nb2_pad = 128 * pl.cdiv(nb2, 128)
    cdt = jnp.bfloat16 if use_bf16 else jnp.float32

    # --- batch tiling (grid axis) ------------------------------------------
    # Nt is sublane-aligned (16 for bf16, 8 for f32) so every Nt-multiple row
    # slice in the kernel is a zero-cost view.  For 16 < N <= 2*max_batch_tile
    # split into two tiles so v7x's two TensorCores both get work.
    align = 16 if use_bf16 else 8
    max_tile = _round_up(max_batch_tile, align)
    if N <= 16:
        Nt = _round_up(N, align)
    elif N <= 2 * max_tile:
        Nt = _round_up(pl.cdiv(N, 2), align)
    else:
        Nt = max_tile
    G = pl.cdiv(N, Nt)
    N_pad = G * Nt

    x = x_nchw.astype(jnp.float32)
    if N_pad != N:
        x = jnp.pad(x, ((0, N_pad - N), (0, 0), (0, 0), (0, 0)))

    # NCHW -> per-tile spatial-major / batch-minor slab: row = h*(8*Nt) + w*Nt + n.
    # (Wrapper-side layout plumbing only; the kernel never transposes/reshapes.)
    x_slab = (x.reshape(G, Nt, C, H, W)
               .transpose(0, 3, 4, 1, 2)        # (G, H, W, Nt, C)
               .reshape(G, H * W * Nt, C)
               .astype(cdt))

    def fold(gamma, beta, mean, var, bias):
        # inference BN applied to (y + bias): y*scale + (beta + (bias-mean)*scale)
        scale = gamma / jnp.sqrt(var + BN_EPS)
        shift = beta + (bias - mean) * scale
        return scale.astype(jnp.float32), shift.astype(jnp.float32)

    ins = [x_slab]
    in_specs = [pl.BlockSpec((1, H * W * Nt, C), lambda i: (i, 0, 0))]
    for li in (1, 2, 3):
        s, t = fold(params[f'bn{li}_g'], params[f'bn{li}_b'],
                    params[f'bn{li}_m'], params[f'bn{li}_v'], params[f'b{li}'])
        # HWIO -> (9, Cin, Cout), pad to 10 taps, pack pairs on the contraction dim.
        w9 = params[f'w{li}'].reshape(9, C, C)
        w10 = jnp.concatenate([w9, jnp.zeros((1, C, C), w9.dtype)], axis=0)
        wp = w10.reshape(5, 2 * C, C).astype(cdt)            # (5, 128, 64)
        ins += [wp, s.reshape(1, C), t.reshape(1, C)]
        in_specs += [pl.BlockSpec((5, 2 * C, C), lambda i: (0, 0, 0)),
                     pl.BlockSpec((1, C), lambda i: (0, 0)),
                     pl.BlockSpec((1, C), lambda i: (0, 0))]
    s4, t4 = fold(params['bn4_g'], params['bn4_b'],
                  params['bn4_m'], params['bn4_v'], params['b4'])
    w4 = jnp.zeros((C, nb2_pad), cdt).at[:, :nb2].set(params['w4'].astype(cdt))
    s4p = jnp.zeros((1, nb2_pad), jnp.float32).at[:, :nb2].set(s4.reshape(1, nb2))
    t4p = jnp.zeros((1, nb2_pad), jnp.float32).at[:, :nb2].set(t4.reshape(1, nb2))
    ins += [w4, s4p, t4p]
    in_specs += [pl.BlockSpec((C, nb2_pad), lambda i: (0, 0)),
                 pl.BlockSpec((1, nb2_pad), lambda i: (0, 0)),
                 pl.BlockSpec((1, nb2_pad), lambda i: (0, 0))]

    # Advisory cost estimate so XLA schedules the kernel against the wrapper ops.
    rows_per_tile = (46 + 28 + 2 + 2) * Nt
    flops = G * (2 * 5 * rows_per_tile * (2 * C) * C + 2 * Nt * C * nb2_pad)
    bytes_accessed = (x_slab.size * x_slab.dtype.itemsize
                      + G * Nt * nb2_pad * 4
                      + 3 * 5 * 2 * C * C * (2 if use_bf16 else 4)
                      + C * nb2_pad * (2 if use_bf16 else 4))
    cost = pl.CostEstimate(flops=flops, transcendentals=0,
                           bytes_accessed=bytes_accessed)

    out = pl.pallas_call(
        _sjc_kernel,
        out_shape=jax.ShapeDtypeStruct((G, Nt, nb2_pad), jnp.float32),
        grid=(G,),
        in_specs=in_specs,
        out_specs=pl.BlockSpec((1, Nt, nb2_pad), lambda i: (i, 0, 0)),
        compiler_params=pltpu.CompilerParams(
            dimension_semantics=("parallel",),
            vmem_limit_bytes=48 * 1024 * 1024),
        cost_estimate=cost,
    )(*ins)
    return out.reshape(N_pad, nb2_pad)[:N, :nb2]


def init_params(key, nb_class=10, C=64):
    """Deterministic synthetic parameters matching the module's shapes (HWIO convs)."""
    ks = iter(jax.random.split(key, 32))
    p = {}
    for i in (1, 2, 3):
        p[f'w{i}'] = 0.1 * jax.random.normal(next(ks), (3, 3, C, C), jnp.float32)
        p[f'b{i}'] = 0.05 * jax.random.normal(next(ks), (C,), jnp.float32)
        p[f'bn{i}_g'] = 1.0 + 0.1 * jax.random.normal(next(ks), (C,), jnp.float32)
        p[f'bn{i}_b'] = 0.1 * jax.random.normal(next(ks), (C,), jnp.float32)
        p[f'bn{i}_m'] = 0.1 * jax.random.normal(next(ks), (C,), jnp.float32)
        p[f'bn{i}_v'] = jax.random.uniform(next(ks), (C,), jnp.float32, 0.5, 1.5)
    D = 2 * nb_class
    p['w4'] = 0.1 * jax.random.normal(next(ks), (C, D), jnp.float32)
    p['b4'] = 0.05 * jax.random.normal(next(ks), (D,), jnp.float32)
    p['bn4_g'] = 1.0 + 0.1 * jax.random.normal(next(ks), (D,), jnp.float32)
    p['bn4_b'] = 0.1 * jax.random.normal(next(ks), (D,), jnp.float32)
    p['bn4_m'] = 0.1 * jax.random.normal(next(ks), (D,), jnp.float32)
    p['bn4_v'] = jax.random.uniform(next(ks), (D,), jnp.float32, 0.5, 1.5)
    return p


def reference_forward(x_nchw, p, *, use_bf16=False):
    """Pure-JAX reference mirroring the PyTorch forward (inference).

    use_bf16=True mirrors the kernel's bf16 MXU operands (f32 accumulation),
    use_bf16=False is the exact f32 PyTorch-equivalent path.
    """
    cdt = jnp.bfloat16 if use_bf16 else jnp.float32
    x = jnp.transpose(x_nchw, (0, 2, 3, 1)).astype(jnp.float32)

    def bn(a, g, b, m, v):
        return (a - m) / jnp.sqrt(v + BN_EPS) * g + b

    for i in (1, 2, 3):
        x = lax.conv_general_dilated(
            x.astype(cdt), p[f'w{i}'].astype(cdt), (1, 1), 'VALID',
            dimension_numbers=('NHWC', 'HWIO', 'NHWC'),
            preferred_element_type=jnp.float32)
        x = x + p[f'b{i}']
        x = bn(x, p[f'bn{i}_g'], p[f'bn{i}_b'], p[f'bn{i}_m'], p[f'bn{i}_v'])
        x = jnp.where(x > 0, x, LEAK * x)
    x = jnp.mean(x, axis=(1, 2))                 # AvgPool2d(2,2) on 2x2 spatial
    x = jnp.dot(x.astype(cdt), p['w4'].astype(cdt),
                preferred_element_type=jnp.float32) + p['b4']
    x = bn(x, p['bn4_g'], p['bn4_b'], p['bn4_m'], p['bn4_v'])
    return x


if __name__ == "__main__":
    key = jax.random.PRNGKey(0)
    kx_, kp_ = jax.random.split(key)
    nb_class = 10
    # PyTorch-style NCHW input: first conv expects 64 input channels, 8x8 spatial.
    x = jax.random.normal(kx_, (2, 64, 8, 8), jnp.float32)
    params = init_params(kp_, nb_class=nb_class, C=64)

    # Exact-semantics check (f32 matmuls) against the pure-f32 reference.
    out32 = jax.block_until_ready(
        small_joint_classifier_forward(x, params, use_bf16=False))
    ref32 = reference_forward(x, params, use_bf16=False)
    assert out32.shape == (2, 2 * nb_class), out32.shape
    assert jnp.allclose(out32, ref32, rtol=1e-4, atol=1e-4), \
        float(jnp.max(jnp.abs(out32 - ref32)))

    # Optimized bf16-MXU path, checked against a reference that mirrors the
    # bf16 operand casts (f32 accumulation / epilogue in both).
    out_bf = jax.block_until_ready(
        small_joint_classifier_forward(x, params, use_bf16=True))
    ref_bf = reference_forward(x, params, use_bf16=True)
    assert out_bf.shape == (2, 2 * nb_class), out_bf.shape
    assert jnp.allclose(out_bf, ref_bf, rtol=2e-2, atol=2e-2), \
        float(jnp.max(jnp.abs(out_bf - ref_bf)))

    print("KERNEL_OK")
</pallas_src>

<mosaic_0001>
module attributes {stable_mosaic.version = 11 : i64} {
  func.func @_sjc_kernel(%arg0: i32, %arg1: memref<1x512x64xf32, #tpu.memory_space<vmem>>, %arg2: memref<5x128x64xf32, #tpu.memory_space<vmem>>, %arg3: memref<1x64xf32, #tpu.memory_space<vmem>>, %arg4: memref<1x64xf32, #tpu.memory_space<vmem>>, %arg5: memref<5x128x64xf32, #tpu.memory_space<vmem>>, %arg6: memref<1x64xf32, #tpu.memory_space<vmem>>, %arg7: memref<1x64xf32, #tpu.memory_space<vmem>>, %arg8: memref<5x128x64xf32, #tpu.memory_space<vmem>>, %arg9: memref<1x64xf32, #tpu.memory_space<vmem>>, %arg10: memref<1x64xf32, #tpu.memory_space<vmem>>, %arg11: memref<64x128xf32, #tpu.memory_space<vmem>>, %arg12: memref<1x128xf32, #tpu.memory_space<vmem>>, %arg13: memref<1x128xf32, #tpu.memory_space<vmem>>, %arg14: memref<1x8x128xf32, #tpu.memory_space<vmem>>) attributes {dimension_semantics = [#tpu.dimension_semantics<parallel>], iteration_bounds = array<i64: 1>, scalar_prefetch = 0 : i64, scratch_operands = 0 : i64, tpu.core_type = #tpu.core_type<tc>, window_params = [{transform_indices = @transform_0, window_bounds = array<i64: 1, 512, 64>}, {pipeline_mode = #tpu.pipeline_mode<synchronous>, transform_indices = @transform_1, window_bounds = array<i64: 5, 128, 64>}, {pipeline_mode = #tpu.pipeline_mode<synchronous>, transform_indices = @transform_2, window_bounds = array<i64: 1, 64>}, {pipeline_mode = #tpu.pipeline_mode<synchronous>, transform_indices = @transform_3, window_bounds = array<i64: 1, 64>}, {pipeline_mode = #tpu.pipeline_mode<synchronous>, transform_indices = @transform_4, window_bounds = array<i64: 5, 128, 64>}, {pipeline_mode = #tpu.pipeline_mode<synchronous>, transform_indices = @transform_5, window_bounds = array<i64: 1, 64>}, {pipeline_mode = #tpu.pipeline_mode<synchronous>, transform_indices = @transform_6, window_bounds = array<i64: 1, 64>}, {pipeline_mode = #tpu.pipeline_mode<synchronous>, transform_indices = @transform_7, window_bounds = array<i64: 5, 128, 64>}, {pipeline_mode = #tpu.pipeline_mode<synchronous>, transform_indices = @transform_8, window_bounds = array<i64: 1, 64>}, {pipeline_mode = #tpu.pipeline_mode<synchronous>, transform_indices = @transform_9, window_bounds = array<i64: 1, 64>}, {pipeline_mode = #tpu.pipeline_mode<synchronous>, transform_indices = @transform_10, window_bounds = array<i64: 64, 128>}, {pipeline_mode = #tpu.pipeline_mode<synchronous>, transform_indices = @transform_11, window_bounds = array<i64: 1, 128>}, {pipeline_mode = #tpu.pipeline_mode<synchronous>, transform_indices = @transform_12, window_bounds = array<i64: 1, 128>}, {transform_indices = @transform_13, window_bounds = array<i64: 1, 8, 128>}]} {
    %c0 = arith.constant 0 : index
    %c0_0 = arith.constant 0 : index
    %c0_1 = arith.constant 0 : index
    %0 = vector.load %arg1[%c0, %c0_0, %c0_1] : memref<1x512x64xf32, #tpu.memory_space<vmem>>, vector<1x368x64xf32>
    %1 = vector.shape_cast %0 : vector<1x368x64xf32> to vector<368x64xf32>
    %c0_2 = arith.constant 0 : index
    %c8 = arith.constant 8 : index
    %c0_3 = arith.constant 0 : index
    %2 = vector.load %arg1[%c0_2, %c8, %c0_3] : memref<1x512x64xf32, #tpu.memory_space<vmem>>, vector<1x368x64xf32>
    %3 = vector.shape_cast %2 : vector<1x368x64xf32> to vector<368x64xf32>
    %4 = tpu.concatenate %1, %3 in 1 : vector<368x64xf32>, vector<368x64xf32> -> vector<368x128xf32>
    %c0_4 = arith.constant 0 : index
    %c0_5 = arith.constant 0 : index
    %c0_6 = arith.constant 0 : index
    %5 = vector.load %arg2[%c0_4, %c0_5, %c0_6] : memref<5x128x64xf32, #tpu.memory_space<vmem>>, vector<1x128x64xf32>
    %6 = vector.shape_cast %5 : vector<1x128x64xf32> to vector<128x64xf32>
    %cst = arith.constant dense<0.000000e+00> : vector<368x64xf32>
    %7 = tpu.matmul %4, %6, %cst {dimension_numbers = #tpu.dot_dimension_numbers<[1], [0], [0], [1], [0, 0, 1, 1], [], []>} : vector<368x128xf32>, vector<128x64xf32>, vector<368x64xf32> -> vector<368x64xf32>
    %c0_7 = arith.constant 0 : index
    %c16 = arith.constant 16 : index
    %c0_8 = arith.constant 0 : index
    %8 = vector.load %arg1[%c0_7, %c16, %c0_8] : memref<1x512x64xf32, #tpu.memory_space<vmem>>, vector<1x368x64xf32>
    %9 = vector.shape_cast %8 : vector<1x368x64xf32> to vector<368x64xf32>
    %c0_9 = arith.constant 0 : index
    %c64 = arith.constant 64 : index
    %c0_10 = arith.constant 0 : index
    %10 = vector.load %arg1[%c0_9, %c64, %c0_10] : memref<1x512x64xf32, #tpu.memory_space<vmem>>, vector<1x368x64xf32>
    %11 = vector.shape_cast %10 : vector<1x368x64xf32> to vector<368x64xf32>
    %12 = tpu.concatenate %9, %11 in 1 : vector<368x64xf32>, vector<368x64xf32> -> vector<368x128xf32>
    %c1 = arith.constant 1 : index
    %c0_11 = arith.constant 0 : index
    %c0_12 = arith.constant 0 : index
    %13 = vector.load %arg2[%c1, %c0_11, %c0_12] : memref<5x128x64xf32, #tpu.memory_space<vmem>>, vector<1x128x64xf32>
    %14 = vector.shape_cast %13 : vector<1x128x64xf32> to vector<128x64xf32>
    %cst_13 = arith.constant dense<0.000000e+00> : vector<368x64xf32>
    %15 = tpu.matmul %12, %14, %cst_13 {dimension_numbers = #tpu.dot_dimension_numbers<[1], [0], [0], [1], [0, 0, 1, 1], [], []>} : vector<368x128xf32>, vector<128x64xf32>, vector<368x64xf32> -> vector<368x64xf32>
    %16 = arith.addf %7, %15 : vector<368x64xf32>
    %c0_14 = arith.constant 0 : index
    %c72 = arith.constant 72 : index
    %c0_15 = arith.constant 0 : index
    %17 = vector.load %arg1[%c0_14, %c72, %c0_15] : memref<1x512x64xf32, #tpu.memory_space<vmem>>, vector<1x368x64xf32>
    %18 = vector.shape_cast %17 : vector<1x368x64xf32> to vector<368x64xf32>
    %c0_16 = arith.constant 0 : index
    %c80 = arith.constant 80 : index
    %c0_17 = arith.constant 0 : index
    %19 = vector.load %arg1[%c0_16, %c80, %c0_17] : memref<1x512x64xf32, #tpu.memory_space<vmem>>, vector<1x368x64xf32>
    %20 = vector.shape_cast %19 : vector<1x368x64xf32> to vector<368x64xf32>
    %21 = tpu.concatenate %18, %20 in 1 : vector<368x64xf32>, vector<368x64xf32> -> vector<368x128xf32>
    %c2 = arith.constant 2 : index
    %c0_18 = arith.constant 0 : index
    %c0_19 = arith.constant 0 : index
    %22 = vector.load %arg2[%c2, %c0_18, %c0_19] : memref<5x128x64xf32, #tpu.memory_space<vmem>>, vector<1x128x64xf32>
    %23 = vector.shape_cast %22 : vector<1x128x64xf32> to vector<128x64xf32>
    %cst_20 = arith.constant dense<0.000000e+00> : vector<368x64xf32>
    %24 = tpu.matmul %21, %23, %cst_20 {dimension_numbers = #tpu.dot_dimension_numbers<[1], [0], [0], [1], [0, 0, 1, 1], [], []>} : vector<368x128xf32>, vector<128x64xf32>, vector<368x64xf32> -> vector<368x64xf32>
    %25 = arith.addf %16, %24 : vector<368x64xf32>
    %c0_21 = arith.constant 0 : index
    %c128 = arith.constant 128 : index
    %c0_22 = arith.constant 0 : index
    %26 = vector.load %arg1[%c0_21, %c128, %c0_22] : memref<1x512x64xf32, #tpu.memory_space<vmem>>, vector<1x368x64xf32>
    %27 = vector.shape_cast %26 : vector<1x368x64xf32> to vector<368x64xf32>
    %c0_23 = arith.constant 0 : index
    %c136 = arith.constant 136 : index
    %c0_24 = arith.constant 0 : index
    %28 = vector.load %arg1[%c0_23, %c136, %c0_24] : memref<1x512x64xf32, #tpu.memory_space<vmem>>, vector<1x368x64xf32>
    %29 = vector.shape_cast %28 : vector<1x368x64xf32> to vector<368x64xf32>
    %30 = tpu.concatenate %27, %29 in 1 : vector<368x64xf32>, vector<368x64xf32> -> vector<368x128xf32>
    %c3 = arith.constant 3 : index
    %c0_25 = arith.constant 0 : index
    %c0_26 = arith.constant 0 : index
    %31 = vector.load %arg2[%c3, %c0_25, %c0_26] : memref<5x128x64xf32, #tpu.memory_space<vmem>>, vector<1x128x64xf32>
    %32 = vector.shape_cast %31 : vector<1x128x64xf32> to vector<128x64xf32>
    %cst_27 = arith.constant dense<0.000000e+00> : vector<368x64xf32>
    %33 = tpu.matmul %30, %32, %cst_27 {dimension_numbers = #tpu.dot_dimension_numbers<[1], [0], [0], [1], [0, 0, 1, 1], [], []>} : vector<368x128xf32>, vector<128x64xf32>, vector<368x64xf32> -> vector<368x64xf32>
    %34 = arith.addf %25, %33 : vector<368x64xf32>
    %c0_28 = arith.constant 0 : index
    %c144 = arith.constant 144 : index
    %c0_29 = arith.constant 0 : index
    %35 = vector.load %arg1[%c0_28, %c144, %c0_29] : memref<1x512x64xf32, #tpu.memory_space<vmem>>, vector<1x368x64xf32>
    %36 = vector.shape_cast %35 : vector<1x368x64xf32> to vector<368x64xf32>
    %c0_30 = arith.constant 0 : index
    %c144_31 = arith.constant 144 : index
    %c0_32 = arith.constant 0 : index
    %37 = vector.load %arg1[%c0_30, %c144_31, %c0_32] : memref<1x512x64xf32, #tpu.memory_space<vmem>>, vector<1x368x64xf32>
    %38 = vector.shape_cast %37 : vector<1x368x64xf32> to vector<368x64xf32>
    %39 = tpu.concatenate %36, %38 in 1 : vector<368x64xf32>, vector<368x64xf32> -> vector<368x128xf32>
    %c4 = arith.constant 4 : index
    %c0_33 = arith.constant 0 : index
    %c0_34 = arith.constant 0 : index
    %40 = vector.load %arg2[%c4, %c0_33, %c0_34] : memref<5x128x64xf32, #tpu.memory_space<vmem>>, vector<1x128x64xf32>
    %41 = vector.shape_cast %40 : vector<1x128x64xf32> to vector<128x64xf32>
    %cst_35 = arith.constant dense<0.000000e+00> : vector<368x64xf32>
    %42 = tpu.matmul %39, %41, %cst_35 {dimension_numbers = #tpu.dot_dimension_numbers<[1], [0], [0], [1], [0, 0, 1, 1], [], []>} : vector<368x128xf32>, vector<128x64xf32>, vector<368x64xf32> -> vector<368x64xf32>
    %43 = arith.addf %34, %42 : vector<368x64xf32>
    %c0_36 = arith.constant 0 : index
    %c0_37 = arith.constant 0 : index
    %44 = vector.load %arg3[%c0_36, %c0_37] : memref<1x64xf32, #tpu.memory_space<vmem>>, vector<1x64xf32>
    %45 = vector.broadcast %44 : vector<1x64xf32> to vector<368x64xf32>
    %46 = arith.mulf %43, %45 : vector<368x64xf32>
    %c0_38 = arith.constant 0 : index
    %c0_39 = arith.constant 0 : index
    %47 = vector.load %arg4[%c0_38, %c0_39] : memref<1x64xf32, #tpu.memory_space<vmem>>, vector<1x64xf32>
    %48 = vector.broadcast %47 : vector<1x64xf32> to vector<368x64xf32>
    %49 = arith.addf %46, %48 : vector<368x64xf32>
    %cst_40 = arith.constant 0.000000e+00 : f32
    %50 = vector.broadcast %cst_40 : f32 to vector<368x64xf32>
    %51 = arith.cmpf ogt, %49, %50 : vector<368x64xf32>
    %cst_41 = arith.constant 1.000000e-01 : f32
    %52 = vector.broadcast %cst_41 : f32 to vector<368x64xf32>
    %53 = arith.mulf %52, %49 : vector<368x64xf32>
    %54 = arith.select %51, %49, %53 : vector<368x64xi1>, vector<368x64xf32>
    %55 = vector.extract_strided_slice %54 {offsets = [0, 0], sizes = [224, 64], strides = [1, 1]} : vector<368x64xf32> to vector<224x64xf32>
    %56 = vector.extract_strided_slice %54 {offsets = [8, 0], sizes = [224, 64], strides = [1, 1]} : vector<368x64xf32> to vector<224x64xf32>
    %57 = tpu.concatenate %55, %56 in 1 : vector<224x64xf32>, vector<224x64xf32> -> vector<224x128xf32>
    %c0_42 = arith.constant 0 : index
    %c0_43 = arith.constant 0 : index
    %c0_44 = arith.constant 0 : index
    %58 = vector.load %arg5[%c0_42, %c0_43, %c0_44] : memref<5x128x64xf32, #tpu.memory_space<vmem>>, vector<1x128x64xf32>
    %59 = vector.shape_cast %58 : vector<1x128x64xf32> to vector<128x64xf32>
    %cst_45 = arith.constant dense<0.000000e+00> : vector<224x64xf32>
    %60 = tpu.matmul %57, %59, %cst_45 {dimension_numbers = #tpu.dot_dimension_numbers<[1], [0], [0], [1], [0, 0, 1, 1], [], []>} : vector<224x128xf32>, vector<128x64xf32>, vector<224x64xf32> -> vector<224x64xf32>
    %61 = vector.extract_strided_slice %54 {offsets = [16, 0], sizes = [224, 64], strides = [1, 1]} : vector<368x64xf32> to vector<224x64xf32>
    %62 = vector.extract_strided_slice %54 {offsets = [64, 0], sizes = [224, 64], strides = [1, 1]} : vector<368x64xf32> to vector<224x64xf32>
    %63 = tpu.concatenate %61, %62 in 1 : vector<224x64xf32>, vector<224x64xf32> -> vector<224x128xf32>
    %c1_46 = arith.constant 1 : index
    %c0_47 = arith.constant 0 : index
    %c0_48 = arith.constant 0 : index
    %64 = vector.load %arg5[%c1_46, %c0_47, %c0_48] : memref<5x128x64xf32, #tpu.memory_space<vmem>>, vector<1x128x64xf32>
    %65 = vector.shape_cast %64 : vector<1x128x64xf32> to vector<128x64xf32>
    %cst_49 = arith.constant dense<0.000000e+00> : vector<224x64xf32>
    %66 = tpu.matmul %63, %65, %cst_49 {dimension_numbers = #tpu.dot_dimension_numbers<[1], [0], [0], [1], [0, 0, 1, 1], [], []>} : vector<224x128xf32>, vector<128x64xf32>, vector<224x64xf32> -> vector<224x64xf32>
    %67 = arith.addf %60, %66 : vector<224x64xf32>
    %68 = vector.extract_strided_slice %54 {offsets = [72, 0], sizes = [224, 64], strides = [1, 1]} : vector<368x64xf32> to vector<224x64xf32>
    %69 = vector.extract_strided_slice %54 {offsets = [80, 0], sizes = [224, 64], strides = [1, 1]} : vector<368x64xf32> to vector<224x64xf32>
    %70 = tpu.concatenate %68, %69 in 1 : vector<224x64xf32>, vector<224x64xf32> -> vector<224x128xf32>
    %c2_50 = arith.constant 2 : index
    %c0_51 = arith.constant 0 : index
    %c0_52 = arith.constant 0 : index
    %71 = vector.load %arg5[%c2_50, %c0_51, %c0_52] : memref<5x128x64xf32, #tpu.memory_space<vmem>>, vector<1x128x64xf32>
    %72 = vector.shape_cast %71 : vector<1x128x64xf32> to vector<128x64xf32>
    %cst_53 = arith.constant dense<0.000000e+00> : vector<224x64xf32>
    %73 = tpu.matmul %70, %72, %cst_53 {dimension_numbers = #tpu.dot_dimension_numbers<[1], [0], [0], [1], [0, 0, 1, 1], [], []>} : vector<224x128xf32>, vector<128x64xf32>, vector<224x64xf32> -> vector<224x64xf32>
    %74 = arith.addf %67, %73 : vector<224x64xf32>
    %75 = vector.extract_strided_slice %54 {offsets = [128, 0], sizes = [224, 64], strides = [1, 1]} : vector<368x64xf32> to vector<224x64xf32>
    %76 = vector.extract_strided_slice %54 {offsets = [136, 0], sizes = [224, 64], strides = [1, 1]} : vector<368x64xf32> to vector<224x64xf32>
    %77 = tpu.concatenate %75, %76 in 1 : vector<224x64xf32>, vector<224x64xf32> -> vector<224x128xf32>
    %c3_54 = arith.constant 3 : index
    %c0_55 = arith.constant 0 : index
    %c0_56 = arith.constant 0 : index
    %78 = vector.load %arg5[%c3_54, %c0_55, %c0_56] : memref<5x128x64xf32, #tpu.memory_space<vmem>>, vector<1x128x64xf32>
    %79 = vector.shape_cast %78 : vector<1x128x64xf32> to vector<128x64xf32>
    %cst_57 = arith.constant dense<0.000000e+00> : vector<224x64xf32>
    %80 = tpu.matmul %77, %79, %cst_57 {dimension_numbers = #tpu.dot_dimension_numbers<[1], [0], [0], [1], [0, 0, 1, 1], [], []>} : vector<224x128xf32>, vector<128x64xf32>, vector<224x64xf32> -> vector<224x64xf32>
    %81 = arith.addf %74, %80 : vector<224x64xf32>
    %82 = vector.extract_strided_slice %54 {offsets = [144, 0], sizes = [224, 64], strides = [1, 1]} : vector<368x64xf32> to vector<224x64xf32>
    %83 = vector.extract_strided_slice %54 {offsets = [144, 0], sizes = [224, 64], strides = [1, 1]} : vector<368x64xf32> to vector<224x64xf32>
    %84 = tpu.concatenate %82, %83 in 1 : vector<224x64xf32>, vector<224x64xf32> -> vector<224x128xf32>
    %c4_58 = arith.constant 4 : index
    %c0_59 = arith.constant 0 : index
    %c0_60 = arith.constant 0 : index
    %85 = vector.load %arg5[%c4_58, %c0_59, %c0_60] : memref<5x128x64xf32, #tpu.memory_space<vmem>>, vector<1x128x64xf32>
    %86 = vector.shape_cast %85 : vector<1x128x64xf32> to vector<128x64xf32>
    %cst_61 = arith.constant dense<0.000000e+00> : vector<224x64xf32>
    %87 = tpu.matmul %84, %86, %cst_61 {dimension_numbers = #tpu.dot_dimension_numbers<[1], [0], [0], [1], [0, 0, 1, 1], [], []>} : vector<224x128xf32>, vector<128x64xf32>, vector<224x64xf32> -> vector<224x64xf32>
    %88 = arith.addf %81, %87 : vector<224x64xf32>
    %c0_62 = arith.constant 0 : index
    %c0_63 = arith.constant 0 : index
    %89 = vector.load %arg6[%c0_62, %c0_63] : memref<1x64xf32, #tpu.memory_space<vmem>>, vector<1x64xf32>
    %90 = vector.broadcast %89 : vector<1x64xf32> to vector<224x64xf32>
    %91 = arith.mulf %88, %90 : vector<224x64xf32>
    %c0_64 = arith.constant 0 : index
    %c0_65 = arith.constant 0 : index
    %92 = vector.load %arg7[%c0_64, %c0_65] : memref<1x64xf32, #tpu.memory_space<vmem>>, vector<1x64xf32>
    %93 = vector.broadcast %92 : vector<1x64xf32> to vector<224x64xf32>
    %94 = arith.addf %91, %93 : vector<224x64xf32>
    %cst_66 = arith.constant 0.000000e+00 : f32
    %95 = vector.broadcast %cst_66 : f32 to vector<224x64xf32>
    %96 = arith.cmpf ogt, %94, %95 : vector<224x64xf32>
    %cst_67 = arith.constant 1.000000e-01 : f32
    %97 = vector.broadcast %cst_67 : f32 to vector<224x64xf32>
    %98 = arith.mulf %97, %94 : vector<224x64xf32>
    %99 = arith.select %96, %94, %98 : vector<224x64xi1>, vector<224x64xf32>
    %100 = vector.extract_strided_slice %99 {offsets = [0, 0], sizes = [16, 64], strides = [1, 1]} : vector<224x64xf32> to vector<16x64xf32>
    %101 = vector.extract_strided_slice %99 {offsets = [8, 0], sizes = [16, 64], strides = [1, 1]} : vector<224x64xf32> to vector<16x64xf32>
    %102 = tpu.concatenate %100, %101 in 1 : vector<16x64xf32>, vector<16x64xf32> -> vector<16x128xf32>
    %c0_68 = arith.constant 0 : index
    %c0_69 = arith.constant 0 : index
    %c0_70 = arith.constant 0 : index
    %103 = vector.load %arg8[%c0_68, %c0_69, %c0_70] : memref<5x128x64xf32, #tpu.memory_space<vmem>>, vector<1x128x64xf32>
    %104 = vector.shape_cast %103 : vector<1x128x64xf32> to vector<128x64xf32>
    %cst_71 = arith.constant dense<0.000000e+00> : vector<16x64xf32>
    %105 = tpu.matmul %102, %104, %cst_71 {dimension_numbers = #tpu.dot_dimension_numbers<[1], [0], [0], [1], [0, 0, 1, 1], [], []>} : vector<16x128xf32>, vector<128x64xf32>, vector<16x64xf32> -> vector<16x64xf32>
    %106 = vector.extract_strided_slice %99 {offsets = [16, 0], sizes = [16, 64], strides = [1, 1]} : vector<224x64xf32> to vector<16x64xf32>
    %107 = vector.extract_strided_slice %99 {offsets = [64, 0], sizes = [16, 64], strides = [1, 1]} : vector<224x64xf32> to vector<16x64xf32>
    %108 = tpu.concatenate %106, %107 in 1 : vector<16x64xf32>, vector<16x64xf32> -> vector<16x128xf32>
    %c1_72 = arith.constant 1 : index
    %c0_73 = arith.constant 0 : index
    %c0_74 = arith.constant 0 : index
    %109 = vector.load %arg8[%c1_72, %c0_73, %c0_74] : memref<5x128x64xf32, #tpu.memory_space<vmem>>, vector<1x128x64xf32>
    %110 = vector.shape_cast %109 : vector<1x128x64xf32> to vector<128x64xf32>
    %cst_75 = arith.constant dense<0.000000e+00> : vector<16x64xf32>
    %111 = tpu.matmul %108, %110, %cst_75 {dimension_numbers = #tpu.dot_dimension_numbers<[1], [0], [0], [1], [0, 0, 1, 1], [], []>} : vector<16x128xf32>, vector<128x64xf32>, vector<16x64xf32> -> vector<16x64xf32>
    %112 = arith.addf %105, %111 : vector<16x64xf32>
    %113 = vector.extract_strided_slice %99 {offsets = [72, 0], sizes = [16, 64], strides = [1, 1]} : vector<224x64xf32> to vector<16x64xf32>
    %114 = vector.extract_strided_slice %99 {offsets = [80, 0], sizes = [16, 64], strides = [1, 1]} : vector<224x64xf32> to vector<16x64xf32>
    %115 = tpu.concatenate %113, %114 in 1 : vector<16x64xf32>, vector<16x64xf32> -> vector<16x128xf32>
    %c2_76 = arith.constant 2 : index
    %c0_77 = arith.constant 0 : index
    %c0_78 = arith.constant 0 : index
    %116 = vector.load %arg8[%c2_76, %c0_77, %c0_78] : memref<5x128x64xf32, #tpu.memory_space<vmem>>, vector<1x128x64xf32>
    %117 = vector.shape_cast %116 : vector<1x128x64xf32> to vector<128x64xf32>
    %cst_79 = arith.constant dense<0.000000e+00> : vector<16x64xf32>
    %118 = tpu.matmul %115, %117, %cst_79 {dimension_numbers = #tpu.dot_dimension_numbers<[1], [0], [0], [1], [0, 0, 1, 1], [], []>} : vector<16x128xf32>, vector<128x64xf32>, vector<16x64xf32> -> vector<16x64xf32>
    %119 = arith.addf %112, %118 : vector<16x64xf32>
    %120 = vector.extract_strided_slice %99 {offsets = [128, 0], sizes = [16, 64], strides = [1, 1]} : vector<224x64xf32> to vector<16x64xf32>
    %121 = vector.extract_strided_slice %99 {offsets = [136, 0], sizes = [16, 64], strides = [1, 1]} : vector<224x64xf32> to vector<16x64xf32>
    %122 = tpu.concatenate %120, %121 in 1 : vector<16x64xf32>, vector<16x64xf32> -> vector<16x128xf32>
    %c3_80 = arith.constant 3 : index
    %c0_81 = arith.constant 0 : index
    %c0_82 = arith.constant 0 : index
    %123 = vector.load %arg8[%c3_80, %c0_81, %c0_82] : memref<5x128x64xf32, #tpu.memory_space<vmem>>, vector<1x128x64xf32>
    %124 = vector.shape_cast %123 : vector<1x128x64xf32> to vector<128x64xf32>
    %cst_83 = arith.constant dense<0.000000e+00> : vector<16x64xf32>
    %125 = tpu.matmul %122, %124, %cst_83 {dimension_numbers = #tpu.dot_dimension_numbers<[1], [0], [0], [1], [0, 0, 1, 1], [], []>} : vector<16x128xf32>, vector<128x64xf32>, vector<16x64xf32> -> vector<16x64xf32>
    %126 = arith.addf %119, %125 : vector<16x64xf32>
    %127 = vector.extract_strided_slice %99 {offsets = [144, 0], sizes = [16, 64], strides = [1, 1]} : vector<224x64xf32> to vector<16x64xf32>
    %128 = vector.extract_strided_slice %99 {offsets = [144, 0], sizes = [16, 64], strides = [1, 1]} : vector<224x64xf32> to vector<16x64xf32>
    %129 = tpu.concatenate %127, %128 in 1 : vector<16x64xf32>, vector<16x64xf32> -> vector<16x128xf32>
    %c4_84 = arith.constant 4 : index
    %c0_85 = arith.constant 0 : index
    %c0_86 = arith.constant 0 : index
    %130 = vector.load %arg8[%c4_84, %c0_85, %c0_86] : memref<5x128x64xf32, #tpu.memory_space<vmem>>, vector<1x128x64xf32>
    %131 = vector.shape_cast %130 : vector<1x128x64xf32> to vector<128x64xf32>
    %cst_87 = arith.constant dense<0.000000e+00> : vector<16x64xf32>
    %132 = tpu.matmul %129, %131, %cst_87 {dimension_numbers = #tpu.dot_dimension_numbers<[1], [0], [0], [1], [0, 0, 1, 1], [], []>} : vector<16x128xf32>, vector<128x64xf32>, vector<16x64xf32> -> vector<16x64xf32>
    %133 = arith.addf %126, %132 : vector<16x64xf32>
    %c0_88 = arith.constant 0 : index
    %c0_89 = arith.constant 0 : index
    %134 = vector.load %arg9[%c0_88, %c0_89] : memref<1x64xf32, #tpu.memory_space<vmem>>, vector<1x64xf32>
    %135 = vector.broadcast %134 : vector<1x64xf32> to vector<16x64xf32>
    %136 = arith.mulf %133, %135 : vector<16x64xf32>
    %c0_90 = arith.constant 0 : index
    %c0_91 = arith.constant 0 : index
    %137 = vector.load %arg10[%c0_90, %c0_91] : memref<1x64xf32, #tpu.memory_space<vmem>>, vector<1x64xf32>
    %138 = vector.broadcast %137 : vector<1x64xf32> to vector<16x64xf32>
    %139 = arith.addf %136, %138 : vector<16x64xf32>
    %cst_92 = arith.constant 0.000000e+00 : f32
    %140 = vector.broadcast %cst_92 : f32 to vector<16x64xf32>
    %141 = arith.cmpf ogt, %139, %140 : vector<16x64xf32>
    %cst_93 = arith.constant 1.000000e-01 : f32
    %142 = vector.broadcast %cst_93 : f32 to vector<16x64xf32>
    %143 = arith.mulf %142, %139 : vector<16x64xf32>
    %144 = arith.select %141, %139, %143 : vector<16x64xi1>, vector<16x64xf32>
    %145 = vector.extract_strided_slice %99 {offsets = [64, 0], sizes = [16, 64], strides = [1, 1]} : vector<224x64xf32> to vector<16x64xf32>
    %146 = vector.extract_strided_slice %99 {offsets = [72, 0], sizes = [16, 64], strides = [1, 1]} : vector<224x64xf32> to vector<16x64xf32>
    %147 = tpu.concatenate %145, %146 in 1 : vector<16x64xf32>, vector<16x64xf32> -> vector<16x128xf32>
    %c0_94 = arith.constant 0 : index
    %c0_95 = arith.constant 0 : index
    %c0_96 = arith.constant 0 : index
    %148 = vector.load %arg8[%c0_94, %c0_95, %c0_96] : memref<5x128x64xf32, #tpu.memory_space<vmem>>, vector<1x128x64xf32>
    %149 = vector.shape_cast %148 : vector<1x128x64xf32> to vector<128x64xf32>
    %cst_97 = arith.constant dense<0.000000e+00> : vector<16x64xf32>
    %150 = tpu.matmul %147, %149, %cst_97 {dimension_numbers = #tpu.dot_dimension_numbers<[1], [0], [0], [1], [0, 0, 1, 1], [], []>} : vector<16x128xf32>, vector<128x64xf32>, vector<16x64xf32> -> vector<16x64xf32>
    %151 = vector.extract_strided_slice %99 {offsets = [80, 0], sizes = [16, 64], strides = [1, 1]} : vector<224x64xf32> to vector<16x64xf32>
    %152 = vector.extract_strided_slice %99 {offsets = [128, 0], sizes = [16, 64], strides = [1, 1]} : vector<224x64xf32> to vector<16x64xf32>
    %153 = tpu.concatenate %151, %152 in 1 : vector<16x64xf32>, vector<16x64xf32> -> vector<16x128xf32>
    %c1_98 = arith.constant 1 : index
    %c0_99 = arith.constant 0 : index
    %c0_100 = arith.constant 0 : index
    %154 = vector.load %arg8[%c1_98, %c0_99, %c0_100] : memref<5x128x64xf32, #tpu.memory_space<vmem>>, vector<1x128x64xf32>
    %155 = vector.shape_cast %154 : vector<1x128x64xf32> to vector<128x64xf32>
    %cst_101 = arith.constant dense<0.000000e+00> : vector<16x64xf32>
    %156 = tpu.matmul %153, %155, %cst_101 {dimension_numbers = #tpu.dot_dimension_numbers<[1], [0], [0], [1], [0, 0, 1, 1], [], []>} : vector<16x128xf32>, vector<128x64xf32>, vector<16x64xf32> -> vector<16x64xf32>
    %157 = arith.addf %150, %156 : vector<16x64xf32>
    %158 = vector.extract_strided_slice %99 {offsets = [136, 0], sizes = [16, 64], strides = [1, 1]} : vector<224x64xf32> to vector<16x64xf32>
    %159 = vector.extract_strided_slice %99 {offsets = [144, 0], sizes = [16, 64], strides = [1, 1]} : vector<224x64xf32> to vector<16x64xf32>
    %160 = tpu.concatenate %158, %159 in 1 : vector<16x64xf32>, vector<16x64xf32> -> vector<16x128xf32>
    %c2_102 = arith.constant 2 : index
    %c0_103 = arith.constant 0 : index
    %c0_104 = arith.constant 0 : index
    %161 = vector.load %arg8[%c2_102, %c0_103, %c0_104] : memref<5x128x64xf32, #tpu.memory_space<vmem>>, vector<1x128x64xf32>
    %162 = vector.shape_cast %161 : vector<1x128x64xf32> to vector<128x64xf32>
    %cst_105 = arith.constant dense<0.000000e+00> : vector<16x64xf32>
    %163 = tpu.matmul %160, %162, %cst_105 {dimension_numbers = #tpu.dot_dimension_numbers<[1], [0], [0], [1], [0, 0, 1, 1], [], []>} : vector<16x128xf32>, vector<128x64xf32>, vector<16x64xf32> -> vector<16x64xf32>
    %164 = arith.addf %157, %163 : vector<16x64xf32>
    %165 = vector.extract_strided_slice %99 {offsets = [192, 0], sizes = [16, 64], strides = [1, 1]} : vector<224x64xf32> to vector<16x64xf32>
    %166 = vector.extract_strided_slice %99 {offsets = [200, 0], sizes = [16, 64], strides = [1, 1]} : vector<224x64xf32> to vector<16x64xf32>
    %167 = tpu.concatenate %165, %166 in 1 : vector<16x64xf32>, vector<16x64xf32> -> vector<16x128xf32>
    %c3_106 = arith.constant 3 : index
    %c0_107 = arith.constant 0 : index
    %c0_108 = arith.constant 0 : index
    %168 = vector.load %arg8[%c3_106, %c0_107, %c0_108] : memref<5x128x64xf32, #tpu.memory_space<vmem>>, vector<1x128x64xf32>
    %169 = vector.shape_cast %168 : vector<1x128x64xf32> to vector<128x64xf32>
    %cst_109 = arith.constant dense<0.000000e+00> : vector<16x64xf32>
    %170 = tpu.matmul %167, %169, %cst_109 {dimension_numbers = #tpu.dot_dimension_numbers<[1], [0], [0], [1], [0, 0, 1, 1], [], []>} : vector<16x128xf32>, vector<128x64xf32>, vector<16x64xf32> -> vector<16x64xf32>
    %171 = arith.addf %164, %170 : vector<16x64xf32>
    %172 = vector.extract_strided_slice %99 {offsets = [208, 0], sizes = [16, 64], strides = [1, 1]} : vector<224x64xf32> to vector<16x64xf32>
    %173 = vector.extract_strided_slice %99 {offsets = [208, 0], sizes = [16, 64], strides = [1, 1]} : vector<224x64xf32> to vector<16x64xf32>
    %174 = tpu.concatenate %172, %173 in 1 : vector<16x64xf32>, vector<16x64xf32> -> vector<16x128xf32>
    %c4_110 = arith.constant 4 : index
    %c0_111 = arith.constant 0 : index
    %c0_112 = arith.constant 0 : index
    %175 = vector.load %arg8[%c4_110, %c0_111, %c0_112] : memref<5x128x64xf32, #tpu.memory_space<vmem>>, vector<1x128x64xf32>
    %176 = vector.shape_cast %175 : vector<1x128x64xf32> to vector<128x64xf32>
    %cst_113 = arith.constant dense<0.000000e+00> : vector<16x64xf32>
    %177 = tpu.matmul %174, %176, %cst_113 {dimension_numbers = #tpu.dot_dimension_numbers<[1], [0], [0], [1], [0, 0, 1, 1], [], []>} : vector<16x128xf32>, vector<128x64xf32>, vector<16x64xf32> -> vector<16x64xf32>
    %178 = arith.addf %171, %177 : vector<16x64xf32>
    %c0_114 = arith.constant 0 : index
    %c0_115 = arith.constant 0 : index
    %179 = vector.load %arg9[%c0_114, %c0_115] : memref<1x64xf32, #tpu.memory_space<vmem>>, vector<1x64xf32>
    %180 = vector.broadcast %179 : vector<1x64xf32> to vector<16x64xf32>
    %181 = arith.mulf %178, %180 : vector<16x64xf32>
    %c0_116 = arith.constant 0 : index
    %c0_117 = arith.constant 0 : index
    %182 = vector.load %arg10[%c0_116, %c0_117] : memref<1x64xf32, #tpu.memory_space<vmem>>, vector<1x64xf32>
    %183 = vector.broadcast %182 : vector<1x64xf32> to vector<16x64xf32>
    %184 = arith.addf %181, %183 : vector<16x64xf32>
    %cst_118 = arith.constant 0.000000e+00 : f32
    %185 = vector.broadcast %cst_118 : f32 to vector<16x64xf32>
    %186 = arith.cmpf ogt, %184, %185 : vector<16x64xf32>
    %cst_119 = arith.constant 1.000000e-01 : f32
    %187 = vector.broadcast %cst_119 : f32 to vector<16x64xf32>
    %188 = arith.mulf %187, %184 : vector<16x64xf32>
    %189 = arith.select %186, %184, %188 : vector<16x64xi1>, vector<16x64xf32>
    %190 = vector.extract_strided_slice %144 {offsets = [0, 0], sizes = [8, 64], strides = [1, 1]} : vector<16x64xf32> to vector<8x64xf32>
    %191 = vector.extract_strided_slice %144 {offsets = [8, 0], sizes = [8, 64], strides = [1, 1]} : vector<16x64xf32> to vector<8x64xf32>
    %192 = arith.addf %190, %191 : vector<8x64xf32>
    %193 = vector.extract_strided_slice %189 {offsets = [0, 0], sizes = [8, 64], strides = [1, 1]} : vector<16x64xf32> to vector<8x64xf32>
    %194 = arith.addf %192, %193 : vector<8x64xf32>
    %195 = vector.extract_strided_slice %189 {offsets = [8, 0], sizes = [8, 64], strides = [1, 1]} : vector<16x64xf32> to vector<8x64xf32>
    %196 = arith.addf %194, %195 : vector<8x64xf32>
    %cst_120 = arith.constant 2.500000e-01 : f32
    %197 = vector.broadcast %cst_120 : f32 to vector<8x64xf32>
    %198 = arith.mulf %196, %197 : vector<8x64xf32>
    %c0_121 = arith.constant 0 : index
    %c0_122 = arith.constant 0 : index
    %199 = vector.load %arg11[%c0_121, %c0_122] : memref<64x128xf32, #tpu.memory_space<vmem>>, vector<64x128xf32>
    %cst_123 = arith.constant dense<0.000000e+00> : vector<8x128xf32>
    %200 = tpu.matmul %198, %199, %cst_123 {dimension_numbers = #tpu.dot_dimension_numbers<[1], [0], [0], [1], [0, 0, 1, 1], [], []>} : vector<8x64xf32>, vector<64x128xf32>, vector<8x128xf32> -> vector<8x128xf32>
    %c0_124 = arith.constant 0 : index
    %c0_125 = arith.constant 0 : index
    %201 = vector.load %arg12[%c0_124, %c0_125] : memref<1x128xf32, #tpu.memory_space<vmem>>, vector<1x128xf32>
    %202 = vector.broadcast %201 : vector<1x128xf32> to vector<8x128xf32>
    %203 = arith.mulf %200, %202 : vector<8x128xf32>
    %c0_126 = arith.constant 0 : index
    %c0_127 = arith.constant 0 : index
    %204 = vector.load %arg13[%c0_126, %c0_127] : memref<1x128xf32, #tpu.memory_space<vmem>>, vector<1x128xf32>
    %205 = vector.broadcast %204 : vector<1x128xf32> to vector<8x128xf32>
    %206 = arith.addf %203, %205 : vector<8x128xf32>
    %c0_128 = arith.constant 0 : index
    %c0_129 = arith.constant 0 : index
    %c0_130 = arith.constant 0 : index
    %207 = vector.load %arg14[%c0_128, %c0_129, %c0_130] : memref<1x8x128xf32, #tpu.memory_space<vmem>>, vector<1x8x128xf32>
    %208 = vector.shape_cast %207 : vector<1x8x128xf32> to vector<8x128xf32>
    %209 = vector.shape_cast %206 : vector<8x128xf32> to vector<1x8x128xf32>
    tpu.vector_store %arg14[%c0_128, %c0_129, %c0_130], %209 {strides = array<i32>} : memref<1x8x128xf32, #tpu.memory_space<vmem>>, vector<1x8x128xf32>,
    return
  }
  func.func @transform_0(%arg0: i32) -> (i32, i32, i32) {
    %c0_i32 = arith.constant 0 : i32
    %c0_i32_0 = arith.constant 0 : i32
    %c0_i32_1 = arith.constant 0 : i32
    return %arg0, %c0_i32, %c0_i32_0 : i32, i32, i32
  }
  func.func @transform_1(%arg0: i32) -> (i32, i32, i32) {
    %c0_i32 = arith.constant 0 : i32
    %c0_i32_0 = arith.constant 0 : i32
    %c0_i32_1 = arith.constant 0 : i32
    %c0_i32_2 = arith.constant 0 : i32
    return %c0_i32, %c0_i32_0, %c0_i32_1 : i32, i32, i32
  }
  func.func @transform_2(%arg0: i32) -> (i32, i32) {
    %c0_i32 = arith.constant 0 : i32
    %c0_i32_0 = arith.constant 0 : i32
    %c0_i32_1 = arith.constant 0 : i32
    return %c0_i32, %c0_i32_0 : i32, i32
  }
  func.func @transform_3(%arg0: i32) -> (i32, i32) {
    %c0_i32 = arith.constant 0 : i32
    %c0_i32_0 = arith.constant 0 : i32
    %c0_i32_1 = arith.constant 0 : i32
    return %c0_i32, %c0_i32_0 : i32, i32
  }
  func.func @transform_4(%arg0: i32) -> (i32, i32, i32) {
    %c0_i32 = arith.constant 0 : i32
    %c0_i32_0 = arith.constant 0 : i32
    %c0_i32_1 = arith.constant 0 : i32
    %c0_i32_2 = arith.constant 0 : i32
    return %c0_i32, %c0_i32_0, %c0_i32_1 : i32, i32, i32
  }
  func.func @transform_5(%arg0: i32) -> (i32, i32) {
    %c0_i32 = arith.constant 0 : i32
    %c0_i32_0 = arith.constant 0 : i32
    %c0_i32_1 = arith.constant 0 : i32
    return %c0_i32, %c0_i32_0 : i32, i32
  }
  func.func @transform_6(%arg0: i32) -> (i32, i32) {
    %c0_i32 = arith.constant 0 : i32
    %c0_i32_0 = arith.constant 0 : i32
    %c0_i32_1 = arith.constant 0 : i32
    return %c0_i32, %c0_i32_0 : i32, i32
  }
  func.func @transform_7(%arg0: i32) -> (i32, i32, i32) {
    %c0_i32 = arith.constant 0 : i32
    %c0_i32_0 = arith.constant 0 : i32
    %c0_i32_1 = arith.constant 0 : i32
    %c0_i32_2 = arith.constant 0 : i32
    return %c0_i32, %c0_i32_0, %c0_i32_1 : i32, i32, i32
  }
  func.func @transform_8(%arg0: i32) -> (i32, i32) {
    %c0_i32 = arith.constant 0 : i32
    %c0_i32_0 = arith.constant 0 : i32
    %c0_i32_1 = arith.constant 0 : i32
    return %c0_i32, %c0_i32_0 : i32, i32
  }
  func.func @transform_9(%arg0: i32) -> (i32, i32) {
    %c0_i32 = arith.constant 0 : i32
    %c0_i32_0 = arith.constant 0 : i32
    %c0_i32_1 = arith.constant 0 : i32
    return %c0_i32, %c0_i32_0 : i32, i32
  }
  func.func @transform_10(%arg0: i32) -> (i32, i32) {
    %c0_i32 = arith.constant 0 : i32
    %c0_i32_0 = arith.constant 0 : i32
    %c0_i32_1 = arith.constant 0 : i32
    return %c0_i32, %c0_i32_0 : i32, i32
  }
  func.func @transform_11(%arg0: i32) -> (i32, i32) {
    %c0_i32 = arith.constant 0 : i32
    %c0_i32_0 = arith.constant 0 : i32
    %c0_i32_1 = arith.constant 0 : i32
    return %c0_i32, %c0_i32_0 : i32, i32
  }
  func.func @transform_12(%arg0: i32) -> (i32, i32) {
    %c0_i32 = arith.constant 0 : i32
    %c0_i32_0 = arith.constant 0 : i32
    %c0_i32_1 = arith.constant 0 : i32
    return %c0_i32, %c0_i32_0 : i32, i32
  }
  func.func @transform_13(%arg0: i32) -> (i32, i32, i32) {
    %c0_i32 = arith.constant 0 : i32
    %c0_i32_0 = arith.constant 0 : i32
    %c0_i32_1 = arith.constant 0 : i32
    return %arg0, %c0_i32, %c0_i32_0 : i32, i32, i32
  }
}

</mosaic_0001>

<llo_original>
// kernel: tpu_custom_call.1
$region0: #{tpu_custom_call.1}
  #allocation0 [shape = 'u32[]', space=smem, size = 0x4, offset = 0x4, fixed_abs, tag = 'smem constant byte address 0x4 - core index']
  #allocation1 [shape = 'u32[144,128]{1,0:T(1,128)}', space=vmem, size = 0x12000, scoped, tag = 'internal scratch']
  %s0 = inlined_call_operand.vmem [shape: f32[1,512,64], index: 0, kind: input, shape index: {}]
  %s1 = inlined_call_operand.vmem [shape: f32[5,128,64], index: 1, kind: input, shape index: {}]
  %s2 = inlined_call_operand.vmem [shape: f32[1,64], index: 2, kind: input, shape index: {}]
  %s3 = inlined_call_operand.vmem [shape: f32[1,64], index: 3, kind: input, shape index: {}]
  %s4 = inlined_call_operand.vmem [shape: f32[5,128,64], index: 4, kind: input, shape index: {}]
  %s5 = inlined_call_operand.vmem [shape: f32[1,64], index: 5, kind: input, shape index: {}]
  %s6 = inlined_call_operand.vmem [shape: f32[1,64], index: 6, kind: input, shape index: {}]
  %s7 = inlined_call_operand.vmem [shape: f32[5,128,64], index: 7, kind: input, shape index: {}]
  %s8 = inlined_call_operand.vmem [shape: f32[1,64], index: 8, kind: input, shape index: {}]
  %s9 = inlined_call_operand.vmem [shape: f32[1,64], index: 9, kind: input, shape index: {}]
  %s10 = inlined_call_operand.vmem [shape: f32[64,128], index: 10, kind: input, shape index: {}]
  %s11 = inlined_call_operand.vmem [shape: f32[1,128], index: 11, kind: input, shape index: {}]
  %s12 = inlined_call_operand.vmem [shape: f32[1,128], index: 12, kind: input, shape index: {}]
  %s13 = inlined_call_operand.hbm [shape: f32[1,8,128], index: 13, kind: output, shape index: {}]
  %s14 = sld [smem:[#allocation0]]
  $region62: #{tpu_custom_call.1} parent=0
    _
  %s16 = ssub.s32 1, %s14
  %s17 = scalar_select 0, %s16, %s14
  $region1: #{tpu_custom_call.1} parent=0
    #allocation2 [shape = 'u8[4096]{0}', space=vmem, size = 0x1000, scoped, tag = 'output window, operand 0, single buffered']
    #allocation3 [shape = 's32[1]{0}', space=sflag, size = 0x4, scoped, tag = 'scoped memory for tpu_custom_call.1']
    %18 = vsyncpa [#allocation3], 0
    // Predicated region
    $region2: #{tpu_custom_call.1} parent=1 // pred_check
      _
    $region3: #{tpu_custom_call.1} parent=1 // pred_check_branch
      %20 = sbr.rel (0) target = $region5
    $region4: #{tpu_custom_call.1} parent=1 // pred_region
      _
    $region5: #{tpu_custom_call.1} parent=1 // pred_fallthru
      _
    // Predicated region
    $region6: #{tpu_custom_call.1} parent=1 // pred_check
      _
    $region7: #{tpu_custom_call.1} parent=1 // pred_check_branch
      %22 = sbr.rel (0) target = $region9
    $region8: #{tpu_custom_call.1} parent=1 // pred_region
      _
    $region9: #{tpu_custom_call.1} parent=1 // pred_fallthru
      _
    // Predicated region
    $region10: #{tpu_custom_call.1} parent=1 // pred_check
      _
    $region11: #{tpu_custom_call.1} parent=1 // pred_check_branch
      %24 = sbr.rel (0) target = $region13
    $region12: #{tpu_custom_call.1} parent=1 // pred_region
      _
    $region13: #{tpu_custom_call.1} parent=1 // pred_fallthru
      _
    // Predicated region
    $region14: #{tpu_custom_call.1} parent=1 // pred_check
      _
    $region15: #{tpu_custom_call.1} parent=1 // pred_check_branch
      %26 = sbr.rel (0) target = $region17
    $region16: #{tpu_custom_call.1} parent=1 // pred_region
      _
    $region17: #{tpu_custom_call.1} parent=1 // pred_fallthru
      _
    // Predicated region
    $region18: #{tpu_custom_call.1} parent=1 // pred_check
      _
    $region19: #{tpu_custom_call.1} parent=1 // pred_check_branch
      %28 = sbr.rel (0) target = $region21
    $region20: #{tpu_custom_call.1} parent=1 // pred_region
      _
    $region21: #{tpu_custom_call.1} parent=1 // pred_fallthru
      _
    // Predicated region
    $region22: #{tpu_custom_call.1} parent=1 // pred_check
      _
    $region23: #{tpu_custom_call.1} parent=1 // pred_check_branch
      %30 = sbr.rel (0) target = $region25
    $region24: #{tpu_custom_call.1} parent=1 // pred_region
      _
    $region25: #{tpu_custom_call.1} parent=1 // pred_fallthru
      _
    // Predicated region
    $region26: #{tpu_custom_call.1} parent=1 // pred_check
      _
    $region27: #{tpu_custom_call.1} parent=1 // pred_check_branch
      %32 = sbr.rel (0) target = $region29
    $region28: #{tpu_custom_call.1} parent=1 // pred_region
      _
    $region29: #{tpu_custom_call.1} parent=1 // pred_fallthru
      _
    // Predicated region
    $region30: #{tpu_custom_call.1} parent=1 // pred_check
      _
    $region31: #{tpu_custom_call.1} parent=1 // pred_check_branch
      %34 = sbr.rel (0) target = $region33
    $region32: #{tpu_custom_call.1} parent=1 // pred_region
      _
    $region33: #{tpu_custom_call.1} parent=1 // pred_fallthru
      _
    // Predicated region
    $region34: #{tpu_custom_call.1} parent=1 // pred_check
      _
    $region35: #{tpu_custom_call.1} parent=1 // pred_check_branch
      %36 = sbr.rel (0) target = $region37
    $region36: #{tpu_custom_call.1} parent=1 // pred_region
      _
    $region37: #{tpu_custom_call.1} parent=1 // pred_fallthru
      _
    // Predicated region
    $region38: #{tpu_custom_call.1} parent=1 // pred_check
      _
    $region39: #{tpu_custom_call.1} parent=1 // pred_check_branch
      %38 = sbr.rel (0) target = $region41
    $region40: #{tpu_custom_call.1} parent=1 // pred_region
      _
    $region41: #{tpu_custom_call.1} parent=1 // pred_fallthru
      _
    // Predicated region
    $region42: #{tpu_custom_call.1} parent=1 // pred_check
      _
    $region43: #{tpu_custom_call.1} parent=1 // pred_check_branch
      %40 = sbr.rel (0) target = $region45
    $region44: #{tpu_custom_call.1} parent=1 // pred_region
      _
    $region45: #{tpu_custom_call.1} parent=1 // pred_fallthru
      _
    // Predicated region
    $region46: #{tpu_custom_call.1} parent=1 // pred_check
      _
    $region47: #{tpu_custom_call.1} parent=1 // pred_check_branch
      %42 = sbr.rel (0) target = $region49
    $region48: #{tpu_custom_call.1} parent=1 // pred_region
      _
    $region49: #{tpu_custom_call.1} parent=1 // pred_fallthru
      _
    // Predicated region
    $region50: #{tpu_custom_call.1} parent=1 // pred_check
      _
    $region51: #{tpu_custom_call.1} parent=1 // pred_check_branch
      %44 = sbr.rel (0) target = $region53
    $region52: #{tpu_custom_call.1} parent=1 // pred_region
      _
    $region53: #{tpu_custom_call.1} parent=1 // pred_fallthru
      _
    %v45 = vld [vmem:[%s0] sm:$0xff]
    %v46 = vld [vmem:[%s0 + $0x8] sm:$0xff]
    %v47 = vld [vmem:[%s0 + $0x10] sm:$0xff]
    %v48 = vld [vmem:[%s0 + $0x18] sm:$0xff]
    %v49 = vld [vmem:[%s0 + $0x20] sm:$0xff]
    %v50 = vld [vmem:[%s0 + $0x28] sm:$0xff]
    %v51 = vld [vmem:[%s0 + $0x30] sm:$0xff]
    %v52 = vld [vmem:[%s0 + $0x38] sm:$0xff]
    %v53 = vld [vmem:[%s0 + $0x40] sm:$0xff]
    %v54 = vld [vmem:[%s0 + $0x48] sm:$0xff]
    %v55 = vld [vmem:[%s0 + $0x50] sm:$0xff]
    %v56 = vld [vmem:[%s0 + $0x58] sm:$0xff]
    %v57 = vld [vmem:[%s0 + $0x60] sm:$0xff]
    %v58 = vld [vmem:[%s0 + $0x68] sm:$0xff]
    %v59 = vld [vmem:[%s0 + $0x70] sm:$0xff]
    %v60 = vld [vmem:[%s0 + $0x78] sm:$0xff]
    %v61 = vld [vmem:[%s0 + $0x80] sm:$0xff]
    %v62 = vld [vmem:[%s0 + $0x88] sm:$0xff]
    %v63 = vld [vmem:[%s0 + $0x90] sm:$0xff]
    %v64 = vld [vmem:[%s0 + $0x98] sm:$0xff]
    %v65 = vld [vmem:[%s0 + $0xa0] sm:$0xff]
    %v66 = vld [vmem:[%s0 + $0xa8] sm:$0xff]
    %v67 = vld [vmem:[%s0 + $0xb0] sm:$0xff]
    %v68 = vld [vmem:[%s0 + $0xb8] sm:$0xff]
    %v69 = vld [vmem:[%s0 + $0xc0] sm:$0xff]
    %v70 = vld [vmem:[%s0 + $0xc8] sm:$0xff]
    %v71 = vld [vmem:[%s0 + $0xd0] sm:$0xff]
    %v72 = vld [vmem:[%s0 + $0xd8] sm:$0xff]
    %v73 = vld [vmem:[%s0 + $0xe0] sm:$0xff]
    %v74 = vld [vmem:[%s0 + $0xe8] sm:$0xff]
    %v75 = vld [vmem:[%s0 + $0xf0] sm:$0xff]
    %v76 = vld [vmem:[%s0 + $0xf8] sm:$0xff]
    %v77 = vld [vmem:[%s0 + $0x100] sm:$0xff]
    %v78 = vld [vmem:[%s0 + $0x108] sm:$0xff]
    %v79 = vld [vmem:[%s0 + $0x110] sm:$0xff]
    %v80 = vld [vmem:[%s0 + $0x118] sm:$0xff]
    %v81 = vld [vmem:[%s0 + $0x120] sm:$0xff]
    %v82 = vld [vmem:[%s0 + $0x128] sm:$0xff]
    %v83 = vld [vmem:[%s0 + $0x130] sm:$0xff]
    %v84 = vld [vmem:[%s0 + $0x138] sm:$0xff]
    %v85 = vld [vmem:[%s0 + $0x140] sm:$0xff]
    %v86 = vld [vmem:[%s0 + $0x148] sm:$0xff]
    %v87 = vld [vmem:[%s0 + $0x150] sm:$0xff]
    %v88 = vld [vmem:[%s0 + $0x158] sm:$0xff]
    %v89 = vld [vmem:[%s0 + $0x160] sm:$0xff]
    %v90 = vld [vmem:[%s0 + $0x168] sm:$0xff]
    %v91 = vld [vmem:[%s0 + $0x170] sm:$0xff]
    %138 = vrot.lane.b32.xlu0 %v46, 64
    %v139 = vpop.permute.xlu0 %138
    %140 = vrot.lane.b32.xlu0 %v47, 64
    %v141 = vpop.permute.xlu0 %140
    %142 = vrot.lane.b32.xlu0 %v48, 64
    %v143 = vpop.permute.xlu0 %142
    %144 = vrot.lane.b32.xlu0 %v49, 64
    %v145 = vpop.permute.xlu0 %144
    %146 = vrot.lane.b32.xlu0 %v50, 64
    %v147 = vpop.permute.xlu0 %146
    %148 = vrot.lane.b32.xlu0 %v51, 64
    %v149 = vpop.permute.xlu0 %148
    %150 = vrot.lane.b32.xlu0 %v52, 64
    %v151 = vpop.permute.xlu0 %150
    %152 = vrot.lane.b32.xlu0 %v53, 64
    %v153 = vpop.permute.xlu0 %152
    %154 = vrot.lane.b32.xlu0 %v54, 64
    %v155 = vpop.permute.xlu0 %154
    %156 = vrot.lane.b32.xlu0 %v55, 64
    %v157 = vpop.permute.xlu0 %156
    %158 = vrot.lane.b32.xlu0 %v56, 64
    %v159 = vpop.permute.xlu0 %158
    %160 = vrot.lane.b32.xlu0 %v57, 64
    %v161 = vpop.permute.xlu0 %160
    %162 = vrot.lane.b32.xlu0 %v58, 64
    %v163 = vpop.permute.xlu0 %162
    %164 = vrot.lane.b32.xlu0 %v59, 64
    %v165 = vpop.permute.xlu0 %164
    %166 = vrot.lane.b32.xlu0 %v60, 64
    %v167 = vpop.permute.xlu0 %166
    %168 = vrot.lane.b32.xlu0 %v61, 64
    %v169 = vpop.permute.xlu0 %168
    %170 = vrot.lane.b32.xlu0 %v62, 64
    %v171 = vpop.permute.xlu0 %170
    %172 = vrot.lane.b32.xlu0 %v63, 64
    %v173 = vpop.permute.xlu0 %172
    %174 = vrot.lane.b32.xlu0 %v64, 64
    %v175 = vpop.permute.xlu0 %174
    %176 = vrot.lane.b32.xlu0 %v65, 64
    %v177 = vpop.permute.xlu0 %176
    %178 = vrot.lane.b32.xlu0 %v66, 64
    %v179 = vpop.permute.xlu0 %178
    %180 = vrot.lane.b32.xlu0 %v67, 64
    %v181 = vpop.permute.xlu0 %180
    %182 = vrot.lane.b32.xlu0 %v68, 64
    %v183 = vpop.permute.xlu0 %182
    %184 = vrot.lane.b32.xlu0 %v69, 64
    %v185 = vpop.permute.xlu0 %184
    %186 = vrot.lane.b32.xlu0 %v70, 64
    %v187 = vpop.permute.xlu0 %186
    %188 = vrot.lane.b32.xlu0 %v71, 64
    %v189 = vpop.permute.xlu0 %188
    %190 = vrot.lane.b32.xlu0 %v72, 64
    %v191 = vpop.permute.xlu0 %190
    %192 = vrot.lane.b32.xlu0 %v73, 64
    %v193 = vpop.permute.xlu0 %192
    %194 = vrot.lane.b32.xlu0 %v74, 64
    %v195 = vpop.permute.xlu0 %194
    %196 = vrot.lane.b32.xlu0 %v75, 64
    %v197 = vpop.permute.xlu0 %196
    %198 = vrot.lane.b32.xlu0 %v76, 64
    %v199 = vpop.permute.xlu0 %198
    %200 = vrot.lane.b32.xlu0 %v77, 64
    %v201 = vpop.permute.xlu0 %200
    %202 = vrot.lane.b32.xlu0 %v78, 64
    %v203 = vpop.permute.xlu0 %202
    %204 = vrot.lane.b32.xlu0 %v79, 64
    %v205 = vpop.permute.xlu0 %204
    %206 = vrot.lane.b32.xlu0 %v80, 64
    %v207 = vpop.permute.xlu0 %206
    %208 = vrot.lane.b32.xlu0 %v81, 64
    %v209 = vpop.permute.xlu0 %208
    %210 = vrot.lane.b32.xlu0 %v82, 64
    %v211 = vpop.permute.xlu0 %210
    %212 = vrot.lane.b32.xlu0 %v83, 64
    %v213 = vpop.permute.xlu0 %212
    %214 = vrot.lane.b32.xlu0 %v84, 64
    %v215 = vpop.permute.xlu0 %214
    %216 = vrot.lane.b32.xlu0 %v85, 64
    %v217 = vpop.permute.xlu0 %216
    %218 = vrot.lane.b32.xlu0 %v86, 64
    %v219 = vpop.permute.xlu0 %218
    %220 = vrot.lane.b32.xlu0 %v87, 64
    %v221 = vpop.permute.xlu0 %220
    %222 = vrot.lane.b32.xlu0 %v88, 64
    %v223 = vpop.permute.xlu0 %222
    %224 = vrot.lane.b32.xlu0 %v89, 64
    %v225 = vpop.permute.xlu0 %224
    %226 = vrot.lane.b32.xlu0 %v90, 64
    %v227 = vpop.permute.xlu0 %226
    %228 = vrot.lane.b32.xlu0 %v91, 64
    %v229 = vpop.permute.xlu0 %228
    %vm276 = vcmask 523264
    %v277 = vsel %vm276, %v45, %v139
    %v278 = vsel %vm276, %v46, %v141
    %v279 = vsel %vm276, %v47, %v143
    %v280 = vsel %vm276, %v48, %v145
    %v281 = vsel %vm276, %v49, %v147
    %v282 = vsel %vm276, %v50, %v149
    %v283 = vsel %vm276, %v51, %v151
    %v284 = vsel %vm276, %v52, %v153
    %v285 = vsel %vm276, %v53, %v155
    %v286 = vsel %vm276, %v54, %v157
    %v287 = vsel %vm276, %v55, %v159
    %v288 = vsel %vm276, %v56, %v161
    %v289 = vsel %vm276, %v57, %v163
    %v290 = vsel %vm276, %v58, %v165
    %v291 = vsel %vm276, %v59, %v167
    %v292 = vsel %vm276, %v60, %v169
    %v293 = vsel %vm276, %v61, %v171
    %v294 = vsel %vm276, %v62, %v173
    %v295 = vsel %vm276, %v63, %v175
    %v296 = vsel %vm276, %v64, %v177
    %v297 = vsel %vm276, %v65, %v179
    %v298 = vsel %vm276, %v66, %v181
    %v299 = vsel %vm276, %v67, %v183
    %v300 = vsel %vm276, %v68, %v185
    %v301 = vsel %vm276, %v69, %v187
    %v302 = vsel %vm276, %v70, %v189
    %v303 = vsel %vm276, %v71, %v191
    %v304 = vsel %vm276, %v72, %v193
    %v305 = vsel %vm276, %v73, %v195
    %v306 = vsel %vm276, %v74, %v197
    %v307 = vsel %vm276, %v75, %v199
    %v308 = vsel %vm276, %v76, %v201
    %v309 = vsel %vm276, %v77, %v203
    %v310 = vsel %vm276, %v78, %v205
    %v311 = vsel %vm276, %v79, %v207
    %v312 = vsel %vm276, %v80, %v209
    %v313 = vsel %vm276, %v81, %v211
    %v314 = vsel %vm276, %v82, %v213
    %v315 = vsel %vm276, %v83, %v215
    %v316 = vsel %vm276, %v84, %v217
    %v317 = vsel %vm276, %v85, %v219
    %v318 = vsel %vm276, %v86, %v221
    %v319 = vsel %vm276, %v87, %v223
    %v320 = vsel %vm276, %v88, %v225
    %v321 = vsel %vm276, %v89, %v227
    %v322 = vsel %vm276, %v90, %v229
    %v323 = vld [vmem:[%s1] sm:$0xff]
    %v324 = vld [vmem:[%s1 + $0x8] sm:$0xff]
    %v325 = vld [vmem:[%s1 + $0x10] sm:$0xff]
    %v326 = vld [vmem:[%s1 + $0x18] sm:$0xff]
    %v327 = vld [vmem:[%s1 + $0x20] sm:$0xff]
    %v328 = vld [vmem:[%s1 + $0x28] sm:$0xff]
    %v329 = vld [vmem:[%s1 + $0x30] sm:$0xff]
    %v330 = vld [vmem:[%s1 + $0x38] sm:$0xff]
    %v331 = vld [vmem:[%s1 + $0x40] sm:$0xff]
    %v332 = vld [vmem:[%s1 + $0x48] sm:$0xff]
    %v333 = vld [vmem:[%s1 + $0x50] sm:$0xff]
    %v334 = vld [vmem:[%s1 + $0x58] sm:$0xff]
    %v335 = vld [vmem:[%s1 + $0x60] sm:$0xff]
    %v336 = vld [vmem:[%s1 + $0x68] sm:$0xff]
    %v337 = vld [vmem:[%s1 + $0x70] sm:$0xff]
    %v338 = vld [vmem:[%s1 + $0x78] sm:$0xff]
    %v339 = vld [vmem:[%s0 + $0x178] sm:$0xff]
    %v340 = vld [vmem:[%s0 + $0x180] sm:$0xff]
    %v341 = vld [vmem:[%s0 + $0x188] sm:$0xff]
    %v342 = vld [vmem:[%s0 + $0x190] sm:$0xff]
    %v343 = vld [vmem:[%s0 + $0x198] sm:$0xff]
    %v344 = vld [vmem:[%s0 + $0x1a0] sm:$0xff]
    %v345 = vld [vmem:[%s0 + $0x1a8] sm:$0xff]
    %353 = vrot.lane.b32.xlu0 %v339, 64
    %v354 = vpop.permute.xlu0 %353
    %355 = vrot.lane.b32.xlu0 %v340, 64
    %v356 = vpop.permute.xlu0 %355
    %357 = vrot.lane.b32.xlu0 %v341, 64
    %v358 = vpop.permute.xlu0 %357
    %359 = vrot.lane.b32.xlu0 %v342, 64
    %v360 = vpop.permute.xlu0 %359
    %361 = vrot.lane.b32.xlu0 %v343, 64
    %v362 = vpop.permute.xlu0 %361
    %363 = vrot.lane.b32.xlu0 %v344, 64
    %v364 = vpop.permute.xlu0 %363
    %365 = vrot.lane.b32.xlu0 %v345, 64
    %v366 = vpop.permute.xlu0 %365
    %v374 = vsel %vm276, %v47, %v153
    %v375 = vsel %vm276, %v48, %v155
    %v376 = vsel %vm276, %v49, %v157
    %v377 = vsel %vm276, %v50, %v159
    %v378 = vsel %vm276, %v51, %v161
    %v379 = vsel %vm276, %v52, %v163
    %v380 = vsel %vm276, %v53, %v165
    %v381 = vsel %vm276, %v54, %v167
    %v382 = vsel %vm276, %v55, %v169
    %v383 = vsel %vm276, %v56, %v171
    %v384 = vsel %vm276, %v57, %v173
    %v385 = vsel %vm276, %v58, %v175
    %v386 = vsel %vm276, %v59, %v177
    %v387 = vsel %vm276, %v60, %v179
    %v388 = vsel %vm276, %v61, %v181
    %v389 = vsel %vm276, %v62, %v183
    %v390 = vsel %vm276, %v63, %v185
    %v391 = vsel %vm276, %v64, %v187
    %v392 = vsel %vm276, %v65, %v189
    %v393 = vsel %vm276, %v66, %v191
    %v394 = vsel %vm276, %v67, %v193
    %v395 = vsel %vm276, %v68, %v195
    %v396 = vsel %vm276, %v69, %v197
    %v397 = vsel %vm276, %v70, %v199
    %v398 = vsel %vm276, %v71, %v201
    %v399 = vsel %vm276, %v72, %v203
    %v400 = vsel %vm276, %v73, %v205
    %v401 = vsel %vm276, %v74, %v207
    %v402 = vsel %vm276, %v75, %v209
    %v403 = vsel %vm276, %v76, %v211
    %v404 = vsel %vm276, %v77, %v213
    %v405 = vsel %vm276, %v78, %v215
    %v406 = vsel %vm276, %v79, %v217
    %v407 = vsel %vm276, %v80, %v219
    %v408 = vsel %vm276, %v81, %v221
    %v409 = vsel %vm276, %v82, %v223
    %v410 = vsel %vm276, %v83, %v225
    %v411 = vsel %vm276, %v84, %v227
    %v412 = vsel %vm276, %v85, %v229
    %v413 = vsel %vm276, %v86, %v354
    %v414 = vsel %vm276, %v87, %v356
    %v415 = vsel %vm276, %v88, %v358
    %v416 = vsel %vm276, %v89, %v360
    %v417 = vsel %vm276, %v90, %v362
    %v418 = vsel %vm276, %v91, %v364
    %v419 = vsel %vm276, %v339, %v366
    %s420 = scalar_lea.vmem %s1, 128
    %v421 = vld [vmem:[%s420] sm:$0xff]
    %v422 = vld [vmem:[%s420 + $0x8] sm:$0xff]
    %v423 = vld [vmem:[%s420 + $0x10] sm:$0xff]
    %v424 = vld [vmem:[%s420 + $0x18] sm:$0xff]
    %v425 = vld [vmem:[%s420 + $0x20] sm:$0xff]
    %v426 = vld [vmem:[%s420 + $0x28] sm:$0xff]
    %v427 = vld [vmem:[%s420 + $0x30] sm:$0xff]
    %v428 = vld [vmem:[%s420 + $0x38] sm:$0xff]
    %v429 = vld [vmem:[%s420 + $0x40] sm:$0xff]
    %v430 = vld [vmem:[%s420 + $0x48] sm:$0xff]
    %v431 = vld [vmem:[%s420 + $0x50] sm:$0xff]
    %v432 = vld [vmem:[%s420 + $0x58] sm:$0xff]
    %v433 = vld [vmem:[%s420 + $0x60] sm:$0xff]
    %v434 = vld [vmem:[%s420 + $0x68] sm:$0xff]
    %v435 = vld [vmem:[%s420 + $0x70] sm:$0xff]
    %v436 = vld [vmem:[%s420 + $0x78] sm:$0xff]
    %437 = vmatprep.subr.mxu0 0.0
    %438 = vmatpush1.msra.mxu0 %v421
    %439 = vmatprep.subr.mxu0 0.0
    %440 = vmatpush1.msra.mxu0 %v422
    %441 = vmatprep.subr.mxu0 0.0
    %442 = vmatpush1.msra.mxu0 %v423
    %443 = vmatprep.subr.mxu0 0.0
    %444 = vmatpush1.msra.mxu0 %v424
    %445 = vmatprep.subr.mxu0 0.0
    %446 = vmatpush1.msra.mxu0 %v425
    %447 = vmatprep.subr.mxu0 0.0
    %448 = vmatpush1.msra.mxu0 %v426
    %449 = vmatprep.subr.mxu0 0.0
    %450 = vmatpush1.msra.mxu0 %v427
    %451 = vmatprep.subr.mxu0 0.0
    %452 = vmatpush1.msra.mxu0 %v428
    %453 = vmatprep.subr.mxu0 0.0
    %454 = vmatpush1.msra.mxu0 %v429
    %455 = vmatprep.subr.mxu0 0.0
    %456 = vmatpush1.msra.mxu0 %v430
    %457 = vmatprep.subr.mxu0 0.0
    %458 = vmatpush1.msra.mxu0 %v431
    %459 = vmatprep.subr.mxu0 0.0
    %460 = vmatpush1.msra.mxu0 %v432
    %461 = vmatprep.subr.mxu0 0.0
    %462 = vmatpush1.msra.mxu0 %v433
    %463 = vmatprep.subr.mxu0 0.0
    %464 = vmatpush1.msra.mxu0 %v434
    %465 = vmatprep.subr.mxu0 0.0
    %466 = vmatpush1.msra.mxu0 %v435
    %467 = vmatprep.subr.mxu0 0.0
    %468 = vmatpush1.msra.mxu0 %v436
    %469 = vmatprep.subr.mxu0 0.0
    %470 = vmatpush1.msra.mxu0 0.0
    %471 = vmatprep.subr.mxu0 0.0
    %472 = vmatpush1.msra.mxu0 0.0
    %473 = vmatprep.subr.mxu0 0.0
    %474 = vmatpush1.msra.mxu0 0.0
    %475 = vmatprep.subr.mxu0 0.0
    %476 = vmatpush1.msra.mxu0 0.0
    %477 = vmatprep.subr.mxu0 0.0
    %478 = vmatpush1.msra.mxu0 0.0
    %479 = vmatprep.subr.mxu0 0.0
    %480 = vmatpush1.msra.mxu0 0.0
    %481 = vmatprep.subr.mxu0 0.0
    %482 = vmatpush1.msra.mxu0 0.0
    %483 = vmatprep.subr.mxu0 0.0
    %484 = vmatpush1.msra.mxu0 0.0
    %485 = vmatprep.subr.mxu0 0.0
    %486 = vmatpush1.msra.mxu0 0.0
    %487 = vmatprep.subr.mxu0 0.0
    %488 = vmatpush1.msra.mxu0 0.0
    %489 = vmatprep.subr.mxu0 0.0
    %490 = vmatpush1.msra.mxu0 0.0
    %491 = vmatprep.subr.mxu0 0.0
    %492 = vmatpush1.msra.mxu0 0.0
    %493 = vmatprep.subr.mxu0 0.0
    %494 = vmatpush1.msra.mxu0 0.0
    %495 = vmatprep.subr.mxu0 0.0
    %496 = vmatpush1.msra.mxu0 0.0
    %497 = vmatprep.subr.mxu0 0.0
    %498 = vmatpush1.msra.mxu0 0.0
    %499 = vmatprep.subr.mxu0 0.0
    %500 = vmatpush1.msra.mxu0 0.0
    %501 = vmatprep.mubr.f32.mxu0 0.0
    %502 = vmatmul.mubr.f32.gmra.mrb[0].mxu0 %v374
    %v503 = vpop.f32.mrb[0].mxu0
    %v504 = vadd.f32 0.0, %v503
    %v505 = vpop.f32.mrb[0].mxu0
    %506 = vmatprep.mubr.f32.mxu0 0.0
    %507 = vmatmul.mubr.f32.gmra.mrb[0].mxu0 %v375
    %v508 = vpop.f32.mrb[0].mxu0
    %v509 = vadd.f32 0.0, %v508
    %v510 = vpop.f32.mrb[0].mxu0
    %511 = vmatprep.mubr.f32.mxu0 0.0
    %512 = vmatmul.mubr.f32.gmra.mrb[0].mxu0 %v376
    %v513 = vpop.f32.mrb[0].mxu0
    %v514 = vadd.f32 0.0, %v513
    %v515 = vpop.f32.mrb[0].mxu0
    %516 = vmatprep.mubr.f32.mxu0 0.0
    %517 = vmatmul.mubr.f32.gmra.mrb[0].mxu0 %v377
    %v518 = vpop.f32.mrb[0].mxu0
    %v519 = vadd.f32 0.0, %v518
    %v520 = vpop.f32.mrb[0].mxu0
    %521 = vmatprep.mubr.f32.mxu0 0.0
    %522 = vmatmul.mubr.f32.gmra.mrb[0].mxu0 %v378
    %v523 = vpop.f32.mrb[0].mxu0
    %v524 = vadd.f32 0.0, %v523
    %v525 = vpop.f32.mrb[0].mxu0
    %526 = vmatprep.mubr.f32.mxu0 0.0
    %527 = vmatmul.mubr.f32.gmra.mrb[0].mxu0 %v379
    %v528 = vpop.f32.mrb[0].mxu0
    %v529 = vadd.f32 0.0, %v528
    %v530 = vpop.f32.mrb[0].mxu0
    %531 = vmatprep.mubr.f32.mxu0 0.0
    %532 = vmatmul.mubr.f32.gmra.mrb[0].mxu0 %v380
    %v533 = vpop.f32.mrb[0].mxu0
    %v534 = vadd.f32 0.0, %v533
    %v535 = vpop.f32.mrb[0].mxu0
    %536 = vmatprep.mubr.f32.mxu0 0.0
    %537 = vmatmul.mubr.f32.gmra.mrb[0].mxu0 %v381
    %v538 = vpop.f32.mrb[0].mxu0
    %v539 = vadd.f32 0.0, %v538
    %v540 = vpop.f32.mrb[0].mxu0
    %541 = vmatprep.mubr.f32.mxu0 0.0
    %542 = vmatmul.mubr.f32.gmra.mrb[0].mxu0 %v382
    %v543 = vpop.f32.mrb[0].mxu0
    %v544 = vadd.f32 0.0, %v543
    %v545 = vpop.f32.mrb[0].mxu0
    %546 = vmatprep.mubr.f32.mxu0 0.0
    %547 = vmatmul.mubr.f32.gmra.mrb[0].mxu0 %v383
    %v548 = vpop.f32.mrb[0].mxu0
    %v549 = vadd.f32 0.0, %v548
    %v550 = vpop.f32.mrb[0].mxu0
    %551 = vmatprep.mubr.f32.mxu0 0.0
    %552 = vmatmul.mubr.f32.gmra.mrb[0].mxu0 %v384
    %v553 = vpop.f32.mrb[0].mxu0
    %v554 = vadd.f32 0.0, %v553
    %v555 = vpop.f32.mrb[0].mxu0
    %556 = vmatprep.mubr.f32.mxu0 0.0
    %557 = vmatmul.mubr.f32.gmra.mrb[0].mxu0 %v385
    %v558 = vpop.f32.mrb[0].mxu0
    %v559 = vadd.f32 0.0, %v558
    %v560 = vpop.f32.mrb[0].mxu0
    %561 = vmatprep.mubr.f32.mxu0 0.0
    %562 = vmatmul.mubr.f32.gmra.mrb[0].mxu0 %v386
    %v563 = vpop.f32.mrb[0].mxu0
    %v564 = vadd.f32 0.0, %v563
    %v565 = vpop.f32.mrb[0].mxu0
    %566 = vmatprep.mubr.f32.mxu0 0.0
    %567 = vmatmul.mubr.f32.gmra.mrb[0].mxu0 %v387
    %v568 = vpop.f32.mrb[0].mxu0
    %v569 = vadd.f32 0.0, %v568
    %v570 = vpop.f32.mrb[0].mxu0
    %571 = vmatprep.mubr.f32.mxu0 0.0
    %572 = vmatmul.mubr.f32.gmra.mrb[0].mxu0 %v388
    %v573 = vpop.f32.mrb[0].mxu0
    %v574 = vadd.f32 0.0, %v573
    %v575 = vpop.f32.mrb[0].mxu0
    %576 = vmatprep.mubr.f32.mxu0 0.0
    %577 = vmatmul.mubr.f32.gmra.mrb[0].mxu0 %v389
    %v578 = vpop.f32.mrb[0].mxu0
    %v579 = vadd.f32 0.0, %v578
    %v580 = vpop.f32.mrb[0].mxu0
    %581 = vmatprep.mubr.f32.mxu0 0.0
    %582 = vmatmul.mubr.f32.gmra.mrb[0].mxu0 %v390
    %v583 = vpop.f32.mrb[0].mxu0
    %v584 = vadd.f32 0.0, %v583
    %v585 = vpop.f32.mrb[0].mxu0
    %586 = vmatprep.mubr.f32.mxu0 0.0
    %587 = vmatmul.mubr.f32.gmra.mrb[0].mxu0 %v391
    %v588 = vpop.f32.mrb[0].mxu0
    %v589 = vadd.f32 0.0, %v588
    %v590 = vpop.f32.mrb[0].mxu0
    %591 = vmatprep.mubr.f32.mxu0 0.0
    %592 = vmatmul.mubr.f32.gmra.mrb[0].mxu0 %v392
    %v593 = vpop.f32.mrb[0].mxu0
    %v594 = vadd.f32 0.0, %v593
    %v595 = vpop.f32.mrb[0].mxu0
    %596 = vmatprep.mubr.f32.mxu0 0.0
    %597 = vmatmul.mubr.f32.gmra.mrb[0].mxu0 %v393
    %v598 = vpop.f32.mrb[0].mxu0
    %v599 = vadd.f32 0.0, %v598
    %v600 = vpop.f32.mrb[0].mxu0
    %601 = vmatprep.mubr.f32.mxu0 0.0
    %602 = vmatmul.mubr.f32.gmra.mrb[0].mxu0 %v394
    %v603 = vpop.f32.mrb[0].mxu0
    %v604 = vadd.f32 0.0, %v603
    %v605 = vpop.f32.mrb[0].mxu0
    %606 = vmatprep.mubr.f32.mxu0 0.0
    %607 = vmatmul.mubr.f32.gmra.mrb[0].mxu0 %v395
    %v608 = vpop.f32.mrb[0].mxu0
    %v609 = vadd.f32 0.0, %v608
    %v610 = vpop.f32.mrb[0].mxu0
    %611 = vmatprep.mubr.f32.mxu0 0.0
    %612 = vmatmul.mubr.f32.gmra.mrb[0].mxu0 %v396
    %v613 = vpop.f32.mrb[0].mxu0
    %v614 = vadd.f32 0.0, %v613
    %v615 = vpop.f32.mrb[0].mxu0
    %616 = vmatprep.mubr.f32.mxu0 0.0
    %617 = vmatmul.mubr.f32.gmra.mrb[0].mxu0 %v397
    %v618 = vpop.f32.mrb[0].mxu0
    %v619 = vadd.f32 0.0, %v618
    %v620 = vpop.f32.mrb[0].mxu0
    %621 = vmatprep.mubr.f32.mxu0 0.0
    %622 = vmatmul.mubr.f32.gmra.mrb[0].mxu0 %v398
    %v623 = vpop.f32.mrb[0].mxu0
    %v624 = vadd.f32 0.0, %v623
    %v625 = vpop.f32.mrb[0].mxu0
    %626 = vmatprep.mubr.f32.mxu0 0.0
    %627 = vmatmul.mubr.f32.gmra.mrb[0].mxu0 %v399
    %v628 = vpop.f32.mrb[0].mxu0
    %v629 = vadd.f32 0.0, %v628
    %v630 = vpop.f32.mrb[0].mxu0
    %631 = vmatprep.mubr.f32.mxu0 0.0
    %632 = vmatmul.mubr.f32.gmra.mrb[0].mxu0 %v400
    %v633 = vpop.f32.mrb[0].mxu0
    %v634 = vadd.f32 0.0, %v633
    %v635 = vpop.f32.mrb[0].mxu0
    %636 = vmatprep.mubr.f32.mxu0 0.0
    %637 = vmatmul.mubr.f32.gmra.mrb[0].mxu0 %v401
    %v638 = vpop.f32.mrb[0].mxu0
    %v639 = vadd.f32 0.0, %v638
    %v640 = vpop.f32.mrb[0].mxu0
    %641 = vmatprep.mubr.f32.mxu0 0.0
    %642 = vmatmul.mubr.f32.gmra.mrb[0].mxu0 %v402
    %v643 = vpop.f32.mrb[0].mxu0
    %v644 = vadd.f32 0.0, %v643
    %v645 = vpop.f32.mrb[0].mxu0
    %646 = vmatprep.mubr.f32.mxu0 0.0
    %647 = vmatmul.mubr.f32.gmra.mrb[0].mxu0 %v403
    %v648 = vpop.f32.mrb[0].mxu0
    %v649 = vadd.f32 0.0, %v648
    %v650 = vpop.f32.mrb[0].mxu0
    %651 = vmatprep.mubr.f32.mxu0 0.0
    %652 = vmatmul.mubr.f32.gmra.mrb[0].mxu0 %v404
    %v653 = vpop.f32.mrb[0].mxu0
    %v654 = vadd.f32 0.0, %v653
    %v655 = vpop.f32.mrb[0].mxu0
    %656 = vmatprep.mubr.f32.mxu0 0.0
    %657 = vmatmul.mubr.f32.gmra.mrb[0].mxu0 %v405
    %v658 = vpop.f32.mrb[0].mxu0
    %v659 = vadd.f32 0.0, %v658
    %v660 = vpop.f32.mrb[0].mxu0
    %661 = vmatprep.mubr.f32.mxu0 0.0
    %662 = vmatmul.mubr.f32.gmra.mrb[0].mxu0 %v406
    %v663 = vpop.f32.mrb[0].mxu0
    %v664 = vadd.f32 0.0, %v663
    %v665 = vpop.f32.mrb[0].mxu0
    %666 = vmatprep.mubr.f32.mxu0 0.0
    %667 = vmatmul.mubr.f32.gmra.mrb[0].mxu0 %v407
    %v668 = vpop.f32.mrb[0].mxu0
    %v669 = vadd.f32 0.0, %v668
    %v670 = vpop.f32.mrb[0].mxu0
    %671 = vmatprep.mubr.f32.mxu0 0.0
    %672 = vmatmul.mubr.f32.gmra.mrb[0].mxu0 %v408
    %v673 = vpop.f32.mrb[0].mxu0
    %v674 = vadd.f32 0.0, %v673
    %v675 = vpop.f32.mrb[0].mxu0
    %676 = vmatprep.mubr.f32.mxu0 0.0
    %677 = vmatmul.mubr.f32.gmra.mrb[0].mxu0 %v409
    %v678 = vpop.f32.mrb[0].mxu0
    %v679 = vadd.f32 0.0, %v678
    %v680 = vpop.f32.mrb[0].mxu0
    %681 = vmatprep.mubr.f32.mxu0 0.0
    %682 = vmatmul.mubr.f32.gmra.mrb[0].mxu0 %v410
    %v683 = vpop.f32.mrb[0].mxu0
    %v684 = vadd.f32 0.0, %v683
    %v685 = vpop.f32.mrb[0].mxu0
    %686 = vmatprep.mubr.f32.mxu0 0.0
    %687 = vmatmul.mubr.f32.gmra.mrb[0].mxu0 %v411
    %v688 = vpop.f32.mrb[0].mxu0
    %v689 = vadd.f32 0.0, %v688
    %v690 = vpop.f32.mrb[0].mxu0
    %691 = vmatprep.mubr.f32.mxu0 0.0
    %692 = vmatmul.mubr.f32.gmra.mrb[0].mxu0 %v412
    %v693 = vpop.f32.mrb[0].mxu0
    %v694 = vadd.f32 0.0, %v693
    %v695 = vpop.f32.mrb[0].mxu0
    %696 = vmatprep.mubr.f32.mxu0 0.0
    %697 = vmatmul.mubr.f32.gmra.mrb[0].mxu0 %v413
    %v698 = vpop.f32.mrb[0].mxu0
    %v699 = vadd.f32 0.0, %v698
    %v700 = vpop.f32.mrb[0].mxu0
    %701 = vmatprep.mubr.f32.mxu0 0.0
    %702 = vmatmul.mubr.f32.gmra.mrb[0].mxu0 %v414
    %v703 = vpop.f32.mrb[0].mxu0
    %v704 = vadd.f32 0.0, %v703
    %v705 = vpop.f32.mrb[0].mxu0
    %706 = vmatprep.mubr.f32.mxu0 0.0
    %707 = vmatmul.mubr.f32.gmra.mrb[0].mxu0 %v415
    %v708 = vpop.f32.mrb[0].mxu0
    %v709 = vadd.f32 0.0, %v708
    %v710 = vpop.f32.mrb[0].mxu0
    %711 = vmatprep.mubr.f32.mxu0 0.0
    %712 = vmatmul.mubr.f32.gmra.mrb[0].mxu0 %v416
    %v713 = vpop.f32.mrb[0].mxu0
    %v714 = vadd.f32 0.0, %v713
    %v715 = vpop.f32.mrb[0].mxu0
    %716 = vmatprep.mubr.f32.mxu0 0.0
    %717 = vmatmul.mubr.f32.gmra.mrb[0].mxu0 %v417
    %v718 = vpop.f32.mrb[0].mxu0
    %v719 = vadd.f32 0.0, %v718
    %v720 = vpop.f32.mrb[0].mxu0
    %721 = vmatprep.mubr.f32.mxu0 0.0
    %722 = vmatmul.mubr.f32.gmra.mrb[0].mxu0 %v418
    %v723 = vpop.f32.mrb[0].mxu0
    %v724 = vadd.f32 0.0, %v723
    %v725 = vpop.f32.mrb[0].mxu0
    %726 = vmatprep.mubr.f32.mxu0 0.0
    %727 = vmatmul.mubr.f32.gmra.mrb[0].mxu0 %v419
    %v728 = vpop.f32.mrb[0].mxu0
    %v729 = vadd.f32 0.0, %v728
    %v730 = vpop.f32.mrb[0].mxu0
    %731 = vdwg.mxu0
    %732 = vmatprep.subr.mxu0 0.0
    %733 = vmatpush1.msra.mxu0 %v323
    %734 = vmatprep.subr.mxu0 0.0
    %735 = vmatpush1.msra.mxu0 %v324
    %736 = vmatprep.subr.mxu0 0.0
    %737 = vmatpush1.msra.mxu0 %v325
    %738 = vmatprep.subr.mxu0 0.0
    %739 = vmatpush1.msra.mxu0 %v326
    %740 = vmatprep.subr.mxu0 0.0
    %741 = vmatpush1.msra.mxu0 %v327
    %742 = vmatprep.subr.mxu0 0.0
    %743 = vmatpush1.msra.mxu0 %v328
    %744 = vmatprep.subr.mxu0 0.0
    %745 = vmatpush1.msra.mxu0 %v329
    %746 = vmatprep.subr.mxu0 0.0
    %747 = vmatpush1.msra.mxu0 %v330
    %748 = vmatprep.subr.mxu0 0.0
    %749 = vmatpush1.msra.mxu0 %v331
    %750 = vmatprep.subr.mxu0 0.0
    %751 = vmatpush1.msra.mxu0 %v332
    %752 = vmatprep.subr.mxu0 0.0
    %753 = vmatpush1.msra.mxu0 %v333
    %754 = vmatprep.subr.mxu0 0.0
    %755 = vmatpush1.msra.mxu0 %v334
    %756 = vmatprep.subr.mxu0 0.0
    %757 = vmatpush1.msra.mxu0 %v335
    %758 = vmatprep.subr.mxu0 0.0
    %759 = vmatpush1.msra.mxu0 %v336
    %760 = vmatprep.subr.mxu0 0.0
    %761 = vmatpush1.msra.mxu0 %v337
    %762 = vmatprep.subr.mxu0 0.0
    %763 = vmatpush1.msra.mxu0 %v338
    %764 = vmatprep.subr.mxu0 0.0
    %765 = vmatpush1.msra.mxu0 0.0
    %766 = vmatprep.subr.mxu0 0.0
    %767 = vmatpush1.msra.mxu0 0.0
    %768 = vmatprep.subr.mxu0 0.0
    %769 = vmatpush1.msra.mxu0 0.0
    %770 = vmatprep.subr.mxu0 0.0
    %771 = vmatpush1.msra.mxu0 0.0
    %772 = vmatprep.subr.mxu0 0.0
    %773 = vmatpush1.msra.mxu0 0.0
    %774 = vmatprep.subr.mxu0 0.0
    %775 = vmatpush1.msra.mxu0 0.0
    %776 = vmatprep.subr.mxu0 0.0
    %777 = vmatpush1.msra.mxu0 0.0
    %778 = vmatprep.subr.mxu0 0.0
    %779 = vmatpush1.msra.mxu0 0.0
    %780 = vmatprep.subr.mxu0 0.0
    %781 = vmatpush1.msra.mxu0 0.0
    %782 = vmatprep.subr.mxu0 0.0
    %783 = vmatpush1.msra.mxu0 0.0
    %784 = vmatprep.subr.mxu0 0.0
    %785 = vmatpush1.msra.mxu0 0.0
    %786 = vmatprep.subr.mxu0 0.0
    %787 = vmatpush1.msra.mxu0 0.0
    %788 = vmatprep.subr.mxu0 0.0
    %789 = vmatpush1.msra.mxu0 0.0
    %790 = vmatprep.subr.mxu0 0.0
    %791 = vmatpush1.msra.mxu0 0.0
    %792 = vmatprep.subr.mxu0 0.0
    %793 = vmatpush1.msra.mxu0 0.0
    %794 = vmatprep.subr.mxu0 0.0
    %795 = vmatpush1.msra.mxu0 0.0
    %796 = vmatprep.mubr.f32.mxu0 0.0
    %797 = vmatmul.mubr.f32.gmra.mrb[0].mxu0 %v277
    %v798 = vpop.f32.mrb[0].mxu0
    %v799 = vadd.f32 %v504, %v798
    %v800 = vpop.f32.mrb[0].mxu0
    %801 = vmatprep.mubr.f32.mxu0 0.0
    %802 = vmatmul.mubr.f32.gmra.mrb[0].mxu0 %v278
    %v803 = vpop.f32.mrb[0].mxu0
    %v804 = vadd.f32 %v509, %v803
    %v805 = vpop.f32.mrb[0].mxu0
    %806 = vmatprep.mubr.f32.mxu0 0.0
    %807 = vmatmul.mubr.f32.gmra.mrb[0].mxu0 %v279
    %v808 = vpop.f32.mrb[0].mxu0
    %v809 = vadd.f32 %v514, %v808
    %v810 = vpop.f32.mrb[0].mxu0
    %811 = vmatprep.mubr.f32.mxu0 0.0
    %812 = vmatmul.mubr.f32.gmra.mrb[0].mxu0 %v280
    %v813 = vpop.f32.mrb[0].mxu0
    %v814 = vadd.f32 %v519, %v813
    %v815 = vpop.f32.mrb[0].mxu0
    %816 = vmatprep.mubr.f32.mxu0 0.0
    %817 = vmatmul.mubr.f32.gmra.mrb[0].mxu0 %v281
    %v818 = vpop.f32.mrb[0].mxu0
    %v819 = vadd.f32 %v524, %v818
    %v820 = vpop.f32.mrb[0].mxu0
    %821 = vmatprep.mubr.f32.mxu0 0.0
    %822 = vmatmul.mubr.f32.gmra.mrb[0].mxu0 %v282
    %v823 = vpop.f32.mrb[0].mxu0
    %v824 = vadd.f32 %v529, %v823
    %v825 = vpop.f32.mrb[0].mxu0
    %826 = vmatprep.mubr.f32.mxu0 0.0
    %827 = vmatmul.mubr.f32.gmra.mrb[0].mxu0 %v283
    %v828 = vpop.f32.mrb[0].mxu0
    %v829 = vadd.f32 %v534, %v828
    %v830 = vpop.f32.mrb[0].mxu0
    %831 = vmatprep.mubr.f32.mxu0 0.0
    %832 = vmatmul.mubr.f32.gmra.mrb[0].mxu0 %v284
    %v833 = vpop.f32.mrb[0].mxu0
    %v834 = vadd.f32 %v539, %v833
    %v835 = vpop.f32.mrb[0].mxu0
    %836 = vmatprep.mubr.f32.mxu0 0.0
    %837 = vmatmul.mubr.f32.gmra.mrb[0].mxu0 %v285
    %v838 = vpop.f32.mrb[0].mxu0
    %v839 = vadd.f32 %v544, %v838
    %v840 = vpop.f32.mrb[0].mxu0
    %841 = vmatprep.mubr.f32.mxu0 0.0
    %842 = vmatmul.mubr.f32.gmra.mrb[0].mxu0 %v286
    %v843 = vpop.f32.mrb[0].mxu0
    %v844 = vadd.f32 %v549, %v843
    %v845 = vpop.f32.mrb[0].mxu0
    %846 = vmatprep.mubr.f32.mxu0 0.0
    %847 = vmatmul.mubr.f32.gmra.mrb[0].mxu0 %v287
    %v848 = vpop.f32.mrb[0].mxu0
    %v849 = vadd.f32 %v554, %v848
    %v850 = vpop.f32.mrb[0].mxu0
    %851 = vmatprep.mubr.f32.mxu0 0.0
    %852 = vmatmul.mubr.f32.gmra.mrb[0].mxu0 %v288
    %v853 = vpop.f32.mrb[0].mxu0
    %v854 = vadd.f32 %v559, %v853
    %v855 = vpop.f32.mrb[0].mxu0
    %856 = vmatprep.mubr.f32.mxu0 0.0
    %857 = vmatmul.mubr.f32.gmra.mrb[0].mxu0 %v289
    %v858 = vpop.f32.mrb[0].mxu0
    %v859 = vadd.f32 %v564, %v858
    %v860 = vpop.f32.mrb[0].mxu0
    %861 = vmatprep.mubr.f32.mxu0 0.0
    %862 = vmatmul.mubr.f32.gmra.mrb[0].mxu0 %v290
    %v863 = vpop.f32.mrb[0].mxu0
    %v864 = vadd.f32 %v569, %v863
    %v865 = vpop.f32.mrb[0].mxu0
    %866 = vmatprep.mubr.f32.mxu0 0.0
    %867 = vmatmul.mubr.f32.gmra.mrb[0].mxu0 %v291
    %v868 = vpop.f32.mrb[0].mxu0
    %v869 = vadd.f32 %v574, %v868
    %v870 = vpop.f32.mrb[0].mxu0
    %871 = vmatprep.mubr.f32.mxu0 0.0
    %872 = vmatmul.mubr.f32.gmra.mrb[0].mxu0 %v292
    %v873 = vpop.f32.mrb[0].mxu0
    %v874 = vadd.f32 %v579, %v873
    %v875 = vpop.f32.mrb[0].mxu0
    %876 = vmatprep.mubr.f32.mxu0 0.0
    %877 = vmatmul.mubr.f32.gmra.mrb[0].mxu0 %v293
    %v878 = vpop.f32.mrb[0].mxu0
    %v879 = vadd.f32 %v584, %v878
    %v880 = vpop.f32.mrb[0].mxu0
    %881 = vmatprep.mubr.f32.mxu0 0.0
    %882 = vmatmul.mubr.f32.gmra.mrb[0].mxu0 %v294
    %v883 = vpop.f32.mrb[0].mxu0
    %v884 = vadd.f32 %v589, %v883
    %v885 = vpop.f32.mrb[0].mxu0
    %886 = vmatprep.mubr.f32.mxu0 0.0
    %887 = vmatmul.mubr.f32.gmra.mrb[0].mxu0 %v295
    %v888 = vpop.f32.mrb[0].mxu0
    %v889 = vadd.f32 %v594, %v888
    %v890 = vpop.f32.mrb[0].mxu0
    %891 = vmatprep.mubr.f32.mxu0 0.0
    %892 = vmatmul.mubr.f32.gmra.mrb[0].mxu0 %v296
    %v893 = vpop.f32.mrb[0].mxu0
    %v894 = vadd.f32 %v599, %v893
    %v895 = vpop.f32.mrb[0].mxu0
    %896 = vmatprep.mubr.f32.mxu0 0.0
    %897 = vmatmul.mubr.f32.gmra.mrb[0].mxu0 %v297
    %v898 = vpop.f32.mrb[0].mxu0
    %v899 = vadd.f32 %v604, %v898
    %v900 = vpop.f32.mrb[0].mxu0
    %901 = vmatprep.mubr.f32.mxu0 0.0
    %902 = vmatmul.mubr.f32.gmra.mrb[0].mxu0 %v298
    %v903 = vpop.f32.mrb[0].mxu0
    %v904 = vadd.f32 %v609, %v903
    %v905 = vpop.f32.mrb[0].mxu0
    %906 = vmatprep.mubr.f32.mxu0 0.0
    %907 = vmatmul.mubr.f32.gmra.mrb[0].mxu0 %v299
    %v908 = vpop.f32.mrb[0].mxu0
    %v909 = vadd.f32 %v614, %v908
    %v910 = vpop.f32.mrb[0].mxu0
    %911 = vmatprep.mubr.f32.mxu0 0.0
    %912 = vmatmul.mubr.f32.gmra.mrb[0].mxu0 %v300
    %v913 = vpop.f32.mrb[0].mxu0
    %v914 = vadd.f32 %v619, %v913
    %v915 = vpop.f32.mrb[0].mxu0
    %916 = vmatprep.mubr.f32.mxu0 0.0
    %917 = vmatmul.mubr.f32.gmra.mrb[0].mxu0 %v301
    %v918 = vpop.f32.mrb[0].mxu0
    %v919 = vadd.f32 %v624, %v918
    %v920 = vpop.f32.mrb[0].mxu0
    %921 = vmatprep.mubr.f32.mxu0 0.0
    %922 = vmatmul.mubr.f32.gmra.mrb[0].mxu0 %v302
    %v923 = vpop.f32.mrb[0].mxu0
    %v924 = vadd.f32 %v629, %v923
    %v925 = vpop.f32.mrb[0].mxu0
    %926 = vmatprep.mubr.f32.mxu0 0.0
    %927 = vmatmul.mubr.f32.gmra.mrb[0].mxu0 %v303
    %v928 = vpop.f32.mrb[0].mxu0
    %v929 = vadd.f32 %v634, %v928
    %v930 = vpop.f32.mrb[0].mxu0
    %931 = vmatprep.mubr.f32.mxu0 0.0
    %932 = vmatmul.mubr.f32.gmra.mrb[0].mxu0 %v304
    %v933 = vpop.f32.mrb[0].mxu0
    %v934 = vadd.f32 %v639, %v933
    %v935 = vpop.f32.mrb[0].mxu0
    %936 = vmatprep.mubr.f32.mxu0 0.0
    %937 = vmatmul.mubr.f32.gmra.mrb[0].mxu0 %v305
    %v938 = vpop.f32.mrb[0].mxu0
    %v939 = vadd.f32 %v644, %v938
    %v940 = vpop.f32.mrb[0].mxu0
    %941 = vmatprep.mubr.f32.mxu0 0.0
    %942 = vmatmul.mubr.f32.gmra.mrb[0].mxu0 %v306
    %v943 = vpop.f32.mrb[0].mxu0
    %v944 = vadd.f32 %v649, %v943
    %v945 = vpop.f32.mrb[0].mxu0
    %946 = vmatprep.mubr.f32.mxu0 0.0
    %947 = vmatmul.mubr.f32.gmra.mrb[0].mxu0 %v307
    %v948 = vpop.f32.mrb[0].mxu0
    %v949 = vadd.f32 %v654, %v948
    %v950 = vpop.f32.mrb[0].mxu0
    %951 = vmatprep.mubr.f32.mxu0 0.0
    %952 = vmatmul.mubr.f32.gmra.mrb[0].mxu0 %v308
    %v953 = vpop.f32.mrb[0].mxu0
    %v954 = vadd.f32 %v659, %v953
    %v955 = vpop.f32.mrb[0].mxu0
    %956 = vmatprep.mubr.f32.mxu0 0.0
    %957 = vmatmul.mubr.f32.gmra.mrb[0].mxu0 %v309
    %v958 = vpop.f32.mrb[0].mxu0
    %v959 = vadd.f32 %v664, %v958
    %v960 = vpop.f32.mrb[0].mxu0
    %961 = vmatprep.mubr.f32.mxu0 0.0
    %962 = vmatmul.mubr.f32.gmra.mrb[0].mxu0 %v310
    %v963 = vpop.f32.mrb[0].mxu0
    %v964 = vadd.f32 %v669, %v963
    %v965 = vpop.f32.mrb[0].mxu0
    %966 = vmatprep.mubr.f32.mxu0 0.0
    %967 = vmatmul.mubr.f32.gmra.mrb[0].mxu0 %v311
    %v968 = vpop.f32.mrb[0].mxu0
    %v969 = vadd.f32 %v674, %v968
    %v970 = vpop.f32.mrb[0].mxu0
    %971 = vmatprep.mubr.f32.mxu0 0.0
    %972 = vmatmul.mubr.f32.gmra.mrb[0].mxu0 %v312
    %v973 = vpop.f32.mrb[0].mxu0
    %v974 = vadd.f32 %v679, %v973
    %v975 = vpop.f32.mrb[0].mxu0
    %976 = vmatprep.mubr.f32.mxu0 0.0
    %977 = vmatmul.mubr.f32.gmra.mrb[0].mxu0 %v313
    %v978 = vpop.f32.mrb[0].mxu0
    %v979 = vadd.f32 %v684, %v978
    %v980 = vpop.f32.mrb[0].mxu0
    %981 = vmatprep.mubr.f32.mxu0 0.0
    %982 = vmatmul.mubr.f32.gmra.mrb[0].mxu0 %v314
    %v983 = vpop.f32.mrb[0].mxu0
    %v984 = vadd.f32 %v689, %v983
    %v985 = vpop.f32.mrb[0].mxu0
    %986 = vmatprep.mubr.f32.mxu0 0.0
    %987 = vmatmul.mubr.f32.gmra.mrb[0].mxu0 %v315
    %v988 = vpop.f32.mrb[0].mxu0
    %v989 = vadd.f32 %v694, %v988
    %v990 = vpop.f32.mrb[0].mxu0
    %991 = vmatprep.mubr.f32.mxu0 0.0
    %992 = vmatmul.mubr.f32.gmra.mrb[0].mxu0 %v316
    %v993 = vpop.f32.mrb[0].mxu0
    %v994 = vadd.f32 %v699, %v993
    %v995 = vpop.f32.mrb[0].mxu0
    %996 = vmatprep.mubr.f32.mxu0 0.0
    %997 = vmatmul.mubr.f32.gmra.mrb[0].mxu0 %v317
    %v998 = vpop.f32.mrb[0].mxu0
    %v999 = vadd.f32 %v704, %v998
    %v1000 = vpop.f32.mrb[0].mxu0
    %1001 = vmatprep.mubr.f32.mxu0 0.0
    %1002 = vmatmul.mubr.f32.gmra.mrb[0].mxu0 %v318
    %v1003 = vpop.f32.mrb[0].mxu0
    %v1004 = vadd.f32 %v709, %v1003
    %v1005 = vpop.f32.mrb[0].mxu0
    %1006 = vmatprep.mubr.f32.mxu0 0.0
    %1007 = vmatmul.mubr.f32.gmra.mrb[0].mxu0 %v319
    %v1008 = vpop.f32.mrb[0].mxu0
    %v1009 = vadd.f32 %v714, %v1008
    %v1010 = vpop.f32.mrb[0].mxu0
    %1011 = vmatprep.mubr.f32.mxu0 0.0
    %1012 = vmatmul.mubr.f32.gmra.mrb[0].mxu0 %v320
    %v1013 = vpop.f32.mrb[0].mxu0
    %v1014 = vadd.f32 %v719, %v1013
    %v1015 = vpop.f32.mrb[0].mxu0
    %1016 = vmatprep.mubr.f32.mxu0 0.0
    %1017 = vmatmul.mubr.f32.gmra.mrb[0].mxu0 %v321
    %v1018 = vpop.f32.mrb[0].mxu0
    %v1019 = vadd.f32 %v724, %v1018
    %v1020 = vpop.f32.mrb[0].mxu0
    %1021 = vmatprep.mubr.f32.mxu0 0.0
    %1022 = vmatmul.mubr.f32.gmra.mrb[0].mxu0 %v322
    %v1023 = vpop.f32.mrb[0].mxu0
    %v1024 = vadd.f32 %v729, %v1023
    %v1025 = vpop.f32.mrb[0].mxu0
    %1026 = vdwg.mxu0
    %v1027 = vld [vmem:[%s0 + $0x48] sm:$0xff]
    %v1028 = vld [vmem:[%s0 + $0x50] sm:$0xff]
    %v1029 = vld [vmem:[%s0 + $0x58] sm:$0xff]
    %v1030 = vld [vmem:[%s0 + $0x60] sm:$0xff]
    %v1031 = vld [vmem:[%s0 + $0x68] sm:$0xff]
    %v1032 = vld [vmem:[%s0 + $0x70] sm:$0xff]
    %v1033 = vld [vmem:[%s0 + $0x78] sm:$0xff]
    %v1034 = vld [vmem:[%s0 + $0x80] sm:$0xff]
    %v1035 = vld [vmem:[%s0 + $0x88] sm:$0xff]
    %v1036 = vld [vmem:[%s0 + $0x90] sm:$0xff]
    %v1037 = vld [vmem:[%s0 + $0x98] sm:$0xff]
    %v1038 = vld [vmem:[%s0 + $0xa0] sm:$0xff]
    %v1039 = vld [vmem:[%s0 + $0xa8] sm:$0xff]
    %v1040 = vld [vmem:[%s0 + $0xb0] sm:$0xff]
    %v1041 = vld [vmem:[%s0 + $0xb8] sm:$0xff]
    %v1042 = vld [vmem:[%s0 + $0xc0] sm:$0xff]
    %v1043 = vld [vmem:[%s0 + $0xc8] sm:$0xff]
    %v1044 = vld [vmem:[%s0 + $0xd0] sm:$0xff]
    %v1045 = vld [vmem:[%s0 + $0xd8] sm:$0xff]
    %v1046 = vld [vmem:[%s0 + $0xe0] sm:$0xff]
    %v1047 = vld [vmem:[%s0 + $0xe8] sm:$0xff]
    %v1048 = vld [vmem:[%s0 + $0xf0] sm:$0xff]
    %v1049 = vld [vmem:[%s0 + $0xf8] sm:$0xff]
    %v1050 = vld [vmem:[%s0 + $0x100] sm:$0xff]
    %v1051 = vld [vmem:[%s0 + $0x108] sm:$0xff]
    %v1052 = vld [vmem:[%s0 + $0x110] sm:$0xff]
    %v1053 = vld [vmem:[%s0 + $0x118] sm:$0xff]
    %v1054 = vld [vmem:[%s0 + $0x120] sm:$0xff]
    %v1055 = vld [vmem:[%s0 + $0x128] sm:$0xff]
    %v1056 = vld [vmem:[%s0 + $0x130] sm:$0xff]
    %v1057 = vld [vmem:[%s0 + $0x138] sm:$0xff]
    %v1058 = vld [vmem:[%s0 + $0x140] sm:$0xff]
    %v1059 = vld [vmem:[%s0 + $0x148] sm:$0xff]
    %v1060 = vld [vmem:[%s0 + $0x150] sm:$0xff]
    %v1061 = vld [vmem:[%s0 + $0x158] sm:$0xff]
    %v1062 = vld [vmem:[%s0 + $0x160] sm:$0xff]
    %v1063 = vld [vmem:[%s0 + $0x168] sm:$0xff]
    %v1064 = vld [vmem:[%s0 + $0x170] sm:$0xff]
    %v1065 = vld [vmem:[%s0 + $0x178] sm:$0xff]
    %v1066 = vld [vmem:[%s0 + $0x180] sm:$0xff]
    %v1067 = vld [vmem:[%s0 + $0x188] sm:$0xff]
    %v1068 = vld [vmem:[%s0 + $0x190] sm:$0xff]
    %v1069 = vld [vmem:[%s0 + $0x198] sm:$0xff]
    %v1070 = vld [vmem:[%s0 + $0x1a0] sm:$0xff]
    %v1071 = vld [vmem:[%s0 + $0x1a8] sm:$0xff]
    %v1072 = vld [vmem:[%s0 + $0x1b0] sm:$0xff]
    %v1073 = vld [vmem:[%s0 + $0x1b8] sm:$0xff]
    %1120 = vrot.lane.b32.xlu0 %v1028, 64
    %v1121 = vpop.permute.xlu0 %1120
    %1122 = vrot.lane.b32.xlu0 %v1029, 64
    %v1123 = vpop.permute.xlu0 %1122
    %1124 = vrot.lane.b32.xlu0 %v1030, 64
    %v1125 = vpop.permute.xlu0 %1124
    %1126 = vrot.lane.b32.xlu0 %v1031, 64
    %v1127 = vpop.permute.xlu0 %1126
    %1128 = vrot.lane.b32.xlu0 %v1032, 64
    %v1129 = vpop.permute.xlu0 %1128
    %1130 = vrot.lane.b32.xlu0 %v1033, 64
    %v1131 = vpop.permute.xlu0 %1130
    %1132 = vrot.lane.b32.xlu0 %v1034, 64
    %v1133 = vpop.permute.xlu0 %1132
    %1134 = vrot.lane.b32.xlu0 %v1035, 64
    %v1135 = vpop.permute.xlu0 %1134
    %1136 = vrot.lane.b32.xlu0 %v1036, 64
    %v1137 = vpop.permute.xlu0 %1136
    %1138 = vrot.lane.b32.xlu0 %v1037, 64
    %v1139 = vpop.permute.xlu0 %1138
    %1140 = vrot.lane.b32.xlu0 %v1038, 64
    %v1141 = vpop.permute.xlu0 %1140
    %1142 = vrot.lane.b32.xlu0 %v1039, 64
    %v1143 = vpop.permute.xlu0 %1142
    %1144 = vrot.lane.b32.xlu0 %v1040, 64
    %v1145 = vpop.permute.xlu0 %1144
    %1146 = vrot.lane.b32.xlu0 %v1041, 64
    %v1147 = vpop.permute.xlu0 %1146
    %1148 = vrot.lane.b32.xlu0 %v1042, 64
    %v1149 = vpop.permute.xlu0 %1148
    %1150 = vrot.lane.b32.xlu0 %v1043, 64
    %v1151 = vpop.permute.xlu0 %1150
    %1152 = vrot.lane.b32.xlu0 %v1044, 64
    %v1153 = vpop.permute.xlu0 %1152
    %1154 = vrot.lane.b32.xlu0 %v1045, 64
    %v1155 = vpop.permute.xlu0 %1154
    %1156 = vrot.lane.b32.xlu0 %v1046, 64
    %v1157 = vpop.permute.xlu0 %1156
    %1158 = vrot.lane.b32.xlu0 %v1047, 64
    %v1159 = vpop.permute.xlu0 %1158
    %1160 = vrot.lane.b32.xlu0 %v1048, 64
    %v1161 = vpop.permute.xlu0 %1160
    %1162 = vrot.lane.b32.xlu0 %v1049, 64
    %v1163 = vpop.permute.xlu0 %1162
    %1164 = vrot.lane.b32.xlu0 %v1050, 64
    %v1165 = vpop.permute.xlu0 %1164
    %1166 = vrot.lane.b32.xlu0 %v1051, 64
    %v1167 = vpop.permute.xlu0 %1166
    %1168 = vrot.lane.b32.xlu0 %v1052, 64
    %v1169 = vpop.permute.xlu0 %1168
    %1170 = vrot.lane.b32.xlu0 %v1053, 64
    %v1171 = vpop.permute.xlu0 %1170
    %1172 = vrot.lane.b32.xlu0 %v1054, 64
    %v1173 = vpop.permute.xlu0 %1172
    %1174 = vrot.lane.b32.xlu0 %v1055, 64
    %v1175 = vpop.permute.xlu0 %1174
    %1176 = vrot.lane.b32.xlu0 %v1056, 64
    %v1177 = vpop.permute.xlu0 %1176
    %1178 = vrot.lane.b32.xlu0 %v1057, 64
    %v1179 = vpop.permute.xlu0 %1178
    %1180 = vrot.lane.b32.xlu0 %v1058, 64
    %v1181 = vpop.permute.xlu0 %1180
    %1182 = vrot.lane.b32.xlu0 %v1059, 64
    %v1183 = vpop.permute.xlu0 %1182
    %1184 = vrot.lane.b32.xlu0 %v1060, 64
    %v1185 = vpop.permute.xlu0 %1184
    %1186 = vrot.lane.b32.xlu0 %v1061, 64
    %v1187 = vpop.permute.xlu0 %1186
    %1188 = vrot.lane.b32.xlu0 %v1062, 64
    %v1189 = vpop.permute.xlu0 %1188
    %1190 = vrot.lane.b32.xlu0 %v1063, 64
    %v1191 = vpop.permute.xlu0 %1190
    %1192 = vrot.lane.b32.xlu0 %v1064, 64
    %v1193 = vpop.permute.xlu0 %1192
    %1194 = vrot.lane.b32.xlu0 %v1065, 64
    %v1195 = vpop.permute.xlu0 %1194
    %1196 = vrot.lane.b32.xlu0 %v1066, 64
    %v1197 = vpop.permute.xlu0 %1196
    %1198 = vrot.lane.b32.xlu0 %v1067, 64
    %v1199 = vpop.permute.xlu0 %1198
    %1200 = vrot.lane.b32.xlu0 %v1068, 64
    %v1201 = vpop.permute.xlu0 %1200
    %1202 = vrot.lane.b32.xlu0 %v1069, 64
    %v1203 = vpop.permute.xlu0 %1202
    %1204 = vrot.lane.b32.xlu0 %v1070, 64
    %v1205 = vpop.permute.xlu0 %1204
    %1206 = vrot.lane.b32.xlu0 %v1071, 64
    %v1207 = vpop.permute.xlu0 %1206
    %1208 = vrot.lane.b32.xlu0 %v1072, 64
    %v1209 = vpop.permute.xlu0 %1208
    %1210 = vrot.lane.b32.xlu0 %v1073, 64
    %v1211 = vpop.permute.xlu0 %1210
    %v1258 = vsel %vm276, %v1027, %v1121
    %v1259 = vsel %vm276, %v1028, %v1123
    %v1260 = vsel %vm276, %v1029, %v1125
    %v1261 = vsel %vm276, %v1030, %v1127
    %v1262 = vsel %vm276, %v1031, %v1129
    %v1263 = vsel %vm276, %v1032, %v1131
    %v1264 = vsel %vm276, %v1033, %v1133
    %v1265 = vsel %vm276, %v1034, %v1135
    %v1266 = vsel %vm276, %v1035, %v1137
    %v1267 = vsel %vm276, %v1036, %v1139
    %v1268 = vsel %vm276, %v1037, %v1141
    %v1269 = vsel %vm276, %v1038, %v1143
    %v1270 = vsel %vm276, %v1039, %v1145
    %v1271 = vsel %vm276, %v1040, %v1147
    %v1272 = vsel %vm276, %v1041, %v1149
    %v1273 = vsel %vm276, %v1042, %v1151
    %v1274 = vsel %vm276, %v1043, %v1153
    %v1275 = vsel %vm276, %v1044, %v1155
    %v1276 = vsel %vm276, %v1045, %v1157
    %v1277 = vsel %vm276, %v1046, %v1159
    %v1278 = vsel %vm276, %v1047, %v1161
    %v1279 = vsel %vm276, %v1048, %v1163
    %v1280 = vsel %vm276, %v1049, %v1165
    %v1281 = vsel %vm276, %v1050, %v1167
    %v1282 = vsel %vm276, %v1051, %v1169
    %v1283 = vsel %vm276, %v1052, %v1171
    %v1284 = vsel %vm276, %v1053, %v1173
    %v1285 = vsel %vm276, %v1054, %v1175
    %v1286 = vsel %vm276, %v1055, %v1177
    %v1287 = vsel %vm276, %v1056, %v1179
    %v1288 = vsel %vm276, %v1057, %v1181
    %v1289 = vsel %vm276, %v1058, %v1183
    %v1290 = vsel %vm276, %v1059, %v1185
    %v1291 = vsel %vm276, %v1060, %v1187
    %v1292 = vsel %vm276, %v1061, %v1189
    %v1293 = vsel %vm276, %v1062, %v1191
    %v1294 = vsel %vm276, %v1063, %v1193
    %v1295 = vsel %vm276, %v1064, %v1195
    %v1296 = vsel %vm276, %v1065, %v1197
    %v1297 = vsel %vm276, %v1066, %v1199
    %v1298 = vsel %vm276, %v1067, %v1201
    %v1299 = vsel %vm276, %v1068, %v1203
    %v1300 = vsel %vm276, %v1069, %v1205
    %v1301 = vsel %vm276, %v1070, %v1207
    %v1302 = vsel %vm276, %v1071, %v1209
    %v1303 = vsel %vm276, %v1072, %v1211
    %s1304 = scalar_lea.vmem %s1, 256
    %v1305 = vld [vmem:[%s1304] sm:$0xff]
    %v1306 = vld [vmem:[%s1304 + $0x8] sm:$0xff]
    %v1307 = vld [vmem:[%s1304 + $0x10] sm:$0xff]
    %v1308 = vld [vmem:[%s1304 + $0x18] sm:$0xff]
    %v1309 = vld [vmem:[%s1304 + $0x20] sm:$0xff]
    %v1310 = vld [vmem:[%s1304 + $0x28] sm:$0xff]
    %v1311 = vld [vmem:[%s1304 + $0x30] sm:$0xff]
    %v1312 = vld [vmem:[%s1304 + $0x38] sm:$0xff]
    %v1313 = vld [vmem:[%s1304 + $0x40] sm:$0xff]
    %v1314 = vld [vmem:[%s1304 + $0x48] sm:$0xff]
    %v1315 = vld [vmem:[%s1304 + $0x50] sm:$0xff]
    %v1316 = vld [vmem:[%s1304 + $0x58] sm:$0xff]
    %v1317 = vld [vmem:[%s1304 + $0x60] sm:$0xff]
    %v1318 = vld [vmem:[%s1304 + $0x68] sm:$0xff]
    %v1319 = vld [vmem:[%s1304 + $0x70] sm:$0xff]
    %v1320 = vld [vmem:[%s1304 + $0x78] sm:$0xff]
    %1321 = vmatprep.subr.mxu0 0.0
    %1322 = vmatpush1.msra.mxu0 %v1305
    %1323 = vmatprep.subr.mxu0 0.0
    %1324 = vmatpush1.msra.mxu0 %v1306
    %1325 = vmatprep.subr.mxu0 0.0
    %1326 = vmatpush1.msra.mxu0 %v1307
    %1327 = vmatprep.subr.mxu0 0.0
    %1328 = vmatpush1.msra.mxu0 %v1308
    %1329 = vmatprep.subr.mxu0 0.0
    %1330 = vmatpush1.msra.mxu0 %v1309
    %1331 = vmatprep.subr.mxu0 0.0
    %1332 = vmatpush1.msra.mxu0 %v1310
    %1333 = vmatprep.subr.mxu0 0.0
    %1334 = vmatpush1.msra.mxu0 %v1311
    %1335 = vmatprep.subr.mxu0 0.0
    %1336 = vmatpush1.msra.mxu0 %v1312
    %1337 = vmatprep.subr.mxu0 0.0
    %1338 = vmatpush1.msra.mxu0 %v1313
    %1339 = vmatprep.subr.mxu0 0.0
    %1340 = vmatpush1.msra.mxu0 %v1314
    %1341 = vmatprep.subr.mxu0 0.0
    %1342 = vmatpush1.msra.mxu0 %v1315
    %1343 = vmatprep.subr.mxu0 0.0
    %1344 = vmatpush1.msra.mxu0 %v1316
    %1345 = vmatprep.subr.mxu0 0.0
    %1346 = vmatpush1.msra.mxu0 %v1317
    %1347 = vmatprep.subr.mxu0 0.0
    %1348 = vmatpush1.msra.mxu0 %v1318
    %1349 = vmatprep.subr.mxu0 0.0
    %1350 = vmatpush1.msra.mxu0 %v1319
    %1351 = vmatprep.subr.mxu0 0.0
    %1352 = vmatpush1.msra.mxu0 %v1320
    %1353 = vmatprep.subr.mxu0 0.0
    %1354 = vmatpush1.msra.mxu0 0.0
    %1355 = vmatprep.subr.mxu0 0.0
    %1356 = vmatpush1.msra.mxu0 0.0
    %1357 = vmatprep.subr.mxu0 0.0
    %1358 = vmatpush1.msra.mxu0 0.0
    %1359 = vmatprep.subr.mxu0 0.0
    %1360 = vmatpush1.msra.mxu0 0.0
    %1361 = vmatprep.subr.mxu0 0.0
    %1362 = vmatpush1.msra.mxu0 0.0
    %1363 = vmatprep.subr.mxu0 0.0
    %1364 = vmatpush1.msra.mxu0 0.0
    %1365 = vmatprep.subr.mxu0 0.0
    %1366 = vmatpush1.msra.mxu0 0.0
    %1367 = vmatprep.subr.mxu0 0.0
    %1368 = vmatpush1.msra.mxu0 0.0
    %1369 = vmatprep.subr.mxu0 0.0
    %1370 = vmatpush1.msra.mxu0 0.0
    %1371 = vmatprep.subr.mxu0 0.0
    %1372 = vmatpush1.msra.mxu0 0.0
    %1373 = vmatprep.subr.mxu0 0.0
    %1374 = vmatpush1.msra.mxu0 0.0
    %1375 = vmatprep.subr.mxu0 0.0
    %1376 = vmatpush1.msra.mxu0 0.0
    %1377 = vmatprep.subr.mxu0 0.0
    %1378 = vmatpush1.msra.mxu0 0.0
    %1379 = vmatprep.subr.mxu0 0.0
    %1380 = vmatpush1.msra.mxu0 0.0
    %1381 = vmatprep.subr.mxu0 0.0
    %1382 = vmatpush1.msra.mxu0 0.0
    %1383 = vmatprep.subr.mxu0 0.0
    %1384 = vmatpush1.msra.mxu0 0.0
    %1385 = vmatprep.mubr.f32.mxu0 0.0
    %1386 = vmatmul.mubr.f32.gmra.mrb[0].mxu0 %v1258
    %v1387 = vpop.f32.mrb[0].mxu0
    %v1388 = vadd.f32 0.0, %v1387
    %v1389 = vpop.f32.mrb[0].mxu0
    %1390 = vmatprep.mubr.f32.mxu0 0.0
    %1391 = vmatmul.mubr.f32.gmra.mrb[0].mxu0 %v1259
    %v1392 = vpop.f32.mrb[0].mxu0
    %v1393 = vadd.f32 0.0, %v1392
    %v1394 = vpop.f32.mrb[0].mxu0
    %1395 = vmatprep.mubr.f32.mxu0 0.0
    %1396 = vmatmul.mubr.f32.gmra.mrb[0].mxu0 %v1260
    %v1397 = vpop.f32.mrb[0].mxu0
    %v1398 = vadd.f32 0.0, %v1397
    %v1399 = vpop.f32.mrb[0].mxu0
    %1400 = vmatprep.mubr.f32.mxu0 0.0
    %1401 = vmatmul.mubr.f32.gmra.mrb[0].mxu0 %v1261
    %v1402 = vpop.f32.mrb[0].mxu0
    %v1403 = vadd.f32 0.0, %v1402
    %v1404 = vpop.f32.mrb[0].mxu0
    %1405 = vmatprep.mubr.f32.mxu0 0.0
    %1406 = vmatmul.mubr.f32.gmra.mrb[0].mxu0 %v1262
    %v1407 = vpop.f32.mrb[0].mxu0
    %v1408 = vadd.f32 0.0, %v1407
    %v1409 = vpop.f32.mrb[0].mxu0
    %1410 = vmatprep.mubr.f32.mxu0 0.0
    %1411 = vmatmul.mubr.f32.gmra.mrb[0].mxu0 %v1263
    %v1412 = vpop.f32.mrb[0].mxu0
    %v1413 = vadd.f32 0.0, %v1412
    %v1414 = vpop.f32.mrb[0].mxu0
    %1415 = vmatprep.mubr.f32.mxu0 0.0
    %1416 = vmatmul.mubr.f32.gmra.mrb[0].mxu0 %v1264
    %v1417 = vpop.f32.mrb[0].mxu0
    %v1418 = vadd.f32 0.0, %v1417
    %v1419 = vpop.f32.mrb[0].mxu0
    %1420 = vmatprep.mubr.f32.mxu0 0.0
    %1421 = vmatmul.mubr.f32.gmra.mrb[0].mxu0 %v1265
    %v1422 = vpop.f32.mrb[0].mxu0
    %v1423 = vadd.f32 0.0, %v1422
    %v1424 = vpop.f32.mrb[0].mxu0
    %1425 = vmatprep.mubr.f32.mxu0 0.0
    %1426 = vmatmul.mubr.f32.gmra.mrb[0].mxu0 %v1266
    %v1427 = vpop.f32.mrb[0].mxu0
    %v1428 = vadd.f32 0.0, %v1427
    %v1429 = vpop.f32.mrb[0].mxu0
    %1430 = vmatprep.mubr.f32.mxu0 0.0
    %1431 = vmatmul.mubr.f32.gmra.mrb[0].mxu0 %v1267
    %v1432 = vpop.f32.mrb[0].mxu0
    %v1433 = vadd.f32 0.0, %v1432
    %v1434 = vpop.f32.mrb[0].mxu0
    %1435 = vmatprep.mubr.f32.mxu0 0.0
    %1436 = vmatmul.mubr.f32.gmra.mrb[0].mxu0 %v1268
    %v1437 = vpop.f32.mrb[0].mxu0
    %v1438 = vadd.f32 0.0, %v1437
    %v1439 = vpop.f32.mrb[0].mxu0
    %1440 = vmatprep.mubr.f32.mxu0 0.0
    %1441 = vmatmul.mubr.f32.gmra.mrb[0].mxu0 %v1269
    %v1442 = vpop.f32.mrb[0].mxu0
    %v1443 = vadd.f32 0.0, %v1442
    %v1444 = vpop.f32.mrb[0].mxu0
    %1445 = vmatprep.mubr.f32.mxu0 0.0
    %1446 = vmatmul.mubr.f32.gmra.mrb[0].mxu0 %v1270
    %v1447 = vpop.f32.mrb[0].mxu0
    %v1448 = vadd.f32 0.0, %v1447
    %v1449 = vpop.f32.mrb[0].mxu0
    %1450 = vmatprep.mubr.f32.mxu0 0.0
    %1451 = vmatmul.mubr.f32.gmra.mrb[0].mxu0 %v1271
    %v1452 = vpop.f32.mrb[0].mxu0
    %v1453 = vadd.f32 0.0, %v1452
    %v1454 = vpop.f32.mrb[0].mxu0
    %1455 = vmatprep.mubr.f32.mxu0 0.0
    %1456 = vmatmul.mubr.f32.gmra.mrb[0].mxu0 %v1272
    %v1457 = vpop.f32.mrb[0].mxu0
    %v1458 = vadd.f32 0.0, %v1457
    %v1459 = vpop.f32.mrb[0].mxu0
    %1460 = vmatprep.mubr.f32.mxu0 0.0
    %1461 = vmatmul.mubr.f32.gmra.mrb[0].mxu0 %v1273
    %v1462 = vpop.f32.mrb[0].mxu0
    %v1463 = vadd.f32 0.0, %v1462
    %v1464 = vpop.f32.mrb[0].mxu0
    %1465 = vmatprep.mubr.f32.mxu0 0.0
    %1466 = vmatmul.mubr.f32.gmra.mrb[0].mxu0 %v1274
    %v1467 = vpop.f32.mrb[0].mxu0
    %v1468 = vadd.f32 0.0, %v1467
    %v1469 = vpop.f32.mrb[0].mxu0
    %1470 = vmatprep.mubr.f32.mxu0 0.0
    %1471 = vmatmul.mubr.f32.gmra.mrb[0].mxu0 %v1275
    %v1472 = vpop.f32.mrb[0].mxu0
    %v1473 = vadd.f32 0.0, %v1472
    %v1474 = vpop.f32.mrb[0].mxu0
    %1475 = vmatprep.mubr.f32.mxu0 0.0
    %1476 = vmatmul.mubr.f32.gmra.mrb[0].mxu0 %v1276
    %v1477 = vpop.f32.mrb[0].mxu0
    %v1478 = vadd.f32 0.0, %v1477
    %v1479 = vpop.f32.mrb[0].mxu0
    %1480 = vmatprep.mubr.f32.mxu0 0.0
    %1481 = vmatmul.mubr.f32.gmra.mrb[0].mxu0 %v1277
    %v1482 = vpop.f32.mrb[0].mxu0
    %v1483 = vadd.f32 0.0, %v1482
    %v1484 = vpop.f32.mrb[0].mxu0
    %1485 = vmatprep.mubr.f32.mxu0 0.0
    %1486 = vmatmul.mubr.f32.gmra.mrb[0].mxu0 %v1278
    %v1487 = vpop.f32.mrb[0].mxu0
    %v1488 = vadd.f32 0.0, %v1487
    %v1489 = vpop.f32.mrb[0].mxu0
    %1490 = vmatprep.mubr.f32.mxu0 0.0
    %1491 = vmatmul.mubr.f32.gmra.mrb[0].mxu0 %v1279
    %v1492 = vpop.f32.mrb[0].mxu0
    %v1493 = vadd.f32 0.0, %v1492
    %v1494 = vpop.f32.mrb[0].mxu0
    %1495 = vmatprep.mubr.f32.mxu0 0.0
    %1496 = vmatmul.mubr.f32.gmra.mrb[0].mxu0 %v1280
    %v1497 = vpop.f32.mrb[0].mxu0
    %v1498 = vadd.f32 0.0, %v1497
    %v1499 = vpop.f32.mrb[0].mxu0
    %1500 = vmatprep.mubr.f32.mxu0 0.0
    %1501 = vmatmul.mubr.f32.gmra.mrb[0].mxu0 %v1281
    %v1502 = vpop.f32.mrb[0].mxu0
    %v1503 = vadd.f32 0.0, %v1502
    %v1504 = vpop.f32.mrb[0].mxu0
    %1505 = vmatprep.mubr.f32.mxu0 0.0
    %1506 = vmatmul.mubr.f32.gmra.mrb[0].mxu0 %v1282
    %v1507 = vpop.f32.mrb[0].mxu0
    %v1508 = vadd.f32 0.0, %v1507
    %v1509 = vpop.f32.mrb[0].mxu0
    %1510 = vmatprep.mubr.f32.mxu0 0.0
    %1511 = vmatmul.mubr.f32.gmra.mrb[0].mxu0 %v1283
    %v1512 = vpop.f32.mrb[0].mxu0
    %v1513 = vadd.f32 0.0, %v1512
    %v1514 = vpop.f32.mrb[0].mxu0
    %1515 = vmatprep.mubr.f32.mxu0 0.0
    %1516 = vmatmul.mubr.f32.gmra.mrb[0].mxu0 %v1284
    %v1517 = vpop.f32.mrb[0].mxu0
    %v1518 = vadd.f32 0.0, %v1517
    %v1519 = vpop.f32.mrb[0].mxu0
    %1520 = vmatprep.mubr.f32.mxu0 0.0
    %1521 = vmatmul.mubr.f32.gmra.mrb[0].mxu0 %v1285
    %v1522 = vpop.f32.mrb[0].mxu0
    %v1523 = vadd.f32 0.0, %v1522
    %v1524 = vpop.f32.mrb[0].mxu0
    %1525 = vmatprep.mubr.f32.mxu0 0.0
    %1526 = vmatmul.mubr.f32.gmra.mrb[0].mxu0 %v1286
    %v1527 = vpop.f32.mrb[0].mxu0
    %v1528 = vadd.f32 0.0, %v1527
    %v1529 = vpop.f32.mrb[0].mxu0
    %1530 = vmatprep.mubr.f32.mxu0 0.0
    %1531 = vmatmul.mubr.f32.gmra.mrb[0].mxu0 %v1287
    %v1532 = vpop.f32.mrb[0].mxu0
    %v1533 = vadd.f32 0.0, %v1532
    %v1534 = vpop.f32.mrb[0].mxu0
    %1535 = vmatprep.mubr.f32.mxu0 0.0
    %1536 = vmatmul.mubr.f32.gmra.mrb[0].mxu0 %v1288
    %v1537 = vpop.f32.mrb[0].mxu0
    %v1538 = vadd.f32 0.0, %v1537
    %v1539 = vpop.f32.mrb[0].mxu0
    %1540 = vmatprep.mubr.f32.mxu0 0.0
    %1541 = vmatmul.mubr.f32.gmra.mrb[0].mxu0 %v1289
    %v1542 = vpop.f32.mrb[0].mxu0
    %v1543 = vadd.f32 0.0, %v1542
    %v1544 = vpop.f32.mrb[0].mxu0
    %1545 = vmatprep.mubr.f32.mxu0 0.0
    %1546 = vmatmul.mubr.f32.gmra.mrb[0].mxu0 %v1290
    %v1547 = vpop.f32.mrb[0].mxu0
    %v1548 = vadd.f32 0.0, %v1547
    %v1549 = vpop.f32.mrb[0].mxu0
    %1550 = vmatprep.mubr.f32.mxu0 0.0
    %1551 = vmatmul.mubr.f32.gmra.mrb[0].mxu0 %v1291
    %v1552 = vpop.f32.mrb[0].mxu0
    %v1553 = vadd.f32 0.0, %v1552
    %v1554 = vpop.f32.mrb[0].mxu0
    %1555 = vmatprep.mubr.f32.mxu0 0.0
    %1556 = vmatmul.mubr.f32.gmra.mrb[0].mxu0 %v1292
    %v1557 = vpop.f32.mrb[0].mxu0
    %v1558 = vadd.f32 0.0, %v1557
    %v1559 = vpop.f32.mrb[0].mxu0
    %1560 = vmatprep.mubr.f32.mxu0 0.0
    %1561 = vmatmul.mubr.f32.gmra.mrb[0].mxu0 %v1293
    %v1562 = vpop.f32.mrb[0].mxu0
    %v1563 = vadd.f32 0.0, %v1562
    %v1564 = vpop.f32.mrb[0].mxu0
    %1565 = vmatprep.mubr.f32.mxu0 0.0
    %1566 = vmatmul.mubr.f32.gmra.mrb[0].mxu0 %v1294
    %v1567 = vpop.f32.mrb[0].mxu0
    %v1568 = vadd.f32 0.0, %v1567
    %v1569 = vpop.f32.mrb[0].mxu0
    %1570 = vmatprep.mubr.f32.mxu0 0.0
    %1571 = vmatmul.mubr.f32.gmra.mrb[0].mxu0 %v1295
    %v1572 = vpop.f32.mrb[0].mxu0
    %v1573 = vadd.f32 0.0, %v1572
    %v1574 = vpop.f32.mrb[0].mxu0
    %1575 = vmatprep.mubr.f32.mxu0 0.0
    %1576 = vmatmul.mubr.f32.gmra.mrb[0].mxu0 %v1296
    %v1577 = vpop.f32.mrb[0].mxu0
    %v1578 = vadd.f32 0.0, %v1577
    %v1579 = vpop.f32.mrb[0].mxu0
    %1580 = vmatprep.mubr.f32.mxu0 0.0
    %1581 = vmatmul.mubr.f32.gmra.mrb[0].mxu0 %v1297
    %v1582 = vpop.f32.mrb[0].mxu0
    %v1583 = vadd.f32 0.0, %v1582
    %v1584 = vpop.f32.mrb[0].mxu0
    %1585 = vmatprep.mubr.f32.mxu0 0.0
    %1586 = vmatmul.mubr.f32.gmra.mrb[0].mxu0 %v1298
    %v1587 = vpop.f32.mrb[0].mxu0
    %v1588 = vadd.f32 0.0, %v1587
    %v1589 = vpop.f32.mrb[0].mxu0
    %1590 = vmatprep.mubr.f32.mxu0 0.0
    %1591 = vmatmul.mubr.f32.gmra.mrb[0].mxu0 %v1299
    %v1592 = vpop.f32.mrb[0].mxu0
    %v1593 = vadd.f32 0.0, %v1592
    %v1594 = vpop.f32.mrb[0].mxu0
    %1595 = vmatprep.mubr.f32.mxu0 0.0
    %1596 = vmatmul.mubr.f32.gmra.mrb[0].mxu0 %v1300
    %v1597 = vpop.f32.mrb[0].mxu0
    %v1598 = vadd.f32 0.0, %v1597
    %v1599 = vpop.f32.mrb[0].mxu0
    %1600 = vmatprep.mubr.f32.mxu0 0.0
    %1601 = vmatmul.mubr.f32.gmra.mrb[0].mxu0 %v1301
    %v1602 = vpop.f32.mrb[0].mxu0
    %v1603 = vadd.f32 0.0, %v1602
    %v1604 = vpop.f32.mrb[0].mxu0
    %1605 = vmatprep.mubr.f32.mxu0 0.0
    %1606 = vmatmul.mubr.f32.gmra.mrb[0].mxu0 %v1302
    %v1607 = vpop.f32.mrb[0].mxu0
    %v1608 = vadd.f32 0.0, %v1607
    %v1609 = vpop.f32.mrb[0].mxu0
    %1610 = vmatprep.mubr.f32.mxu0 0.0
    %1611 = vmatmul.mubr.f32.gmra.mrb[0].mxu0 %v1303
    %v1612 = vpop.f32.mrb[0].mxu0
    %v1613 = vadd.f32 0.0, %v1612
    %v1614 = vpop.f32.mrb[0].mxu0
    %1615 = vdwg.mxu0
    %v1616 = vadd.f32 %v799, %v1388
    %v1617 = vadd.f32 %v804, %v1393
    %v1618 = vadd.f32 %v809, %v1398
    %v1619 = vadd.f32 %v814, %v1403
    %v1620 = vadd.f32 %v819, %v1408
    %v1621 = vadd.f32 %v824, %v1413
    %v1622 = vadd.f32 %v829, %v1418
    %v1623 = vadd.f32 %v834, %v1423
    %v1624 = vadd.f32 %v839, %v1428
    %v1625 = vadd.f32 %v844, %v1433
    %v1626 = vadd.f32 %v849, %v1438
    %v1627 = vadd.f32 %v854, %v1443
    %v1628 = vadd.f32 %v859, %v1448
    %v1629 = vadd.f32 %v864, %v1453
    %v1630 = vadd.f32 %v869, %v1458
    %v1631 = vadd.f32 %v874, %v1463
    %v1632 = vadd.f32 %v879, %v1468
    %v1633 = vadd.f32 %v884, %v1473
    %v1634 = vadd.f32 %v889, %v1478
    %v1635 = vadd.f32 %v894, %v1483
    %v1636 = vadd.f32 %v899, %v1488
    %v1637 = vadd.f32 %v904, %v1493
    %v1638 = vadd.f32 %v909, %v1498
    %v1639 = vadd.f32 %v914, %v1503
    %v1640 = vadd.f32 %v919, %v1508
    %v1641 = vadd.f32 %v924, %v1513
    %v1642 = vadd.f32 %v929, %v1518
    %v1643 = vadd.f32 %v934, %v1523
    %v1644 = vadd.f32 %v939, %v1528
    %v1645 = vadd.f32 %v944, %v1533
    %v1646 = vadd.f32 %v949, %v1538
    %v1647 = vadd.f32 %v954, %v1543
    %v1648 = vadd.f32 %v959, %v1548
    %v1649 = vadd.f32 %v964, %v1553
    %v1650 = vadd.f32 %v969, %v1558
    %v1651 = vadd.f32 %v974, %v1563
    %v1652 = vadd.f32 %v979, %v1568
    %v1653 = vadd.f32 %v984, %v1573
    %v1654 = vadd.f32 %v989, %v1578
    %v1655 = vadd.f32 %v994, %v1583
    %v1656 = vadd.f32 %v999, %v1588
    %v1657 = vadd.f32 %v1004, %v1593
    %v1658 = vadd.f32 %v1009, %v1598
    %v1659 = vadd.f32 %v1014, %v1603
    %v1660 = vadd.f32 %v1019, %v1608
    %v1661 = vadd.f32 %v1024, %v1613
    %v1662 = vld [vmem:[%s0 + $0x80] sm:$0xff]
    %v1663 = vld [vmem:[%s0 + $0x88] sm:$0xff]
    %v1664 = vld [vmem:[%s0 + $0x90] sm:$0xff]
    %v1665 = vld [vmem:[%s0 + $0x98] sm:$0xff]
    %v1666 = vld [vmem:[%s0 + $0xa0] sm:$0xff]
    %v1667 = vld [vmem:[%s0 + $0xa8] sm:$0xff]
    %v1668 = vld [vmem:[%s0 + $0xb0] sm:$0xff]
    %v1669 = vld [vmem:[%s0 + $0xb8] sm:$0xff]
    %v1670 = vld [vmem:[%s0 + $0xc0] sm:$0xff]
    %v1671 = vld [vmem:[%s0 + $0xc8] sm:$0xff]
    %v1672 = vld [vmem:[%s0 + $0xd0] sm:$0xff]
    %v1673 = vld [vmem:[%s0 + $0xd8] sm:$0xff]
    %v1674 = vld [vmem:[%s0 + $0xe0] sm:$0xff]
    %v1675 = vld [vmem:[%s0 + $0xe8] sm:$0xff]
    %v1676 = vld [vmem:[%s0 + $0xf0] sm:$0xff]
    %v1677 = vld [vmem:[%s0 + $0xf8] sm:$0xff]
    %v1678 = vld [vmem:[%s0 + $0x100] sm:$0xff]
    %v1679 = vld [vmem:[%s0 + $0x108] sm:$0xff]
    %v1680 = vld [vmem:[%s0 + $0x110] sm:$0xff]
    %v1681 = vld [vmem:[%s0 + $0x118] sm:$0xff]
    %v1682 = vld [vmem:[%s0 + $0x120] sm:$0xff]
    %v1683 = vld [vmem:[%s0 + $0x128] sm:$0xff]
    %v1684 = vld [vmem:[%s0 + $0x130] sm:$0xff]
    %v1685 = vld [vmem:[%s0 + $0x138] sm:$0xff]
    %v1686 = vld [vmem:[%s0 + $0x140] sm:$0xff]
    %v1687 = vld [vmem:[%s0 + $0x148] sm:$0xff]
    %v1688 = vld [vmem:[%s0 + $0x150] sm:$0xff]
    %v1689 = vld [vmem:[%s0 + $0x158] sm:$0xff]
    %v1690 = vld [vmem:[%s0 + $0x160] sm:$0xff]
    %v1691 = vld [vmem:[%s0 + $0x168] sm:$0xff]
    %v1692 = vld [vmem:[%s0 + $0x170] sm:$0xff]
    %v1693 = vld [vmem:[%s0 + $0x178] sm:$0xff]
    %v1694 = vld [vmem:[%s0 + $0x180] sm:$0xff]
    %v1695 = vld [vmem:[%s0 + $0x188] sm:$0xff]
    %v1696 = vld [vmem:[%s0 + $0x190] sm:$0xff]
    %v1697 = vld [vmem:[%s0 + $0x198] sm:$0xff]
    %v1698 = vld [vmem:[%s0 + $0x1a0] sm:$0xff]
    %v1699 = vld [vmem:[%s0 + $0x1a8] sm:$0xff]
    %v1700 = vld [vmem:[%s0 + $0x1b0] sm:$0xff]
    %v1701 = vld [vmem:[%s0 + $0x1b8] sm:$0xff]
    %v1702 = vld [vmem:[%s0 + $0x1c0] sm:$0xff]
    %v1703 = vld [vmem:[%s0 + $0x1c8] sm:$0xff]
    %v1704 = vld [vmem:[%s0 + $0x1d0] sm:$0xff]
    %v1705 = vld [vmem:[%s0 + $0x1d8] sm:$0xff]
    %v1706 = vld [vmem:[%s0 + $0x1e0] sm:$0xff]
    %v1707 = vld [vmem:[%s0 + $0x1e8] sm:$0xff]
    %v1708 = vld [vmem:[%s0 + $0x1f0] sm:$0xff]
    %1755 = vrot.lane.b32.xlu0 %v1663, 64
    %v1756 = vpop.permute.xlu0 %1755
    %1757 = vrot.lane.b32.xlu0 %v1664, 64
    %v1758 = vpop.permute.xlu0 %1757
    %1759 = vrot.lane.b32.xlu0 %v1665, 64
    %v1760 = vpop.permute.xlu0 %1759
    %1761 = vrot.lane.b32.xlu0 %v1666, 64
    %v1762 = vpop.permute.xlu0 %1761
    %1763 = vrot.lane.b32.xlu0 %v1667, 64
    %v1764 = vpop.permute.xlu0 %1763
    %1765 = vrot.lane.b32.xlu0 %v1668, 64
    %v1766 = vpop.permute.xlu0 %1765
    %1767 = vrot.lane.b32.xlu0 %v1669, 64
    %v1768 = vpop.permute.xlu0 %1767
    %1769 = vrot.lane.b32.xlu0 %v1670, 64
    %v1770 = vpop.permute.xlu0 %1769
    %1771 = vrot.lane.b32.xlu0 %v1671, 64
    %v1772 = vpop.permute.xlu0 %1771
    %1773 = vrot.lane.b32.xlu0 %v1672, 64
    %v1774 = vpop.permute.xlu0 %1773
    %1775 = vrot.lane.b32.xlu0 %v1673, 64
    %v1776 = vpop.permute.xlu0 %1775
    %1777 = vrot.lane.b32.xlu0 %v1674, 64
    %v1778 = vpop.permute.xlu0 %1777
    %1779 = vrot.lane.b32.xlu0 %v1675, 64
    %v1780 = vpop.permute.xlu0 %1779
    %1781 = vrot.lane.b32.xlu0 %v1676, 64
    %v1782 = vpop.permute.xlu0 %1781
    %1783 = vrot.lane.b32.xlu0 %v1677, 64
    %v1784 = vpop.permute.xlu0 %1783
    %1785 = vrot.lane.b32.xlu0 %v1678, 64
    %v1786 = vpop.permute.xlu0 %1785
    %1787 = vrot.lane.b32.xlu0 %v1679, 64
    %v1788 = vpop.permute.xlu0 %1787
    %1789 = vrot.lane.b32.xlu0 %v1680, 64
    %v1790 = vpop.permute.xlu0 %1789
    %1791 = vrot.lane.b32.xlu0 %v1681, 64
    %v1792 = vpop.permute.xlu0 %1791
    %1793 = vrot.lane.b32.xlu0 %v1682, 64
    %v1794 = vpop.permute.xlu0 %1793
    %1795 = vrot.lane.b32.xlu0 %v1683, 64
    %v1796 = vpop.permute.xlu0 %1795
    %1797 = vrot.lane.b32.xlu0 %v1684, 64
    %v1798 = vpop.permute.xlu0 %1797
    %1799 = vrot.lane.b32.xlu0 %v1685, 64
    %v1800 = vpop.permute.xlu0 %1799
    %1801 = vrot.lane.b32.xlu0 %v1686, 64
    %v1802 = vpop.permute.xlu0 %1801
    %1803 = vrot.lane.b32.xlu0 %v1687, 64
    %v1804 = vpop.permute.xlu0 %1803
    %1805 = vrot.lane.b32.xlu0 %v1688, 64
    %v1806 = vpop.permute.xlu0 %1805
    %1807 = vrot.lane.b32.xlu0 %v1689, 64
    %v1808 = vpop.permute.xlu0 %1807
    %1809 = vrot.lane.b32.xlu0 %v1690, 64
    %v1810 = vpop.permute.xlu0 %1809
    %1811 = vrot.lane.b32.xlu0 %v1691, 64
    %v1812 = vpop.permute.xlu0 %1811
    %1813 = vrot.lane.b32.xlu0 %v1692, 64
    %v1814 = vpop.permute.xlu0 %1813
    %1815 = vrot.lane.b32.xlu0 %v1693, 64
    %v1816 = vpop.permute.xlu0 %1815
    %1817 = vrot.lane.b32.xlu0 %v1694, 64
    %v1818 = vpop.permute.xlu0 %1817
    %1819 = vrot.lane.b32.xlu0 %v1695, 64
    %v1820 = vpop.permute.xlu0 %1819
    %1821 = vrot.lane.b32.xlu0 %v1696, 64
    %v1822 = vpop.permute.xlu0 %1821
    %1823 = vrot.lane.b32.xlu0 %v1697, 64
    %v1824 = vpop.permute.xlu0 %1823
    %1825 = vrot.lane.b32.xlu0 %v1698, 64
    %v1826 = vpop.permute.xlu0 %1825
    %1827 = vrot.lane.b32.xlu0 %v1699, 64
    %v1828 = vpop.permute.xlu0 %1827
    %1829 = vrot.lane.b32.xlu0 %v1700, 64
    %v1830 = vpop.permute.xlu0 %1829
    %1831 = vrot.lane.b32.xlu0 %v1701, 64
    %v1832 = vpop.permute.xlu0 %1831
    %1833 = vrot.lane.b32.xlu0 %v1702, 64
    %v1834 = vpop.permute.xlu0 %1833
    %1835 = vrot.lane.b32.xlu0 %v1703, 64
    %v1836 = vpop.permute.xlu0 %1835
    %1837 = vrot.lane.b32.xlu0 %v1704, 64
    %v1838 = vpop.permute.xlu0 %1837
    %1839 = vrot.lane.b32.xlu0 %v1705, 64
    %v1840 = vpop.permute.xlu0 %1839
    %1841 = vrot.lane.b32.xlu0 %v1706, 64
    %v1842 = vpop.permute.xlu0 %1841
    %1843 = vrot.lane.b32.xlu0 %v1707, 64
    %v1844 = vpop.permute.xlu0 %1843
    %1845 = vrot.lane.b32.xlu0 %v1708, 64
    %v1846 = vpop.permute.xlu0 %1845
    %v1893 = vsel %vm276, %v1662, %v1756
    %v1894 = vsel %vm276, %v1663, %v1758
    %v1895 = vsel %vm276, %v1664, %v1760
    %v1896 = vsel %vm276, %v1665, %v1762
    %v1897 = vsel %vm276, %v1666, %v1764
    %v1898 = vsel %vm276, %v1667, %v1766
    %v1899 = vsel %vm276, %v1668, %v1768
    %v1900 = vsel %vm276, %v1669, %v1770
    %v1901 = vsel %vm276, %v1670, %v1772
    %v1902 = vsel %vm276, %v1671, %v1774
    %v1903 = vsel %vm276, %v1672, %v1776
    %v1904 = vsel %vm276, %v1673, %v1778
    %v1905 = vsel %vm276, %v1674, %v1780
    %v1906 = vsel %vm276, %v1675, %v1782
    %v1907 = vsel %vm276, %v1676, %v1784
    %v1908 = vsel %vm276, %v1677, %v1786
    %v1909 = vsel %vm276, %v1678, %v1788
    %v1910 = vsel %vm276, %v1679, %v1790
    %v1911 = vsel %vm276, %v1680, %v1792
    %v1912 = vsel %vm276, %v1681, %v1794
    %v1913 = vsel %vm276, %v1682, %v1796
    %v1914 = vsel %vm276, %v1683, %v1798
    %v1915 = vsel %vm276, %v1684, %v1800
    %v1916 = vsel %vm276, %v1685, %v1802
    %v1917 = vsel %vm276, %v1686, %v1804
    %v1918 = vsel %vm276, %v1687, %v1806
    %v1919 = vsel %vm276, %v1688, %v1808
    %v1920 = vsel %vm276, %v1689, %v1810
    %v1921 = vsel %vm276, %v1690, %v1812
    %v1922 = vsel %vm276, %v1691, %v1814
    %v1923 = vsel %vm276, %v1692, %v1816
    %v1924 = vsel %vm276, %v1693, %v1818
    %v1925 = vsel %vm276, %v1694, %v1820
    %v1926 = vsel %vm276, %v1695, %v1822
    %v1927 = vsel %vm276, %v1696, %v1824
    %v1928 = vsel %vm276, %v1697, %v1826
    %v1929 = vsel %vm276, %v1698, %v1828
    %v1930 = vsel %vm276, %v1699, %v1830
    %v1931 = vsel %vm276, %v1700, %v1832
    %v1932 = vsel %vm276, %v1701, %v1834
    %v1933 = vsel %vm276, %v1702, %v1836
    %v1934 = vsel %vm276, %v1703, %v1838
    %v1935 = vsel %vm276, %v1704, %v1840
    %v1936 = vsel %vm276, %v1705, %v1842
    %v1937 = vsel %vm276, %v1706, %v1844
    %v1938 = vsel %vm276, %v1707, %v1846
    %s1939 = scalar_lea.vmem %s1, 384
    %v1940 = vld [vmem:[%s1939] sm:$0xff]
    %v1941 = vld [vmem:[%s1939 + $0x8] sm:$0xff]
    %v1942 = vld [vmem:[%s1939 + $0x10] sm:$0xff]
    %v1943 = vld [vmem:[%s1939 + $0x18] sm:$0xff]
    %v1944 = vld [vmem:[%s1939 + $0x20] sm:$0xff]
    %v1945 = vld [vmem:[%s1939 + $0x28] sm:$0xff]
    %v1946 = vld [vmem:[%s1939 + $0x30] sm:$0xff]
    %v1947 = vld [vmem:[%s1939 + $0x38] sm:$0xff]
    %v1948 = vld [vmem:[%s1939 + $0x40] sm:$0xff]
    %v1949 = vld [vmem:[%s1939 + $0x48] sm:$0xff]
    %v1950 = vld [vmem:[%s1939 + $0x50] sm:$0xff]
    %v1951 = vld [vmem:[%s1939 + $0x58] sm:$0xff]
    %v1952 = vld [vmem:[%s1939 + $0x60] sm:$0xff]
    %v1953 = vld [vmem:[%s1939 + $0x68] sm:$0xff]
    %v1954 = vld [vmem:[%s1939 + $0x70] sm:$0xff]
    %v1955 = vld [vmem:[%s1939 + $0x78] sm:$0xff]
    %1956 = vmatprep.subr.mxu0 0.0
    %1957 = vmatpush1.msra.mxu0 %v1940
    %1958 = vmatprep.subr.mxu0 0.0
    %1959 = vmatpush1.msra.mxu0 %v1941
    %1960 = vmatprep.subr.mxu0 0.0
    %1961 = vmatpush1.msra.mxu0 %v1942
    %1962 = vmatprep.subr.mxu0 0.0
    %1963 = vmatpush1.msra.mxu0 %v1943
    %1964 = vmatprep.subr.mxu0 0.0
    %1965 = vmatpush1.msra.mxu0 %v1944
    %1966 = vmatprep.subr.mxu0 0.0
    %1967 = vmatpush1.msra.mxu0 %v1945
    %1968 = vmatprep.subr.mxu0 0.0
    %1969 = vmatpush1.msra.mxu0 %v1946
    %1970 = vmatprep.subr.mxu0 0.0
    %1971 = vmatpush1.msra.mxu0 %v1947
    %1972 = vmatprep.subr.mxu0 0.0
    %1973 = vmatpush1.msra.mxu0 %v1948
    %1974 = vmatprep.subr.mxu0 0.0
    %1975 = vmatpush1.msra.mxu0 %v1949
    %1976 = vmatprep.subr.mxu0 0.0
    %1977 = vmatpush1.msra.mxu0 %v1950
    %1978 = vmatprep.subr.mxu0 0.0
    %1979 = vmatpush1.msra.mxu0 %v1951
    %1980 = vmatprep.subr.mxu0 0.0
    %1981 = vmatpush1.msra.mxu0 %v1952
    %1982 = vmatprep.subr.mxu0 0.0
    %1983 = vmatpush1.msra.mxu0 %v1953
    %1984 = vmatprep.subr.mxu0 0.0
    %1985 = vmatpush1.msra.mxu0 %v1954
    %1986 = vmatprep.subr.mxu0 0.0
    %1987 = vmatpush1.msra.mxu0 %v1955
    %1988 = vmatprep.subr.mxu0 0.0
    %1989 = vmatpush1.msra.mxu0 0.0
    %1990 = vmatprep.subr.mxu0 0.0
    %1991 = vmatpush1.msra.mxu0 0.0
    %1992 = vmatprep.subr.mxu0 0.0
    %1993 = vmatpush1.msra.mxu0 0.0
    %1994 = vmatprep.subr.mxu0 0.0
    %1995 = vmatpush1.msra.mxu0 0.0
    %1996 = vmatprep.subr.mxu0 0.0
    %1997 = vmatpush1.msra.mxu0 0.0
    %1998 = vmatprep.subr.mxu0 0.0
    %1999 = vmatpush1.msra.mxu0 0.0
    %2000 = vmatprep.subr.mxu0 0.0
    %2001 = vmatpush1.msra.mxu0 0.0
    %2002 = vmatprep.subr.mxu0 0.0
    %2003 = vmatpush1.msra.mxu0 0.0
    %2004 = vmatprep.subr.mxu0 0.0
    %2005 = vmatpush1.msra.mxu0 0.0
    %2006 = vmatprep.subr.mxu0 0.0
    %2007 = vmatpush1.msra.mxu0 0.0
    %2008 = vmatprep.subr.mxu0 0.0
    %2009 = vmatpush1.msra.mxu0 0.0
    %2010 = vmatprep.subr.mxu0 0.0
    %2011 = vmatpush1.msra.mxu0 0.0
    %2012 = vmatprep.subr.mxu0 0.0
    %2013 = vmatpush1.msra.mxu0 0.0
    %2014 = vmatprep.subr.mxu0 0.0
    %2015 = vmatpush1.msra.mxu0 0.0
    %2016 = vmatprep.subr.mxu0 0.0
    %2017 = vmatpush1.msra.mxu0 0.0
    %2018 = vmatprep.subr.mxu0 0.0
    %2019 = vmatpush1.msra.mxu0 0.0
    %2020 = vmatprep.mubr.f32.mxu0 0.0
    %2021 = vmatmul.mubr.f32.gmra.mrb[0].mxu0 %v1893
    %v2022 = vpop.f32.mrb[0].mxu0
    %v2023 = vadd.f32 0.0, %v2022
    %v2024 = vpop.f32.mrb[0].mxu0
    %2025 = vmatprep.mubr.f32.mxu0 0.0
    %2026 = vmatmul.mubr.f32.gmra.mrb[0].mxu0 %v1894
    %v2027 = vpop.f32.mrb[0].mxu0
    %v2028 = vadd.f32 0.0, %v2027
    %v2029 = vpop.f32.mrb[0].mxu0
    %2030 = vmatprep.mubr.f32.mxu0 0.0
    %2031 = vmatmul.mubr.f32.gmra.mrb[0].mxu0 %v1895
    %v2032 = vpop.f32.mrb[0].mxu0
    %v2033 = vadd.f32 0.0, %v2032
    %v2034 = vpop.f32.mrb[0].mxu0
    %2035 = vmatprep.mubr.f32.mxu0 0.0
    %2036 = vmatmul.mubr.f32.gmra.mrb[0].mxu0 %v1896
    %v2037 = vpop.f32.mrb[0].mxu0
    %v2038 = vadd.f32 0.0, %v2037
    %v2039 = vpop.f32.mrb[0].mxu0
    %2040 = vmatprep.mubr.f32.mxu0 0.0
    %2041 = vmatmul.mubr.f32.gmra.mrb[0].mxu0 %v1897
    %v2042 = vpop.f32.mrb[0].mxu0
    %v2043 = vadd.f32 0.0, %v2042
    %v2044 = vpop.f32.mrb[0].mxu0
    %2045 = vmatprep.mubr.f32.mxu0 0.0
    %2046 = vmatmul.mubr.f32.gmra.mrb[0].mxu0 %v1898
    %v2047 = vpop.f32.mrb[0].mxu0
    %v2048 = vadd.f32 0.0, %v2047
    %v2049 = vpop.f32.mrb[0].mxu0
    %2050 = vmatprep.mubr.f32.mxu0 0.0
    %2051 = vmatmul.mubr.f32.gmra.mrb[0].mxu0 %v1899
    %v2052 = vpop.f32.mrb[0].mxu0
    %v2053 = vadd.f32 0.0, %v2052
    %v2054 = vpop.f32.mrb[0].mxu0
    %2055 = vmatprep.mubr.f32.mxu0 0.0
    %2056 = vmatmul.mubr.f32.gmra.mrb[0].mxu0 %v1900
    %v2057 = vpop.f32.mrb[0].mxu0
    %v2058 = vadd.f32 0.0, %v2057
    %v2059 = vpop.f32.mrb[0].mxu0
    %2060 = vmatprep.mubr.f32.mxu0 0.0
    %2061 = vmatmul.mubr.f32.gmra.mrb[0].mxu0 %v1901
    %v2062 = vpop.f32.mrb[0].mxu0
    %v2063 = vadd.f32 0.0, %v2062
    %v2064 = vpop.f32.mrb[0].mxu0
    %2065 = vmatprep.mubr.f32.mxu0 0.0
    %2066 = vmatmul.mubr.f32.gmra.mrb[0].mxu0 %v1902
    %v2067 = vpop.f32.mrb[0].mxu0
    %v2068 = vadd.f32 0.0, %v2067
    %v2069 = vpop.f32.mrb[0].mxu0
    %2070 = vmatprep.mubr.f32.mxu0 0.0
    %2071 = vmatmul.mubr.f32.gmra.mrb[0].mxu0 %v1903
    %v2072 = vpop.f32.mrb[0].mxu0
    %v2073 = vadd.f32 0.0, %v2072
    %v2074 = vpop.f32.mrb[0].mxu0
    %2075 = vmatprep.mubr.f32.mxu0 0.0
    %2076 = vmatmul.mubr.f32.gmra.mrb[0].mxu0 %v1904
    %v2077 = vpop.f32.mrb[0].mxu0
    %v2078 = vadd.f32 0.0, %v2077
    %v2079 = vpop.f32.mrb[0].mxu0
    %2080 = vmatprep.mubr.f32.mxu0 0.0
    %2081 = vmatmul.mubr.f32.gmra.mrb[0].mxu0 %v1905
    %v2082 = vpop.f32.mrb[0].mxu0
    %v2083 = vadd.f32 0.0, %v2082
    %v2084 = vpop.f32.mrb[0].mxu0
    %2085 = vmatprep.mubr.f32.mxu0 0.0
    %2086 = vmatmul.mubr.f32.gmra.mrb[0].mxu0 %v1906
    %v2087 = vpop.f32.mrb[0].mxu0
    %v2088 = vadd.f32 0.0, %v2087
    %v2089 = vpop.f32.mrb[0].mxu0
    %2090 = vmatprep.mubr.f32.mxu0 0.0
    %2091 = vmatmul.mubr.f32.gmra.mrb[0].mxu0 %v1907
    %v2092 = vpop.f32.mrb[0].mxu0
    %v2093 = vadd.f32 0.0, %v2092
    %v2094 = vpop.f32.mrb[0].mxu0
    %2095 = vmatprep.mubr.f32.mxu0 0.0
    %2096 = vmatmul.mubr.f32.gmra.mrb[0].mxu0 %v1908
    %v2097 = vpop.f32.mrb[0].mxu0
    %v2098 = vadd.f32 0.0, %v2097
    %v2099 = vpop.f32.mrb[0].mxu0
    %2100 = vmatprep.mubr.f32.mxu0 0.0
    %2101 = vmatmul.mubr.f32.gmra.mrb[0].mxu0 %v1909
    %v2102 = vpop.f32.mrb[0].mxu0
    %v2103 = vadd.f32 0.0, %v2102
    %v2104 = vpop.f32.mrb[0].mxu0
    %2105 = vmatprep.mubr.f32.mxu0 0.0
    %2106 = vmatmul.mubr.f32.gmra.mrb[0].mxu0 %v1910
    %v2107 = vpop.f32.mrb[0].mxu0
    %v2108 = vadd.f32 0.0, %v2107
    %v2109 = vpop.f32.mrb[0].mxu0
    %2110 = vmatprep.mubr.f32.mxu0 0.0
    %2111 = vmatmul.mubr.f32.gmra.mrb[0].mxu0 %v1911
    %v2112 = vpop.f32.mrb[0].mxu0
    %v2113 = vadd.f32 0.0, %v2112
    %v2114 = vpop.f32.mrb[0].mxu0
    %2115 = vmatprep.mubr.f32.mxu0 0.0
    %2116 = vmatmul.mubr.f32.gmra.mrb[0].mxu0 %v1912
    %v2117 = vpop.f32.mrb[0].mxu0
    %v2118 = vadd.f32 0.0, %v2117
    %v2119 = vpop.f32.mrb[0].mxu0
    %2120 = vmatprep.mubr.f32.mxu0 0.0
    %2121 = vmatmul.mubr.f32.gmra.mrb[0].mxu0 %v1913
    %v2122 = vpop.f32.mrb[0].mxu0
    %v2123 = vadd.f32 0.0, %v2122
    %v2124 = vpop.f32.mrb[0].mxu0
    %2125 = vmatprep.mubr.f32.mxu0 0.0
    %2126 = vmatmul.mubr.f32.gmra.mrb[0].mxu0 %v1914
    %v2127 = vpop.f32.mrb[0].mxu0
    %v2128 = vadd.f32 0.0, %v2127
    %v2129 = vpop.f32.mrb[0].mxu0
    %2130 = vmatprep.mubr.f32.mxu0 0.0
    %2131 = vmatmul.mubr.f32.gmra.mrb[0].mxu0 %v1915
    %v2132 = vpop.f32.mrb[0].mxu0
    %v2133 = vadd.f32 0.0, %v2132
    %v2134 = vpop.f32.mrb[0].mxu0
    %2135 = vmatprep.mubr.f32.mxu0 0.0
    %2136 = vmatmul.mubr.f32.gmra.mrb[0].mxu0 %v1916
    %v2137 = vpop.f32.mrb[0].mxu0
    %v2138 = vadd.f32 0.0, %v2137
    %v2139 = vpop.f32.mrb[0].mxu0
    %2140 = vmatprep.mubr.f32.mxu0 0.0
    %2141 = vmatmul.mubr.f32.gmra.mrb[0].mxu0 %v1917
    %v2142 = vpop.f32.mrb[0].mxu0
    %v2143 = vadd.f32 0.0, %v2142
    %v2144 = vpop.f32.mrb[0].mxu0
    %2145 = vmatprep.mubr.f32.mxu0 0.0
    %2146 = vmatmul.mubr.f32.gmra.mrb[0].mxu0 %v1918
    %v2147 = vpop.f32.mrb[0].mxu0
    %v2148 = vadd.f32 0.0, %v2147
    %v2149 = vpop.f32.mrb[0].mxu0
    %2150 = vmatprep.mubr.f32.mxu0 0.0
    %2151 = vmatmul.mubr.f32.gmra.mrb[0].mxu0 %v1919
    %v2152 = vpop.f32.mrb[0].mxu0
    %v2153 = vadd.f32 0.0, %v2152
    %v2154 = vpop.f32.mrb[0].mxu0
    %2155 = vmatprep.mubr.f32.mxu0 0.0
    %2156 = vmatmul.mubr.f32.gmra.mrb[0].mxu0 %v1920
    %v2157 = vpop.f32.mrb[0].mxu0
    %v2158 = vadd.f32 0.0, %v2157
    %v2159 = vpop.f32.mrb[0].mxu0
    %2160 = vmatprep.mubr.f32.mxu0 0.0
    %2161 = vmatmul.mubr.f32.gmra.mrb[0].mxu0 %v1921
    %v2162 = vpop.f32.mrb[0].mxu0
    %v2163 = vadd.f32 0.0, %v2162
    %v2164 = vpop.f32.mrb[0].mxu0
    %2165 = vmatprep.mubr.f32.mxu0 0.0
    %2166 = vmatmul.mubr.f32.gmra.mrb[0].mxu0 %v1922
    %v2167 = vpop.f32.mrb[0].mxu0
    %v2168 = vadd.f32 0.0, %v2167
    %v2169 = vpop.f32.mrb[0].mxu0
    %2170 = vmatprep.mubr.f32.mxu0 0.0
    %2171 = vmatmul.mubr.f32.gmra.mrb[0].mxu0 %v1923
    %v2172 = vpop.f32.mrb[0].mxu0
    %v2173 = vadd.f32 0.0, %v2172
    %v2174 = vpop.f32.mrb[0].mxu0
    %2175 = vmatprep.mubr.f32.mxu0 0.0
    %2176 = vmatmul.mubr.f32.gmra.mrb[0].mxu0 %v1924
    %v2177 = vpop.f32.mrb[0].mxu0
    %v2178 = vadd.f32 0.0, %v2177
    %v2179 = vpop.f32.mrb[0].mxu0
    %2180 = vmatprep.mubr.f32.mxu0 0.0
    %2181 = vmatmul.mubr.f32.gmra.mrb[0].mxu0 %v1925
    %v2182 = vpop.f32.mrb[0].mxu0
    %v2183 = vadd.f32 0.0, %v2182
    %v2184 = vpop.f32.mrb[0].mxu0
    %2185 = vmatprep.mubr.f32.mxu0 0.0
    %2186 = vmatmul.mubr.f32.gmra.mrb[0].mxu0 %v1926
    %v2187 = vpop.f32.mrb[0].mxu0
    %v2188 = vadd.f32 0.0, %v2187
    %v2189 = vpop.f32.mrb[0].mxu0
    %2190 = vmatprep.mubr.f32.mxu0 0.0
    %2191 = vmatmul.mubr.f32.gmra.mrb[0].mxu0 %v1927
    %v2192 = vpop.f32.mrb[0].mxu0
    %v2193 = vadd.f32 0.0, %v2192
    %v2194 = vpop.f32.mrb[0].mxu0
    %2195 = vmatprep.mubr.f32.mxu0 0.0
    %2196 = vmatmul.mubr.f32.gmra.mrb[0].mxu0 %v1928
    %v2197 = vpop.f32.mrb[0].mxu0
    %v2198 = vadd.f32 0.0, %v2197
    %v2199 = vpop.f32.mrb[0].mxu0
    %2200 = vmatprep.mubr.f32.mxu0 0.0
    %2201 = vmatmul.mubr.f32.gmra.mrb[0].mxu0 %v1929
    %v2202 = vpop.f32.mrb[0].mxu0
    %v2203 = vadd.f32 0.0, %v2202
    %v2204 = vpop.f32.mrb[0].mxu0
    %2205 = vmatprep.mubr.f32.mxu0 0.0
    %2206 = vmatmul.mubr.f32.gmra.mrb[0].mxu0 %v1930
    %v2207 = vpop.f32.mrb[0].mxu0
    %v2208 = vadd.f32 0.0, %v2207
    %v2209 = vpop.f32.mrb[0].mxu0
    %2210 = vmatprep.mubr.f32.mxu0 0.0
    %2211 = vmatmul.mubr.f32.gmra.mrb[0].mxu0 %v1931
    %v2212 = vpop.f32.mrb[0].mxu0
    %v2213 = vadd.f32 0.0, %v2212
    %v2214 = vpop.f32.mrb[0].mxu0
    %2215 = vmatprep.mubr.f32.mxu0 0.0
    %2216 = vmatmul.mubr.f32.gmra.mrb[0].mxu0 %v1932
    %v2217 = vpop.f32.mrb[0].mxu0
    %v2218 = vadd.f32 0.0, %v2217
    %v2219 = vpop.f32.mrb[0].mxu0
    %2220 = vmatprep.mubr.f32.mxu0 0.0
    %2221 = vmatmul.mubr.f32.gmra.mrb[0].mxu0 %v1933
    %v2222 = vpop.f32.mrb[0].mxu0
    %v2223 = vadd.f32 0.0, %v2222
    %v2224 = vpop.f32.mrb[0].mxu0
    %2225 = vmatprep.mubr.f32.mxu0 0.0
    %2226 = vmatmul.mubr.f32.gmra.mrb[0].mxu0 %v1934
    %v2227 = vpop.f32.mrb[0].mxu0
    %v2228 = vadd.f32 0.0, %v2227
    %v2229 = vpop.f32.mrb[0].mxu0
    %2230 = vmatprep.mubr.f32.mxu0 0.0
    %2231 = vmatmul.mubr.f32.gmra.mrb[0].mxu0 %v1935
    %v2232 = vpop.f32.mrb[0].mxu0
    %v2233 = vadd.f32 0.0, %v2232
    %v2234 = vpop.f32.mrb[0].mxu0
    %2235 = vmatprep.mubr.f32.mxu0 0.0
    %2236 = vmatmul.mubr.f32.gmra.mrb[0].mxu0 %v1936
    %v2237 = vpop.f32.mrb[0].mxu0
    %v2238 = vadd.f32 0.0, %v2237
    %v2239 = vpop.f32.mrb[0].mxu0
    %2240 = vmatprep.mubr.f32.mxu0 0.0
    %2241 = vmatmul.mubr.f32.gmra.mrb[0].mxu0 %v1937
    %v2242 = vpop.f32.mrb[0].mxu0
    %v2243 = vadd.f32 0.0, %v2242
    %v2244 = vpop.f32.mrb[0].mxu0
    %2245 = vmatprep.mubr.f32.mxu0 0.0
    %2246 = vmatmul.mubr.f32.gmra.mrb[0].mxu0 %v1938
    %v2247 = vpop.f32.mrb[0].mxu0
    %v2248 = vadd.f32 0.0, %v2247
    %v2249 = vpop.f32.mrb[0].mxu0
    %2250 = vdwg.mxu0
    %v2251 = vadd.f32 %v1616, %v2023
    %v2252 = vadd.f32 %v1617, %v2028
    %v2253 = vadd.f32 %v1618, %v2033
    %v2254 = vadd.f32 %v1619, %v2038
    %v2255 = vadd.f32 %v1620, %v2043
    %v2256 = vadd.f32 %v1621, %v2048
    %v2257 = vadd.f32 %v1622, %v2053
    %v2258 = vadd.f32 %v1623, %v2058
    %v2259 = vadd.f32 %v1624, %v2063
    %v2260 = vadd.f32 %v1625, %v2068
    %v2261 = vadd.f32 %v1626, %v2073
    %v2262 = vadd.f32 %v1627, %v2078
    %v2263 = vadd.f32 %v1628, %v2083
    %v2264 = vadd.f32 %v1629, %v2088
    %v2265 = vadd.f32 %v1630, %v2093
    %v2266 = vadd.f32 %v1631, %v2098
    %v2267 = vadd.f32 %v1632, %v2103
    %v2268 = vadd.f32 %v1633, %v2108
    %v2269 = vadd.f32 %v1634, %v2113
    %v2270 = vadd.f32 %v1635, %v2118
    %v2271 = vadd.f32 %v1636, %v2123
    %v2272 = vadd.f32 %v1637, %v2128
    %v2273 = vadd.f32 %v1638, %v2133
    %v2274 = vadd.f32 %v1639, %v2138
    %v2275 = vadd.f32 %v1640, %v2143
    %v2276 = vadd.f32 %v1641, %v2148
    %v2277 = vadd.f32 %v1642, %v2153
    %v2278 = vadd.f32 %v1643, %v2158
    %v2279 = vadd.f32 %v1644, %v2163
    %v2280 = vadd.f32 %v1645, %v2168
    %v2281 = vadd.f32 %v1646, %v2173
    %v2282 = vadd.f32 %v1647, %v2178
    %v2283 = vadd.f32 %v1648, %v2183
    %v2284 = vadd.f32 %v1649, %v2188
    %v2285 = vadd.f32 %v1650, %v2193
    %v2286 = vadd.f32 %v1651, %v2198
    %v2287 = vadd.f32 %v1652, %v2203
    %v2288 = vadd.f32 %v1653, %v2208
    %v2289 = vadd.f32 %v1654, %v2213
    %v2290 = vadd.f32 %v1655, %v2218
    %v2291 = vadd.f32 %v1656, %v2223
    %v2292 = vadd.f32 %v1657, %v2228
    %v2293 = vadd.f32 %v1658, %v2233
    %v2294 = vadd.f32 %v1659, %v2238
    %v2295 = vadd.f32 %v1660, %v2243
    %v2296 = vadd.f32 %v1661, %v2248
    %v2297 = vld [vmem:[%s0 + $0x90] sm:$0xff]
    %v2298 = vld [vmem:[%s0 + $0x98] sm:$0xff]
    %v2299 = vld [vmem:[%s0 + $0xa0] sm:$0xff]
    %v2300 = vld [vmem:[%s0 + $0xa8] sm:$0xff]
    %v2301 = vld [vmem:[%s0 + $0xb0] sm:$0xff]
    %v2302 = vld [vmem:[%s0 + $0xb8] sm:$0xff]
    %v2303 = vld [vmem:[%s0 + $0xc0] sm:$0xff]
    %v2304 = vld [vmem:[%s0 + $0xc8] sm:$0xff]
    %v2305 = vld [vmem:[%s0 + $0xd0] sm:$0xff]
    %v2306 = vld [vmem:[%s0 + $0xd8] sm:$0xff]
    %v2307 = vld [vmem:[%s0 + $0xe0] sm:$0xff]
    %v2308 = vld [vmem:[%s0 + $0xe8] sm:$0xff]
    %v2309 = vld [vmem:[%s0 + $0xf0] sm:$0xff]
    %v2310 = vld [vmem:[%s0 + $0xf8] sm:$0xff]
    %v2311 = vld [vmem:[%s0 + $0x100] sm:$0xff]
    %v2312 = vld [vmem:[%s0 + $0x108] sm:$0xff]
    %v2313 = vld [vmem:[%s0 + $0x110] sm:$0xff]
    %v2314 = vld [vmem:[%s0 + $0x118] sm:$0xff]
    %v2315 = vld [vmem:[%s0 + $0x120] sm:$0xff]
    %v2316 = vld [vmem:[%s0 + $0x128] sm:$0xff]
    %v2317 = vld [vmem:[%s0 + $0x130] sm:$0xff]
    %v2318 = vld [vmem:[%s0 + $0x138] sm:$0xff]
    %v2319 = vld [vmem:[%s0 + $0x140] sm:$0xff]
    %v2320 = vld [vmem:[%s0 + $0x148] sm:$0xff]
    %v2321 = vld [vmem:[%s0 + $0x150] sm:$0xff]
    %v2322 = vld [vmem:[%s0 + $0x158] sm:$0xff]
    %v2323 = vld [vmem:[%s0 + $0x160] sm:$0xff]
    %v2324 = vld [vmem:[%s0 + $0x168] sm:$0xff]
    %v2325 = vld [vmem:[%s0 + $0x170] sm:$0xff]
    %v2326 = vld [vmem:[%s0 + $0x178] sm:$0xff]
    %v2327 = vld [vmem:[%s0 + $0x180] sm:$0xff]
    %v2328 = vld [vmem:[%s0 + $0x188] sm:$0xff]
    %v2329 = vld [vmem:[%s0 + $0x190] sm:$0xff]
    %v2330 = vld [vmem:[%s0 + $0x198] sm:$0xff]
    %v2331 = vld [vmem:[%s0 + $0x1a0] sm:$0xff]
    %v2332 = vld [vmem:[%s0 + $0x1a8] sm:$0xff]
    %v2333 = vld [vmem:[%s0 + $0x1b0] sm:$0xff]
    %v2334 = vld [vmem:[%s0 + $0x1b8] sm:$0xff]
    %v2335 = vld [vmem:[%s0 + $0x1c0] sm:$0xff]
    %v2336 = vld [vmem:[%s0 + $0x1c8] sm:$0xff]
    %v2337 = vld [vmem:[%s0 + $0x1d0] sm:$0xff]
    %v2338 = vld [vmem:[%s0 + $0x1d8] sm:$0xff]
    %v2339 = vld [vmem:[%s0 + $0x1e0] sm:$0xff]
    %v2340 = vld [vmem:[%s0 + $0x1e8] sm:$0xff]
    %v2341 = vld [vmem:[%s0 + $0x1f0] sm:$0xff]
    %v2342 = vld [vmem:[%s0 + $0x1f8] sm:$0xff]
    %2389 = vrot.lane.b32.xlu0 %v2297, 64
    %v2390 = vpop.permute.xlu0 %2389
    %2391 = vrot.lane.b32.xlu0 %v2298, 64
    %v2392 = vpop.permute.xlu0 %2391
    %2393 = vrot.lane.b32.xlu0 %v2299, 64
    %v2394 = vpop.permute.xlu0 %2393
    %2395 = vrot.lane.b32.xlu0 %v2300, 64
    %v2396 = vpop.permute.xlu0 %2395
    %2397 = vrot.lane.b32.xlu0 %v2301, 64
    %v2398 = vpop.permute.xlu0 %2397
    %2399 = vrot.lane.b32.xlu0 %v2302, 64
    %v2400 = vpop.permute.xlu0 %2399
    %2401 = vrot.lane.b32.xlu0 %v2303, 64
    %v2402 = vpop.permute.xlu0 %2401
    %2403 = vrot.lane.b32.xlu0 %v2304, 64
    %v2404 = vpop.permute.xlu0 %2403
    %2405 = vrot.lane.b32.xlu0 %v2305, 64
    %v2406 = vpop.permute.xlu0 %2405
    %2407 = vrot.lane.b32.xlu0 %v2306, 64
    %v2408 = vpop.permute.xlu0 %2407
    %2409 = vrot.lane.b32.xlu0 %v2307, 64
    %v2410 = vpop.permute.xlu0 %2409
    %2411 = vrot.lane.b32.xlu0 %v2308, 64
    %v2412 = vpop.permute.xlu0 %2411
    %2413 = vrot.lane.b32.xlu0 %v2309, 64
    %v2414 = vpop.permute.xlu0 %2413
    %2415 = vrot.lane.b32.xlu0 %v2310, 64
    %v2416 = vpop.permute.xlu0 %2415
    %2417 = vrot.lane.b32.xlu0 %v2311, 64
    %v2418 = vpop.permute.xlu0 %2417
    %2419 = vrot.lane.b32.xlu0 %v2312, 64
    %v2420 = vpop.permute.xlu0 %2419
    %2421 = vrot.lane.b32.xlu0 %v2313, 64
    %v2422 = vpop.permute.xlu0 %2421
    %2423 = vrot.lane.b32.xlu0 %v2314, 64
    %v2424 = vpop.permute.xlu0 %2423
    %2425 = vrot.lane.b32.xlu0 %v2315, 64
    %v2426 = vpop.permute.xlu0 %2425
    %2427 = vrot.lane.b32.xlu0 %v2316, 64
    %v2428 = vpop.permute.xlu0 %2427
    %2429 = vrot.lane.b32.xlu0 %v2317, 64
    %v2430 = vpop.permute.xlu0 %2429
    %2431 = vrot.lane.b32.xlu0 %v2318, 64
    %v2432 = vpop.permute.xlu0 %2431
    %2433 = vrot.lane.b32.xlu0 %v2319, 64
    %v2434 = vpop.permute.xlu0 %2433
    %2435 = vrot.lane.b32.xlu0 %v2320, 64
    %v2436 = vpop.permute.xlu0 %2435
    %2437 = vrot.lane.b32.xlu0 %v2321, 64
    %v2438 = vpop.permute.xlu0 %2437
    %2439 = vrot.lane.b32.xlu0 %v2322, 64
    %v2440 = vpop.permute.xlu0 %2439
    %2441 = vrot.lane.b32.xlu0 %v2323, 64
    %v2442 = vpop.permute.xlu0 %2441
    %2443 = vrot.lane.b32.xlu0 %v2324, 64
    %v2444 = vpop.permute.xlu0 %2443
    %2445 = vrot.lane.b32.xlu0 %v2325, 64
    %v2446 = vpop.permute.xlu0 %2445
    %2447 = vrot.lane.b32.xlu0 %v2326, 64
    %v2448 = vpop.permute.xlu0 %2447
    %2449 = vrot.lane.b32.xlu0 %v2327, 64
    %v2450 = vpop.permute.xlu0 %2449
    %2451 = vrot.lane.b32.xlu0 %v2328, 64
    %v2452 = vpop.permute.xlu0 %2451
    %2453 = vrot.lane.b32.xlu0 %v2329, 64
    %v2454 = vpop.permute.xlu0 %2453
    %2455 = vrot.lane.b32.xlu0 %v2330, 64
    %v2456 = vpop.permute.xlu0 %2455
    %2457 = vrot.lane.b32.xlu0 %v2331, 64
    %v2458 = vpop.permute.xlu0 %2457
    %2459 = vrot.lane.b32.xlu0 %v2332, 64
    %v2460 = vpop.permute.xlu0 %2459
    %2461 = vrot.lane.b32.xlu0 %v2333, 64
    %v2462 = vpop.permute.xlu0 %2461
    %2463 = vrot.lane.b32.xlu0 %v2334, 64
    %v2464 = vpop.permute.xlu0 %2463
    %2465 = vrot.lane.b32.xlu0 %v2335, 64
    %v2466 = vpop.permute.xlu0 %2465
    %2467 = vrot.lane.b32.xlu0 %v2336, 64
    %v2468 = vpop.permute.xlu0 %2467
    %2469 = vrot.lane.b32.xlu0 %v2337, 64
    %v2470 = vpop.permute.xlu0 %2469
    %2471 = vrot.lane.b32.xlu0 %v2338, 64
    %v2472 = vpop.permute.xlu0 %2471
    %2473 = vrot.lane.b32.xlu0 %v2339, 64
    %v2474 = vpop.permute.xlu0 %2473
    %2475 = vrot.lane.b32.xlu0 %v2340, 64
    %v2476 = vpop.permute.xlu0 %2475
    %2477 = vrot.lane.b32.xlu0 %v2341, 64
    %v2478 = vpop.permute.xlu0 %2477
    %2479 = vrot.lane.b32.xlu0 %v2342, 64
    %v2480 = vpop.permute.xlu0 %2479
    %v2527 = vsel %vm276, %v2297, %v2390
    %v2528 = vsel %vm276, %v2298, %v2392
    %v2529 = vsel %vm276, %v2299, %v2394
    %v2530 = vsel %vm276, %v2300, %v2396
    %v2531 = vsel %vm276, %v2301, %v2398
    %v2532 = vsel %vm276, %v2302, %v2400
    %v2533 = vsel %vm276, %v2303, %v2402
    %v2534 = vsel %vm276, %v2304, %v2404
    %v2535 = vsel %vm276, %v2305, %v2406
    %v2536 = vsel %vm276, %v2306, %v2408
    %v2537 = vsel %vm276, %v2307, %v2410
    %v2538 = vsel %vm276, %v2308, %v2412
    %v2539 = vsel %vm276, %v2309, %v2414
    %v2540 = vsel %vm276, %v2310, %v2416
    %v2541 = vsel %vm276, %v2311, %v2418
    %v2542 = vsel %vm276, %v2312, %v2420
    %v2543 = vsel %vm276, %v2313, %v2422
    %v2544 = vsel %vm276, %v2314, %v2424
    %v2545 = vsel %vm276, %v2315, %v2426
    %v2546 = vsel %vm276, %v2316, %v2428
    %v2547 = vsel %vm276, %v2317, %v2430
    %v2548 = vsel %vm276, %v2318, %v2432
    %v2549 = vsel %vm276, %v2319, %v2434
    %v2550 = vsel %vm276, %v2320, %v2436
    %v2551 = vsel %vm276, %v2321, %v2438
    %v2552 = vsel %vm276, %v2322, %v2440
    %v2553 = vsel %vm276, %v2323, %v2442
    %v2554 = vsel %vm276, %v2324, %v2444
    %v2555 = vsel %vm276, %v2325, %v2446
    %v2556 = vsel %vm276, %v2326, %v2448
    %v2557 = vsel %vm276, %v2327, %v2450
    %v2558 = vsel %vm276, %v2328, %v2452
    %v2559 = vsel %vm276, %v2329, %v2454
    %v2560 = vsel %vm276, %v2330, %v2456
    %v2561 = vsel %vm276, %v2331, %v2458
    %v2562 = vsel %vm276, %v2332, %v2460
    %v2563 = vsel %vm276, %v2333, %v2462
    %v2564 = vsel %vm276, %v2334, %v2464
    %v2565 = vsel %vm276, %v2335, %v2466
    %v2566 = vsel %vm276, %v2336, %v2468
    %v2567 = vsel %vm276, %v2337, %v2470
    %v2568 = vsel %vm276, %v2338, %v2472
    %v2569 = vsel %vm276, %v2339, %v2474
    %v2570 = vsel %vm276, %v2340, %v2476
    %v2571 = vsel %vm276, %v2341, %v2478
    %v2572 = vsel %vm276, %v2342, %v2480
    %s2573 = scalar_lea.vmem %s1, 512
    %v2574 = vld [vmem:[%s2573] sm:$0xff]
    %v2575 = vld [vmem:[%s2573 + $0x8] sm:$0xff]
    %v2576 = vld [vmem:[%s2573 + $0x10] sm:$0xff]
    %v2577 = vld [vmem:[%s2573 + $0x18] sm:$0xff]
    %v2578 = vld [vmem:[%s2573 + $0x20] sm:$0xff]
    %v2579 = vld [vmem:[%s2573 + $0x28] sm:$0xff]
    %v2580 = vld [vmem:[%s2573 + $0x30] sm:$0xff]
    %v2581 = vld [vmem:[%s2573 + $0x38] sm:$0xff]
    %v2582 = vld [vmem:[%s2573 + $0x40] sm:$0xff]
    %v2583 = vld [vmem:[%s2573 + $0x48] sm:$0xff]
    %v2584 = vld [vmem:[%s2573 + $0x50] sm:$0xff]
    %v2585 = vld [vmem:[%s2573 + $0x58] sm:$0xff]
    %v2586 = vld [vmem:[%s2573 + $0x60] sm:$0xff]
    %v2587 = vld [vmem:[%s2573 + $0x68] sm:$0xff]
    %v2588 = vld [vmem:[%s2573 + $0x70] sm:$0xff]
    %v2589 = vld [vmem:[%s2573 + $0x78] sm:$0xff]
    %2590 = vmatprep.subr.mxu0 0.0
    %2591 = vmatpush1.msra.mxu0 %v2574
    %2592 = vmatprep.subr.mxu0 0.0
    %2593 = vmatpush1.msra.mxu0 %v2575
    %2594 = vmatprep.subr.mxu0 0.0
    %2595 = vmatpush1.msra.mxu0 %v2576
    %2596 = vmatprep.subr.mxu0 0.0
    %2597 = vmatpush1.msra.mxu0 %v2577
    %2598 = vmatprep.subr.mxu0 0.0
    %2599 = vmatpush1.msra.mxu0 %v2578
    %2600 = vmatprep.subr.mxu0 0.0
    %2601 = vmatpush1.msra.mxu0 %v2579
    %2602 = vmatprep.subr.mxu0 0.0
    %2603 = vmatpush1.msra.mxu0 %v2580
    %2604 = vmatprep.subr.mxu0 0.0
    %2605 = vmatpush1.msra.mxu0 %v2581
    %2606 = vmatprep.subr.mxu0 0.0
    %2607 = vmatpush1.msra.mxu0 %v2582
    %2608 = vmatprep.subr.mxu0 0.0
    %2609 = vmatpush1.msra.mxu0 %v2583
    %2610 = vmatprep.subr.mxu0 0.0
    %2611 = vmatpush1.msra.mxu0 %v2584
    %2612 = vmatprep.subr.mxu0 0.0
    %2613 = vmatpush1.msra.mxu0 %v2585
    %2614 = vmatprep.subr.mxu0 0.0
    %2615 = vmatpush1.msra.mxu0 %v2586
    %2616 = vmatprep.subr.mxu0 0.0
    %2617 = vmatpush1.msra.mxu0 %v2587
    %2618 = vmatprep.subr.mxu0 0.0
    %2619 = vmatpush1.msra.mxu0 %v2588
    %2620 = vmatprep.subr.mxu0 0.0
    %2621 = vmatpush1.msra.mxu0 %v2589
    %2622 = vmatprep.subr.mxu0 0.0
    %2623 = vmatpush1.msra.mxu0 0.0
    %2624 = vmatprep.subr.mxu0 0.0
    %2625 = vmatpush1.msra.mxu0 0.0
    %2626 = vmatprep.subr.mxu0 0.0
    %2627 = vmatpush1.msra.mxu0 0.0
    %2628 = vmatprep.subr.mxu0 0.0
    %2629 = vmatpush1.msra.mxu0 0.0
    %2630 = vmatprep.subr.mxu0 0.0
    %2631 = vmatpush1.msra.mxu0 0.0
    %2632 = vmatprep.subr.mxu0 0.0
    %2633 = vmatpush1.msra.mxu0 0.0
    %2634 = vmatprep.subr.mxu0 0.0
    %2635 = vmatpush1.msra.mxu0 0.0
    %2636 = vmatprep.subr.mxu0 0.0
    %2637 = vmatpush1.msra.mxu0 0.0
    %2638 = vmatprep.subr.mxu0 0.0
    %2639 = vmatpush1.msra.mxu0 0.0
    %2640 = vmatprep.subr.mxu0 0.0
    %2641 = vmatpush1.msra.mxu0 0.0
    %2642 = vmatprep.subr.mxu0 0.0
    %2643 = vmatpush1.msra.mxu0 0.0
    %2644 = vmatprep.subr.mxu0 0.0
    %2645 = vmatpush1.msra.mxu0 0.0
    %2646 = vmatprep.subr.mxu0 0.0
    %2647 = vmatpush1.msra.mxu0 0.0
    %2648 = vmatprep.subr.mxu0 0.0
    %2649 = vmatpush1.msra.mxu0 0.0
    %2650 = vmatprep.subr.mxu0 0.0
    %2651 = vmatpush1.msra.mxu0 0.0
    %2652 = vmatprep.subr.mxu0 0.0
    %2653 = vmatpush1.msra.mxu0 0.0
    %2654 = vmatprep.mubr.f32.mxu0 0.0
    %2655 = vmatmul.mubr.f32.gmra.mrb[0].mxu0 %v2527
    %v2656 = vpop.f32.mrb[0].mxu0
    %v2657 = vadd.f32 0.0, %v2656
    %v2658 = vpop.f32.mrb[0].mxu0
    %2659 = vmatprep.mubr.f32.mxu0 0.0
    %2660 = vmatmul.mubr.f32.gmra.mrb[0].mxu0 %v2528
    %v2661 = vpop.f32.mrb[0].mxu0
    %v2662 = vadd.f32 0.0, %v2661
    %v2663 = vpop.f32.mrb[0].mxu0
    %2664 = vmatprep.mubr.f32.mxu0 0.0
    %2665 = vmatmul.mubr.f32.gmra.mrb[0].mxu0 %v2529
    %v2666 = vpop.f32.mrb[0].mxu0
    %v2667 = vadd.f32 0.0, %v2666
    %v2668 = vpop.f32.mrb[0].mxu0
    %2669 = vmatprep.mubr.f32.mxu0 0.0
    %2670 = vmatmul.mubr.f32.gmra.mrb[0].mxu0 %v2530
    %v2671 = vpop.f32.mrb[0].mxu0
    %v2672 = vadd.f32 0.0, %v2671
    %v2673 = vpop.f32.mrb[0].mxu0
    %2674 = vmatprep.mubr.f32.mxu0 0.0
    %2675 = vmatmul.mubr.f32.gmra.mrb[0].mxu0 %v2531
    %v2676 = vpop.f32.mrb[0].mxu0
    %v2677 = vadd.f32 0.0, %v2676
    %v2678 = vpop.f32.mrb[0].mxu0
    %2679 = vmatprep.mubr.f32.mxu0 0.0
    %2680 = vmatmul.mubr.f32.gmra.mrb[0].mxu0 %v2532
    %v2681 = vpop.f32.mrb[0].mxu0
    %v2682 = vadd.f32 0.0, %v2681
    %v2683 = vpop.f32.mrb[0].mxu0
    %2684 = vmatprep.mubr.f32.mxu0 0.0
    %2685 = vmatmul.mubr.f32.gmra.mrb[0].mxu0 %v2533
    %v2686 = vpop.f32.mrb[0].mxu0
    %v2687 = vadd.f32 0.0, %v2686
    %v2688 = vpop.f32.mrb[0].mxu0
    %2689 = vmatprep.mubr.f32.mxu0 0.0
    %2690 = vmatmul.mubr.f32.gmra.mrb[0].mxu0 %v2534
    %v2691 = vpop.f32.mrb[0].mxu0
    %v2692 = vadd.f32 0.0, %v2691
    %v2693 = vpop.f32.mrb[0].mxu0
    %2694 = vmatprep.mubr.f32.mxu0 0.0
    %2695 = vmatmul.mubr.f32.gmra.mrb[0].mxu0 %v2535
    %v2696 = vpop.f32.mrb[0].mxu0
    %v2697 = vadd.f32 0.0, %v2696
    %v2698 = vpop.f32.mrb[0].mxu0
    %2699 = vmatprep.mubr.f32.mxu0 0.0
    %2700 = vmatmul.mubr.f32.gmra.mrb[0].mxu0 %v2536
    %v2701 = vpop.f32.mrb[0].mxu0
    %v2702 = vadd.f32 0.0, %v2701
    %v2703 = vpop.f32.mrb[0].mxu0
    %2704 = vmatprep.mubr.f32.mxu0 0.0
    %2705 = vmatmul.mubr.f32.gmra.mrb[0].mxu0 %v2537
    %v2706 = vpop.f32.mrb[0].mxu0
    %v2707 = vadd.f32 0.0, %v2706
    %v2708 = vpop.f32.mrb[0].mxu0
    %2709 = vmatprep.mubr.f32.mxu0 0.0
    %2710 = vmatmul.mubr.f32.gmra.mrb[0].mxu0 %v2538
    %v2711 = vpop.f32.mrb[0].mxu0
    %v2712 = vadd.f32 0.0, %v2711
    %v2713 = vpop.f32.mrb[0].mxu0
    %2714 = vmatprep.mubr.f32.mxu0 0.0
    %2715 = vmatmul.mubr.f32.gmra.mrb[0].mxu0 %v2539
    %v2716 = vpop.f32.mrb[0].mxu0
    %v2717 = vadd.f32 0.0, %v2716
    %v2718 = vpop.f32.mrb[0].mxu0
    %2719 = vmatprep.mubr.f32.mxu0 0.0
    %2720 = vmatmul.mubr.f32.gmra.mrb[0].mxu0 %v2540
    %v2721 = vpop.f32.mrb[0].mxu0
    %v2722 = vadd.f32 0.0, %v2721
    %v2723 = vpop.f32.mrb[0].mxu0
    %2724 = vmatprep.mubr.f32.mxu0 0.0
    %2725 = vmatmul.mubr.f32.gmra.mrb[0].mxu0 %v2541
    %v2726 = vpop.f32.mrb[0].mxu0
    %v2727 = vadd.f32 0.0, %v2726
    %v2728 = vpop.f32.mrb[0].mxu0
    %2729 = vmatprep.mubr.f32.mxu0 0.0
    %2730 = vmatmul.mubr.f32.gmra.mrb[0].mxu0 %v2542
    %v2731 = vpop.f32.mrb[0].mxu0
    %v2732 = vadd.f32 0.0, %v2731
    %v2733 = vpop.f32.mrb[0].mxu0
    %2734 = vmatprep.mubr.f32.mxu0 0.0
    %2735 = vmatmul.mubr.f32.gmra.mrb[0].mxu0 %v2543
    %v2736 = vpop.f32.mrb[0].mxu0
    %v2737 = vadd.f32 0.0, %v2736
    %v2738 = vpop.f32.mrb[0].mxu0
    %2739 = vmatprep.mubr.f32.mxu0 0.0
    %2740 = vmatmul.mubr.f32.gmra.mrb[0].mxu0 %v2544
    %v2741 = vpop.f32.mrb[0].mxu0
    %v2742 = vadd.f32 0.0, %v2741
    %v2743 = vpop.f32.mrb[0].mxu0
    %2744 = vmatprep.mubr.f32.mxu0 0.0
    %2745 = vmatmul.mubr.f32.gmra.mrb[0].mxu0 %v2545
    %v2746 = vpop.f32.mrb[0].mxu0
    %v2747 = vadd.f32 0.0, %v2746
    %v2748 = vpop.f32.mrb[0].mxu0
    %2749 = vmatprep.mubr.f32.mxu0 0.0
    %2750 = vmatmul.mubr.f32.gmra.mrb[0].mxu0 %v2546
    %v2751 = vpop.f32.mrb[0].mxu0
    %v2752 = vadd.f32 0.0, %v2751
    %v2753 = vpop.f32.mrb[0].mxu0
    %2754 = vmatprep.mubr.f32.mxu0 0.0
    %2755 = vmatmul.mubr.f32.gmra.mrb[0].mxu0 %v2547
    %v2756 = vpop.f32.mrb[0].mxu0
    %v2757 = vadd.f32 0.0, %v2756
    %v2758 = vpop.f32.mrb[0].mxu0
    %2759 = vmatprep.mubr.f32.mxu0 0.0
    %2760 = vmatmul.mubr.f32.gmra.mrb[0].mxu0 %v2548
    %v2761 = vpop.f32.mrb[0].mxu0
    %v2762 = vadd.f32 0.0, %v2761
    %v2763 = vpop.f32.mrb[0].mxu0
    %2764 = vmatprep.mubr.f32.mxu0 0.0
    %2765 = vmatmul.mubr.f32.gmra.mrb[0].mxu0 %v2549
    %v2766 = vpop.f32.mrb[0].mxu0
    %v2767 = vadd.f32 0.0, %v2766
    %v2768 = vpop.f32.mrb[0].mxu0
    %2769 = vmatprep.mubr.f32.mxu0 0.0
    %2770 = vmatmul.mubr.f32.gmra.mrb[0].mxu0 %v2550
    %v2771 = vpop.f32.mrb[0].mxu0
    %v2772 = vadd.f32 0.0, %v2771
    %v2773 = vpop.f32.mrb[0].mxu0
    %2774 = vmatprep.mubr.f32.mxu0 0.0
    %2775 = vmatmul.mubr.f32.gmra.mrb[0].mxu0 %v2551
    %v2776 = vpop.f32.mrb[0].mxu0
    %v2777 = vadd.f32 0.0, %v2776
    %v2778 = vpop.f32.mrb[0].mxu0
    %2779 = vmatprep.mubr.f32.mxu0 0.0
    %2780 = vmatmul.mubr.f32.gmra.mrb[0].mxu0 %v2552
    %v2781 = vpop.f32.mrb[0].mxu0
    %v2782 = vadd.f32 0.0, %v2781
    %v2783 = vpop.f32.mrb[0].mxu0
    %2784 = vmatprep.mubr.f32.mxu0 0.0
    %2785 = vmatmul.mubr.f32.gmra.mrb[0].mxu0 %v2553
    %v2786 = vpop.f32.mrb[0].mxu0
    %v2787 = vadd.f32 0.0, %v2786
    %v2788 = vpop.f32.mrb[0].mxu0
    %2789 = vmatprep.mubr.f32.mxu0 0.0
    %2790 = vmatmul.mubr.f32.gmra.mrb[0].mxu0 %v2554
    %v2791 = vpop.f32.mrb[0].mxu0
    %v2792 = vadd.f32 0.0, %v2791
    %v2793 = vpop.f32.mrb[0].mxu0
    %2794 = vmatprep.mubr.f32.mxu0 0.0
    %2795 = vmatmul.mubr.f32.gmra.mrb[0].mxu0 %v2555
    %v2796 = vpop.f32.mrb[0].mxu0
    %v2797 = vadd.f32 0.0, %v2796
    %v2798 = vpop.f32.mrb[0].mxu0
    %2799 = vmatprep.mubr.f32.mxu0 0.0
    %2800 = vmatmul.mubr.f32.gmra.mrb[0].mxu0 %v2556
    %v2801 = vpop.f32.mrb[0].mxu0
    %v2802 = vadd.f32 0.0, %v2801
    %v2803 = vpop.f32.mrb[0].mxu0
    %2804 = vmatprep.mubr.f32.mxu0 0.0
    %2805 = vmatmul.mubr.f32.gmra.mrb[0].mxu0 %v2557
    %v2806 = vpop.f32.mrb[0].mxu0
    %v2807 = vadd.f32 0.0, %v2806
    %v2808 = vpop.f32.mrb[0].mxu0
    %2809 = vmatprep.mubr.f32.mxu0 0.0
    %2810 = vmatmul.mubr.f32.gmra.mrb[0].mxu0 %v2558
    %v2811 = vpop.f32.mrb[0].mxu0
    %v2812 = vadd.f32 0.0, %v2811
    %v2813 = vpop.f32.mrb[0].mxu0
    %2814 = vmatprep.mubr.f32.mxu0 0.0
    %2815 = vmatmul.mubr.f32.gmra.mrb[0].mxu0 %v2559
    %v2816 = vpop.f32.mrb[0].mxu0
    %v2817 = vadd.f32 0.0, %v2816
    %v2818 = vpop.f32.mrb[0].mxu0
    %2819 = vmatprep.mubr.f32.mxu0 0.0
    %2820 = vmatmul.mubr.f32.gmra.mrb[0].mxu0 %v2560
    %v2821 = vpop.f32.mrb[0].mxu0
    %v2822 = vadd.f32 0.0, %v2821
    %v2823 = vpop.f32.mrb[0].mxu0
    %2824 = vmatprep.mubr.f32.mxu0 0.0
    %2825 = vmatmul.mubr.f32.gmra.mrb[0].mxu0 %v2561
    %v2826 = vpop.f32.mrb[0].mxu0
    %v2827 = vadd.f32 0.0, %v2826
    %v2828 = vpop.f32.mrb[0].mxu0
    %2829 = vmatprep.mubr.f32.mxu0 0.0
    %2830 = vmatmul.mubr.f32.gmra.mrb[0].mxu0 %v2562
    %v2831 = vpop.f32.mrb[0].mxu0
    %v2832 = vadd.f32 0.0, %v2831
    %v2833 = vpop.f32.mrb[0].mxu0
    %2834 = vmatprep.mubr.f32.mxu0 0.0
    %2835 = vmatmul.mubr.f32.gmra.mrb[0].mxu0 %v2563
    %v2836 = vpop.f32.mrb[0].mxu0
    %v2837 = vadd.f32 0.0, %v2836
    %v2838 = vpop.f32.mrb[0].mxu0
    %2839 = vmatprep.mubr.f32.mxu0 0.0
    %2840 = vmatmul.mubr.f32.gmra.mrb[0].mxu0 %v2564
    %v2841 = vpop.f32.mrb[0].mxu0
    %v2842 = vadd.f32 0.0, %v2841
    %v2843 = vpop.f32.mrb[0].mxu0
    %2844 = vmatprep.mubr.f32.mxu0 0.0
    %2845 = vmatmul.mubr.f32.gmra.mrb[0].mxu0 %v2565
    %v2846 = vpop.f32.mrb[0].mxu0
    %v2847 = vadd.f32 0.0, %v2846
    %v2848 = vpop.f32.mrb[0].mxu0
    %2849 = vmatprep.mubr.f32.mxu0 0.0
    %2850 = vmatmul.mubr.f32.gmra.mrb[0].mxu0 %v2566
    %v2851 = vpop.f32.mrb[0].mxu0
    %v2852 = vadd.f32 0.0, %v2851
    %v2853 = vpop.f32.mrb[0].mxu0
    %2854 = vmatprep.mubr.f32.mxu0 0.0
    %2855 = vmatmul.mubr.f32.gmra.mrb[0].mxu0 %v2567
    %v2856 = vpop.f32.mrb[0].mxu0
    %v2857 = vadd.f32 0.0, %v2856
    %v2858 = vpop.f32.mrb[0].mxu0
    %2859 = vmatprep.mubr.f32.mxu0 0.0
    %2860 = vmatmul.mubr.f32.gmra.mrb[0].mxu0 %v2568
    %v2861 = vpop.f32.mrb[0].mxu0
    %v2862 = vadd.f32 0.0, %v2861
    %v2863 = vpop.f32.mrb[0].mxu0
    %2864 = vmatprep.mubr.f32.mxu0 0.0
    %2865 = vmatmul.mubr.f32.gmra.mrb[0].mxu0 %v2569
    %v2866 = vpop.f32.mrb[0].mxu0
    %v2867 = vadd.f32 0.0, %v2866
    %v2868 = vpop.f32.mrb[0].mxu0
    %2869 = vmatprep.mubr.f32.mxu0 0.0
    %2870 = vmatmul.mubr.f32.gmra.mrb[0].mxu0 %v2570
    %v2871 = vpop.f32.mrb[0].mxu0
    %v2872 = vadd.f32 0.0, %v2871
    %v2873 = vpop.f32.mrb[0].mxu0
    %2874 = vmatprep.mubr.f32.mxu0 0.0
    %2875 = vmatmul.mubr.f32.gmra.mrb[0].mxu0 %v2571
    %v2876 = vpop.f32.mrb[0].mxu0
    %v2877 = vadd.f32 0.0, %v2876
    %v2878 = vpop.f32.mrb[0].mxu0
    %2879 = vmatprep.mubr.f32.mxu0 0.0
    %2880 = vmatmul.mubr.f32.gmra.mrb[0].mxu0 %v2572
    %v2881 = vpop.f32.mrb[0].mxu0
    %v2882 = vadd.f32 0.0, %v2881
    %v2883 = vpop.f32.mrb[0].mxu0
    %2884 = vdwg.mxu0
    %v2885 = vadd.f32 %v2251, %v2657
    %v2886 = vadd.f32 %v2252, %v2662
    %v2887 = vadd.f32 %v2253, %v2667
    %v2888 = vadd.f32 %v2254, %v2672
    %v2889 = vadd.f32 %v2255, %v2677
    %v2890 = vadd.f32 %v2256, %v2682
    %v2891 = vadd.f32 %v2257, %v2687
    %v2892 = vadd.f32 %v2258, %v2692
    %v2893 = vadd.f32 %v2259, %v2697
    %v2894 = vadd.f32 %v2260, %v2702
    %v2895 = vadd.f32 %v2261, %v2707
    %v2896 = vadd.f32 %v2262, %v2712
    %v2897 = vadd.f32 %v2263, %v2717
    %v2898 = vadd.f32 %v2264, %v2722
    %v2899 = vadd.f32 %v2265, %v2727
    %v2900 = vadd.f32 %v2266, %v2732
    %v2901 = vadd.f32 %v2267, %v2737
    %v2902 = vadd.f32 %v2268, %v2742
    %v2903 = vadd.f32 %v2269, %v2747
    %v2904 = vadd.f32 %v2270, %v2752
    %v2905 = vadd.f32 %v2271, %v2757
    %v2906 = vadd.f32 %v2272, %v2762
    %v2907 = vadd.f32 %v2273, %v2767
    %v2908 = vadd.f32 %v2274, %v2772
    %v2909 = vadd.f32 %v2275, %v2777
    %v2910 = vadd.f32 %v2276, %v2782
    %v2911 = vadd.f32 %v2277, %v2787
    %v2912 = vadd.f32 %v2278, %v2792
    %v2913 = vadd.f32 %v2279, %v2797
    %v2914 = vadd.f32 %v2280, %v2802
    %v2915 = vadd.f32 %v2281, %v2807
    %v2916 = vadd.f32 %v2282, %v2812
    %v2917 = vadd.f32 %v2283, %v2817
    %v2918 = vadd.f32 %v2284, %v2822
    %v2919 = vadd.f32 %v2285, %v2827
    %v2920 = vadd.f32 %v2286, %v2832
    %v2921 = vadd.f32 %v2287, %v2837
    %v2922 = vadd.f32 %v2288, %v2842
    %v2923 = vadd.f32 %v2289, %v2847
    %v2924 = vadd.f32 %v2290, %v2852
    %v2925 = vadd.f32 %v2291, %v2857
    %v2926 = vadd.f32 %v2292, %v2862
    %v2927 = vadd.f32 %v2293, %v2867
    %v2928 = vadd.f32 %v2294, %v2872
    %v2929 = vadd.f32 %v2295, %v2877
    %v2930 = vadd.f32 %v2296, %v2882
    %v2931 = vld [vmem:[%s2] sm:$0x1]
    %v2933 = vlaneseq
    %v2934 = vshrl.u32 %v2933, 7
    %v2935 = vsub.s32 0, %v2934
    %v2936 = vrot.slane %v2931, %v2935
    %v2938 = vmul.f32 %v2885, %v2936
    %v2939 = vmul.f32 %v2886, %v2936
    %v2940 = vmul.f32 %v2887, %v2936
    %v2941 = vmul.f32 %v2888, %v2936
    %v2942 = vmul.f32 %v2889, %v2936
    %v2943 = vmul.f32 %v2890, %v2936
    %v2944 = vmul.f32 %v2891, %v2936
    %v2945 = vmul.f32 %v2892, %v2936
    %v2946 = vmul.f32 %v2893, %v2936
    %v2947 = vmul.f32 %v2894, %v2936
    %v2948 = vmul.f32 %v2895, %v2936
    %v2949 = vmul.f32 %v2896, %v2936
    %v2950 = vmul.f32 %v2897, %v2936
    %v2951 = vmul.f32 %v2898, %v2936
    %v2952 = vmul.f32 %v2899, %v2936
    %v2953 = vmul.f32 %v2900, %v2936
    %v2954 = vmul.f32 %v2901, %v2936
    %v2955 = vmul.f32 %v2902, %v2936
    %v2956 = vmul.f32 %v2903, %v2936
    %v2957 = vmul.f32 %v2904, %v2936
    %v2958 = vmul.f32 %v2905, %v2936
    %v2959 = vmul.f32 %v2906, %v2936
    %v2960 = vmul.f32 %v2907, %v2936
    %v2961 = vmul.f32 %v2908, %v2936
    %v2962 = vmul.f32 %v2909, %v2936
    %v2963 = vmul.f32 %v2910, %v2936
    %v2964 = vmul.f32 %v2911, %v2936
    %v2965 = vmul.f32 %v2912, %v2936
    %v2966 = vmul.f32 %v2913, %v2936
    %v2967 = vmul.f32 %v2914, %v2936
    %v2968 = vmul.f32 %v2915, %v2936
    %v2969 = vmul.f32 %v2916, %v2936
    %v2970 = vmul.f32 %v2917, %v2936
    %v2971 = vmul.f32 %v2918, %v2936
    %v2972 = vmul.f32 %v2919, %v2936
    %v2973 = vmul.f32 %v2920, %v2936
    %v2974 = vmul.f32 %v2921, %v2936
    %v2975 = vmul.f32 %v2922, %v2936
    %v2976 = vmul.f32 %v2923, %v2936
    %v2977 = vmul.f32 %v2924, %v2936
    %v2978 = vmul.f32 %v2925, %v2936
    %v2979 = vmul.f32 %v2926, %v2936
    %v2980 = vmul.f32 %v2927, %v2936
    %v2981 = vmul.f32 %v2928, %v2936
    %v2982 = vmul.f32 %v2929, %v2936
    %v2983 = vmul.f32 %v2930, %v2936
    %v2984 = vld [vmem:[%s3] sm:$0x1]
    %v2986 = vlaneseq
    %v2987 = vshrl.u32 %v2986, 7
    %v2988 = vsub.s32 0, %v2987
    %v2989 = vrot.slane %v2984, %v2988
    %v2991 = vadd.f32 %v2938, %v2989
    %v2992 = vadd.f32 %v2939, %v2989
    %v2993 = vadd.f32 %v2940, %v2989
    %v2994 = vadd.f32 %v2941, %v2989
    %v2995 = vadd.f32 %v2942, %v2989
    %v2996 = vadd.f32 %v2943, %v2989
    %v2997 = vadd.f32 %v2944, %v2989
    %v2998 = vadd.f32 %v2945, %v2989
    %v2999 = vadd.f32 %v2946, %v2989
    %v3000 = vadd.f32 %v2947, %v2989
    %v3001 = vadd.f32 %v2948, %v2989
    %v3002 = vadd.f32 %v2949, %v2989
    %v3003 = vadd.f32 %v2950, %v2989
    %v3004 = vadd.f32 %v2951, %v2989
    %v3005 = vadd.f32 %v2952, %v2989
    %v3006 = vadd.f32 %v2953, %v2989
    %v3007 = vadd.f32 %v2954, %v2989
    %v3008 = vadd.f32 %v2955, %v2989
    %v3009 = vadd.f32 %v2956, %v2989
    %v3010 = vadd.f32 %v2957, %v2989
    %v3011 = vadd.f32 %v2958, %v2989
    %v3012 = vadd.f32 %v2959, %v2989
    %v3013 = vadd.f32 %v2960, %v2989
    %v3014 = vadd.f32 %v2961, %v2989
    %v3015 = vadd.f32 %v2962, %v2989
    %v3016 = vadd.f32 %v2963, %v2989
    %v3017 = vadd.f32 %v2964, %v2989
    %v3018 = vadd.f32 %v2965, %v2989
    %v3019 = vadd.f32 %v2966, %v2989
    %v3020 = vadd.f32 %v2967, %v2989
    %v3021 = vadd.f32 %v2968, %v2989
    %v3022 = vadd.f32 %v2969, %v2989
    %v3023 = vadd.f32 %v2970, %v2989
    %v3024 = vadd.f32 %v2971, %v2989
    %v3025 = vadd.f32 %v2972, %v2989
    %v3026 = vadd.f32 %v2973, %v2989
    %v3027 = vadd.f32 %v2974, %v2989
    %v3028 = vadd.f32 %v2975, %v2989
    %v3029 = vadd.f32 %v2976, %v2989
    %v3030 = vadd.f32 %v2977, %v2989
    %v3031 = vadd.f32 %v2978, %v2989
    %v3032 = vadd.f32 %v2979, %v2989
    %v3033 = vadd.f32 %v2980, %v2989
    %v3034 = vadd.f32 %v2981, %v2989
    %v3035 = vadd.f32 %v2982, %v2989
    %v3036 = vadd.f32 %v2983, %v2989
    %vm3037 = vcmp.gt.f32.partialorder %v2991, 0.0
    %vm3038 = vcmp.gt.f32.partialorder %v2992, 0.0
    %vm3039 = vcmp.gt.f32.partialorder %v2993, 0.0
    %vm3040 = vcmp.gt.f32.partialorder %v2994, 0.0
    %vm3041 = vcmp.gt.f32.partialorder %v2995, 0.0
    %vm3042 = vcmp.gt.f32.partialorder %v2996, 0.0
    %vm3043 = vcmp.gt.f32.partialorder %v2997, 0.0
    %vm3044 = vcmp.gt.f32.partialorder %v2998, 0.0
    %vm3045 = vcmp.gt.f32.partialorder %v2999, 0.0
    %vm3046 = vcmp.gt.f32.partialorder %v3000, 0.0
    %vm3047 = vcmp.gt.f32.partialorder %v3001, 0.0
    %vm3048 = vcmp.gt.f32.partialorder %v3002, 0.0
    %vm3049 = vcmp.gt.f32.partialorder %v3003, 0.0
    %vm3050 = vcmp.gt.f32.partialorder %v3004, 0.0
    %vm3051 = vcmp.gt.f32.partialorder %v3005, 0.0
    %vm3052 = vcmp.gt.f32.partialorder %v3006, 0.0
    %vm3053 = vcmp.gt.f32.partialorder %v3007, 0.0
    %vm3054 = vcmp.gt.f32.partialorder %v3008, 0.0
    %vm3055 = vcmp.gt.f32.partialorder %v3009, 0.0
    %vm3056 = vcmp.gt.f32.partialorder %v3010, 0.0
    %vm3057 = vcmp.gt.f32.partialorder %v3011, 0.0
    %vm3058 = vcmp.gt.f32.partialorder %v3012, 0.0
    %vm3059 = vcmp.gt.f32.partialorder %v3013, 0.0
    %vm3060 = vcmp.gt.f32.partialorder %v3014, 0.0
    %vm3061 = vcmp.gt.f32.partialorder %v3015, 0.0
    %vm3062 = vcmp.gt.f32.partialorder %v3016, 0.0
    %vm3063 = vcmp.gt.f32.partialorder %v3017, 0.0
    %vm3064 = vcmp.gt.f32.partialorder %v3018, 0.0
    %vm3065 = vcmp.gt.f32.partialorder %v3019, 0.0
    %vm3066 = vcmp.gt.f32.partialorder %v3020, 0.0
    %vm3067 = vcmp.gt.f32.partialorder %v3021, 0.0
    %vm3068 = vcmp.gt.f32.partialorder %v3022, 0.0
    %vm3069 = vcmp.gt.f32.partialorder %v3023, 0.0
    %vm3070 = vcmp.gt.f32.partialorder %v3024, 0.0
    %vm3071 = vcmp.gt.f32.partialorder %v3025, 0.0
    %vm3072 = vcmp.gt.f32.partialorder %v3026, 0.0
    %vm3073 = vcmp.gt.f32.partialorder %v3027, 0.0
    %vm3074 = vcmp.gt.f32.partialorder %v3028, 0.0
    %vm3075 = vcmp.gt.f32.partialorder %v3029, 0.0
    %vm3076 = vcmp.gt.f32.partialorder %v3030, 0.0
    %vm3077 = vcmp.gt.f32.partialorder %v3031, 0.0
    %vm3078 = vcmp.gt.f32.partialorder %v3032, 0.0
    %vm3079 = vcmp.gt.f32.partialorder %v3033, 0.0
    %vm3080 = vcmp.gt.f32.partialorder %v3034, 0.0
    %vm3081 = vcmp.gt.f32.partialorder %v3035, 0.0
    %vm3082 = vcmp.gt.f32.partialorder %v3036, 0.0
    %v3083 = vmul.f32 %v2991, 0.1
    %v3084 = vmul.f32 %v2992, 0.1
    %v3085 = vmul.f32 %v2993, 0.1
    %v3086 = vmul.f32 %v2994, 0.1
    %v3087 = vmul.f32 %v2995, 0.1
    %v3088 = vmul.f32 %v2996, 0.1
    %v3089 = vmul.f32 %v2997, 0.1
    %v3090 = vmul.f32 %v2998, 0.1
    %v3091 = vmul.f32 %v2999, 0.1
    %v3092 = vmul.f32 %v3000, 0.1
    %v3093 = vmul.f32 %v3001, 0.1
    %v3094 = vmul.f32 %v3002, 0.1
    %v3095 = vmul.f32 %v3003, 0.1
    %v3096 = vmul.f32 %v3004, 0.1
    %v3097 = vmul.f32 %v3005, 0.1
    %v3098 = vmul.f32 %v3006, 0.1
    %v3099 = vmul.f32 %v3007, 0.1
    %v3100 = vmul.f32 %v3008, 0.1
    %v3101 = vmul.f32 %v3009, 0.1
    %v3102 = vmul.f32 %v3010, 0.1
    %v3103 = vmul.f32 %v3011, 0.1
    %v3104 = vmul.f32 %v3012, 0.1
    %v3105 = vmul.f32 %v3013, 0.1
    %v3106 = vmul.f32 %v3014, 0.1
    %v3107 = vmul.f32 %v3015, 0.1
    %v3108 = vmul.f32 %v3016, 0.1
    %v3109 = vmul.f32 %v3017, 0.1
    %v3110 = vmul.f32 %v3018, 0.1
    %v3111 = vmul.f32 %v3019, 0.1
    %v3112 = vmul.f32 %v3020, 0.1
    %v3113 = vmul.f32 %v3021, 0.1
    %v3114 = vmul.f32 %v3022, 0.1
    %v3115 = vmul.f32 %v3023, 0.1
    %v3116 = vmul.f32 %v3024, 0.1
    %v3117 = vmul.f32 %v3025, 0.1
    %v3118 = vmul.f32 %v3026, 0.1
    %v3119 = vmul.f32 %v3027, 0.1
    %v3120 = vmul.f32 %v3028, 0.1
    %v3121 = vmul.f32 %v3029, 0.1
    %v3122 = vmul.f32 %v3030, 0.1
    %v3123 = vmul.f32 %v3031, 0.1
    %v3124 = vmul.f32 %v3032, 0.1
    %v3125 = vmul.f32 %v3033, 0.1
    %v3126 = vmul.f32 %v3034, 0.1
    %v3127 = vmul.f32 %v3035, 0.1
    %v3128 = vmul.f32 %v3036, 0.1
    %v3129 = vsel %vm3037, %v2991, %v3083
    %v3130 = vsel %vm3038, %v2992, %v3084
    %v3131 = vsel %vm3039, %v2993, %v3085
    %v3132 = vsel %vm3040, %v2994, %v3086
    %v3133 = vsel %vm3041, %v2995, %v3087
    %v3134 = vsel %vm3042, %v2996, %v3088
    %v3135 = vsel %vm3043, %v2997, %v3089
    %v3136 = vsel %vm3044, %v2998, %v3090
    %v3137 = vsel %vm3045, %v2999, %v3091
    %v3138 = vsel %vm3046, %v3000, %v3092
    %v3139 = vsel %vm3047, %v3001, %v3093
    %v3140 = vsel %vm3048, %v3002, %v3094
    %v3141 = vsel %vm3049, %v3003, %v3095
    %v3142 = vsel %vm3050, %v3004, %v3096
    %v3143 = vsel %vm3051, %v3005, %v3097
    %v3144 = vsel %vm3052, %v3006, %v3098
    %v3145 = vsel %vm3053, %v3007, %v3099
    %v3146 = vsel %vm3054, %v3008, %v3100
    %v3147 = vsel %vm3055, %v3009, %v3101
    %v3148 = vsel %vm3056, %v3010, %v3102
    %v3149 = vsel %vm3057, %v3011, %v3103
    %v3150 = vsel %vm3058, %v3012, %v3104
    %v3151 = vsel %vm3059, %v3013, %v3105
    %v3152 = vsel %vm3060, %v3014, %v3106
    %v3153 = vsel %vm3061, %v3015, %v3107
    %v3154 = vsel %vm3062, %v3016, %v3108
    %v3155 = vsel %vm3063, %v3017, %v3109
    %v3156 = vsel %vm3064, %v3018, %v3110
    %v3157 = vsel %vm3065, %v3019, %v3111
    %v3158 = vsel %vm3066, %v3020, %v3112
    %v3159 = vsel %vm3067, %v3021, %v3113
    %v3160 = vsel %vm3068, %v3022, %v3114
    %v3161 = vsel %vm3069, %v3023, %v3115
    %v3162 = vsel %vm3070, %v3024, %v3116
    %v3163 = vsel %vm3071, %v3025, %v3117
    %v3164 = vsel %vm3072, %v3026, %v3118
    %v3165 = vsel %vm3073, %v3027, %v3119
    %v3166 = vsel %vm3074, %v3028, %v3120
    %v3167 = vsel %vm3075, %v3029, %v3121
    %v3168 = vsel %vm3076, %v3030, %v3122
    %v3169 = vsel %vm3077, %v3031, %v3123
    %v3170 = vsel %vm3078, %v3032, %v3124
    %v3171 = vsel %vm3079, %v3033, %v3125
    %v3172 = vsel %vm3080, %v3034, %v3126
    %v3173 = vsel %vm3081, %v3035, %v3127
    %v3174 = vsel %vm3082, %v3036, %v3128
    %3203 = vrot.lane.b32.xlu0 %v3130, 64
    %v3204 = vpop.permute.xlu0 %3203
    %3205 = vrot.lane.b32.xlu0 %v3131, 64
    %v3206 = vpop.permute.xlu0 %3205
    %3207 = vrot.lane.b32.xlu0 %v3132, 64
    %v3208 = vpop.permute.xlu0 %3207
    %3209 = vrot.lane.b32.xlu0 %v3133, 64
    %v3210 = vpop.permute.xlu0 %3209
    %3211 = vrot.lane.b32.xlu0 %v3134, 64
    %v3212 = vpop.permute.xlu0 %3211
    %3213 = vrot.lane.b32.xlu0 %v3135, 64
    %v3214 = vpop.permute.xlu0 %3213
    %3215 = vrot.lane.b32.xlu0 %v3136, 64
    %v3216 = vpop.permute.xlu0 %3215
    %3217 = vrot.lane.b32.xlu0 %v3137, 64
    %v3218 = vpop.permute.xlu0 %3217
    %3219 = vrot.lane.b32.xlu0 %v3138, 64
    %v3220 = vpop.permute.xlu0 %3219
    %3221 = vrot.lane.b32.xlu0 %v3139, 64
    %v3222 = vpop.permute.xlu0 %3221
    %3223 = vrot.lane.b32.xlu0 %v3140, 64
    %v3224 = vpop.permute.xlu0 %3223
    %3225 = vrot.lane.b32.xlu0 %v3141, 64
    %v3226 = vpop.permute.xlu0 %3225
    %3227 = vrot.lane.b32.xlu0 %v3142, 64
    %v3228 = vpop.permute.xlu0 %3227
    %3229 = vrot.lane.b32.xlu0 %v3143, 64
    %v3230 = vpop.permute.xlu0 %3229
    %3231 = vrot.lane.b32.xlu0 %v3144, 64
    %v3232 = vpop.permute.xlu0 %3231
    %3233 = vrot.lane.b32.xlu0 %v3145, 64
    %v3234 = vpop.permute.xlu0 %3233
    %3235 = vrot.lane.b32.xlu0 %v3146, 64
    %v3236 = vpop.permute.xlu0 %3235
    %3237 = vrot.lane.b32.xlu0 %v3147, 64
    %v3238 = vpop.permute.xlu0 %3237
    %3239 = vrot.lane.b32.xlu0 %v3148, 64
    %v3240 = vpop.permute.xlu0 %3239
    %3241 = vrot.lane.b32.xlu0 %v3149, 64
    %v3242 = vpop.permute.xlu0 %3241
    %3243 = vrot.lane.b32.xlu0 %v3150, 64
    %v3244 = vpop.permute.xlu0 %3243
    %3245 = vrot.lane.b32.xlu0 %v3151, 64
    %v3246 = vpop.permute.xlu0 %3245
    %3247 = vrot.lane.b32.xlu0 %v3152, 64
    %v3248 = vpop.permute.xlu0 %3247
    %3249 = vrot.lane.b32.xlu0 %v3153, 64
    %v3250 = vpop.permute.xlu0 %3249
    %3251 = vrot.lane.b32.xlu0 %v3154, 64
    %v3252 = vpop.permute.xlu0 %3251
    %3253 = vrot.lane.b32.xlu0 %v3155, 64
    %v3254 = vpop.permute.xlu0 %3253
    %3255 = vrot.lane.b32.xlu0 %v3156, 64
    %v3256 = vpop.permute.xlu0 %3255
    %3257 = vrot.lane.b32.xlu0 %v3157, 64
    %v3258 = vpop.permute.xlu0 %3257
    %v3287 = vsel %vm276, %v3129, %v3204
    %v3288 = vsel %vm276, %v3130, %v3206
    %v3289 = vsel %vm276, %v3131, %v3208
    %v3290 = vsel %vm276, %v3132, %v3210
    %v3291 = vsel %vm276, %v3133, %v3212
    %v3292 = vsel %vm276, %v3134, %v3214
    %v3293 = vsel %vm276, %v3135, %v3216
    %v3294 = vsel %vm276, %v3136, %v3218
    %v3295 = vsel %vm276, %v3137, %v3220
    %v3296 = vsel %vm276, %v3138, %v3222
    %v3297 = vsel %vm276, %v3139, %v3224
    %v3298 = vsel %vm276, %v3140, %v3226
    %v3299 = vsel %vm276, %v3141, %v3228
    %v3300 = vsel %vm276, %v3142, %v3230
    %v3301 = vsel %vm276, %v3143, %v3232
    %v3302 = vsel %vm276, %v3144, %v3234
    %v3303 = vsel %vm276, %v3145, %v3236
    %v3304 = vsel %vm276, %v3146, %v3238
    %v3305 = vsel %vm276, %v3147, %v3240
    %v3306 = vsel %vm276, %v3148, %v3242
    %v3307 = vsel %vm276, %v3149, %v3244
    %v3308 = vsel %vm276, %v3150, %v3246
    %v3309 = vsel %vm276, %v3151, %v3248
    %v3310 = vsel %vm276, %v3152, %v3250
    %v3311 = vsel %vm276, %v3153, %v3252
    %v3312 = vsel %vm276, %v3154, %v3254
    %v3313 = vsel %vm276, %v3155, %v3256
    %v3314 = vsel %vm276, %v3156, %v3258
    %v3315 = vld [vmem:[%s4] sm:$0xff]
    %v3316 = vld [vmem:[%s4 + $0x8] sm:$0xff]
    %v3317 = vld [vmem:[%s4 + $0x10] sm:$0xff]
    %v3318 = vld [vmem:[%s4 + $0x18] sm:$0xff]
    %v3319 = vld [vmem:[%s4 + $0x20] sm:$0xff]
    %v3320 = vld [vmem:[%s4 + $0x28] sm:$0xff]
    %v3321 = vld [vmem:[%s4 + $0x30] sm:$0xff]
    %v3322 = vld [vmem:[%s4 + $0x38] sm:$0xff]
    %v3323 = vld [vmem:[%s4 + $0x40] sm:$0xff]
    %v3324 = vld [vmem:[%s4 + $0x48] sm:$0xff]
    %v3325 = vld [vmem:[%s4 + $0x50] sm:$0xff]
    %v3326 = vld [vmem:[%s4 + $0x58] sm:$0xff]
    %v3327 = vld [vmem:[%s4 + $0x60] sm:$0xff]
    %v3328 = vld [vmem:[%s4 + $0x68] sm:$0xff]
    %v3329 = vld [vmem:[%s4 + $0x70] sm:$0xff]
    %v3330 = vld [vmem:[%s4 + $0x78] sm:$0xff]
    %3338 = vrot.lane.b32.xlu0 %v3158, 64
    %v3339 = vpop.permute.xlu0 %3338
    %3340 = vrot.lane.b32.xlu0 %v3159, 64
    %v3341 = vpop.permute.xlu0 %3340
    %3342 = vrot.lane.b32.xlu0 %v3160, 64
    %v3343 = vpop.permute.xlu0 %3342
    %3344 = vrot.lane.b32.xlu0 %v3161, 64
    %v3345 = vpop.permute.xlu0 %3344
    %3346 = vrot.lane.b32.xlu0 %v3162, 64
    %v3347 = vpop.permute.xlu0 %3346
    %3348 = vrot.lane.b32.xlu0 %v3163, 64
    %v3349 = vpop.permute.xlu0 %3348
    %3350 = vrot.lane.b32.xlu0 %v3164, 64
    %v3351 = vpop.permute.xlu0 %3350
    %v3359 = vsel %vm276, %v3131, %v3218
    %v3360 = vsel %vm276, %v3132, %v3220
    %v3361 = vsel %vm276, %v3133, %v3222
    %v3362 = vsel %vm276, %v3134, %v3224
    %v3363 = vsel %vm276, %v3135, %v3226
    %v3364 = vsel %vm276, %v3136, %v3228
    %v3365 = vsel %vm276, %v3137, %v3230
    %v3366 = vsel %vm276, %v3138, %v3232
    %v3367 = vsel %vm276, %v3139, %v3234
    %v3368 = vsel %vm276, %v3140, %v3236
    %v3369 = vsel %vm276, %v3141, %v3238
    %v3370 = vsel %vm276, %v3142, %v3240
    %v3371 = vsel %vm276, %v3143, %v3242
    %v3372 = vsel %vm276, %v3144, %v3244
    %v3373 = vsel %vm276, %v3145, %v3246
    %v3374 = vsel %vm276, %v3146, %v3248
    %v3375 = vsel %vm276, %v3147, %v3250
    %v3376 = vsel %vm276, %v3148, %v3252
    %v3377 = vsel %vm276, %v3149, %v3254
    %v3378 = vsel %vm276, %v3150, %v3256
    %v3379 = vsel %vm276, %v3151, %v3258
    %v3380 = vsel %vm276, %v3152, %v3339
    %v3381 = vsel %vm276, %v3153, %v3341
    %v3382 = vsel %vm276, %v3154, %v3343
    %v3383 = vsel %vm276, %v3155, %v3345
    %v3384 = vsel %vm276, %v3156, %v3347
    %v3385 = vsel %vm276, %v3157, %v3349
    %v3386 = vsel %vm276, %v3158, %v3351
    %s3387 = scalar_lea.vmem %s4, 128
    %v3388 = vld [vmem:[%s3387] sm:$0xff]
    %v3389 = vld [vmem:[%s3387 + $0x8] sm:$0xff]
    %v3390 = vld [vmem:[%s3387 + $0x10] sm:$0xff]
    %v3391 = vld [vmem:[%s3387 + $0x18] sm:$0xff]
    %v3392 = vld [vmem:[%s3387 + $0x20] sm:$0xff]
    %v3393 = vld [vmem:[%s3387 + $0x28] sm:$0xff]
    %v3394 = vld [vmem:[%s3387 + $0x30] sm:$0xff]
    %v3395 = vld [vmem:[%s3387 + $0x38] sm:$0xff]
    %v3396 = vld [vmem:[%s3387 + $0x40] sm:$0xff]
    %v3397 = vld [vmem:[%s3387 + $0x48] sm:$0xff]
    %v3398 = vld [vmem:[%s3387 + $0x50] sm:$0xff]
    %v3399 = vld [vmem:[%s3387 + $0x58] sm:$0xff]
    %v3400 = vld [vmem:[%s3387 + $0x60] sm:$0xff]
    %v3401 = vld [vmem:[%s3387 + $0x68] sm:$0xff]
    %v3402 = vld [vmem:[%s3387 + $0x70] sm:$0xff]
    %v3403 = vld [vmem:[%s3387 + $0x78] sm:$0xff]
    %3404 = vmatprep.subr.mxu0 0.0
    %3405 = vmatpush1.msra.mxu0 %v3388
    %3406 = vmatprep.subr.mxu0 0.0
    %3407 = vmatpush1.msra.mxu0 %v3389
    %3408 = vmatprep.subr.mxu0 0.0
    %3409 = vmatpush1.msra.mxu0 %v3390
    %3410 = vmatprep.subr.mxu0 0.0
    %3411 = vmatpush1.msra.mxu0 %v3391
    %3412 = vmatprep.subr.mxu0 0.0
    %3413 = vmatpush1.msra.mxu0 %v3392
    %3414 = vmatprep.subr.mxu0 0.0
    %3415 = vmatpush1.msra.mxu0 %v3393
    %3416 = vmatprep.subr.mxu0 0.0
    %3417 = vmatpush1.msra.mxu0 %v3394
    %3418 = vmatprep.subr.mxu0 0.0
    %3419 = vmatpush1.msra.mxu0 %v3395
    %3420 = vmatprep.subr.mxu0 0.0
    %3421 = vmatpush1.msra.mxu0 %v3396
    %3422 = vmatprep.subr.mxu0 0.0
    %3423 = vmatpush1.msra.mxu0 %v3397
    %3424 = vmatprep.subr.mxu0 0.0
    %3425 = vmatpush1.msra.mxu0 %v3398
    %3426 = vmatprep.subr.mxu0 0.0
    %3427 = vmatpush1.msra.mxu0 %v3399
    %3428 = vmatprep.subr.mxu0 0.0
    %3429 = vmatpush1.msra.mxu0 %v3400
    %3430 = vmatprep.subr.mxu0 0.0
    %3431 = vmatpush1.msra.mxu0 %v3401
    %3432 = vmatprep.subr.mxu0 0.0
    %3433 = vmatpush1.msra.mxu0 %v3402
    %3434 = vmatprep.subr.mxu0 0.0
    %3435 = vmatpush1.msra.mxu0 %v3403
    %3436 = vmatprep.subr.mxu0 0.0
    %3437 = vmatpush1.msra.mxu0 0.0
    %3438 = vmatprep.subr.mxu0 0.0
    %3439 = vmatpush1.msra.mxu0 0.0
    %3440 = vmatprep.subr.mxu0 0.0
    %3441 = vmatpush1.msra.mxu0 0.0
    %3442 = vmatprep.subr.mxu0 0.0
    %3443 = vmatpush1.msra.mxu0 0.0
    %3444 = vmatprep.subr.mxu0 0.0
    %3445 = vmatpush1.msra.mxu0 0.0
    %3446 = vmatprep.subr.mxu0 0.0
    %3447 = vmatpush1.msra.mxu0 0.0
    %3448 = vmatprep.subr.mxu0 0.0
    %3449 = vmatpush1.msra.mxu0 0.0
    %3450 = vmatprep.subr.mxu0 0.0
    %3451 = vmatpush1.msra.mxu0 0.0
    %3452 = vmatprep.subr.mxu0 0.0
    %3453 = vmatpush1.msra.mxu0 0.0
    %3454 = vmatprep.subr.mxu0 0.0
    %3455 = vmatpush1.msra.mxu0 0.0
    %3456 = vmatprep.subr.mxu0 0.0
    %3457 = vmatpush1.msra.mxu0 0.0
    %3458 = vmatprep.subr.mxu0 0.0
    %3459 = vmatpush1.msra.mxu0 0.0
    %3460 = vmatprep.subr.mxu0 0.0
    %3461 = vmatpush1.msra.mxu0 0.0
    %3462 = vmatprep.subr.mxu0 0.0
    %3463 = vmatpush1.msra.mxu0 0.0
    %3464 = vmatprep.subr.mxu0 0.0
    %3465 = vmatpush1.msra.mxu0 0.0
    %3466 = vmatprep.subr.mxu0 0.0
    %3467 = vmatpush1.msra.mxu0 0.0
    %3468 = vmatprep.mubr.f32.mxu0 0.0
    %3469 = vmatmul.mubr.f32.gmra.mrb[0].mxu0 %v3359
    %v3470 = vpop.f32.mrb[0].mxu0
    %v3471 = vadd.f32 0.0, %v3470
    %v3472 = vpop.f32.mrb[0].mxu0
    %3473 = vmatprep.mubr.f32.mxu0 0.0
    %3474 = vmatmul.mubr.f32.gmra.mrb[0].mxu0 %v3360
    %v3475 = vpop.f32.mrb[0].mxu0
    %v3476 = vadd.f32 0.0, %v3475
    %v3477 = vpop.f32.mrb[0].mxu0
    %3478 = vmatprep.mubr.f32.mxu0 0.0
    %3479 = vmatmul.mubr.f32.gmra.mrb[0].mxu0 %v3361
    %v3480 = vpop.f32.mrb[0].mxu0
    %v3481 = vadd.f32 0.0, %v3480
    %v3482 = vpop.f32.mrb[0].mxu0
    %3483 = vmatprep.mubr.f32.mxu0 0.0
    %3484 = vmatmul.mubr.f32.gmra.mrb[0].mxu0 %v3362
    %v3485 = vpop.f32.mrb[0].mxu0
    %v3486 = vadd.f32 0.0, %v3485
    %v3487 = vpop.f32.mrb[0].mxu0
    %3488 = vmatprep.mubr.f32.mxu0 0.0
    %3489 = vmatmul.mubr.f32.gmra.mrb[0].mxu0 %v3363
    %v3490 = vpop.f32.mrb[0].mxu0
    %v3491 = vpop.f32.mrb[0].mxu0
    %3492 = vmatprep.mubr.f32.mxu0 0.0
    %3493 = vmatmul.mubr.f32.gmra.mrb[0].mxu0 %v3364
    %v3494 = vpop.f32.mrb[0].mxu0
    %v3495 = vpop.f32.mrb[0].mxu0
    %3496 = vmatprep.mubr.f32.mxu0 0.0
    %3497 = vmatmul.mubr.f32.gmra.mrb[0].mxu0 %v3365
    %v3498 = vpop.f32.mrb[0].mxu0
    %v3499 = vpop.f32.mrb[0].mxu0
    %3500 = vmatprep.mubr.f32.mxu0 0.0
    %3501 = vmatmul.mubr.f32.gmra.mrb[0].mxu0 %v3366
    %v3502 = vpop.f32.mrb[0].mxu0
    %v3503 = vpop.f32.mrb[0].mxu0
    %3504 = vmatprep.mubr.f32.mxu0 0.0
    %3505 = vmatmul.mubr.f32.gmra.mrb[0].mxu0 %v3367
    %v3506 = vpop.f32.mrb[0].mxu0
    %v3507 = vadd.f32 0.0, %v3506
    %v3508 = vpop.f32.mrb[0].mxu0
    %3509 = vmatprep.mubr.f32.mxu0 0.0
    %3510 = vmatmul.mubr.f32.gmra.mrb[0].mxu0 %v3368
    %v3511 = vpop.f32.mrb[0].mxu0
    %v3512 = vadd.f32 0.0, %v3511
    %v3513 = vpop.f32.mrb[0].mxu0
    %3514 = vmatprep.mubr.f32.mxu0 0.0
    %3515 = vmatmul.mubr.f32.gmra.mrb[0].mxu0 %v3369
    %v3516 = vpop.f32.mrb[0].mxu0
    %v3517 = vadd.f32 0.0, %v3516
    %v3518 = vpop.f32.mrb[0].mxu0
    %3519 = vmatprep.mubr.f32.mxu0 0.0
    %3520 = vmatmul.mubr.f32.gmra.mrb[0].mxu0 %v3370
    %v3521 = vpop.f32.mrb[0].mxu0
    %v3522 = vadd.f32 0.0, %v3521
    %v3523 = vpop.f32.mrb[0].mxu0
    %3524 = vmatprep.mubr.f32.mxu0 0.0
    %3525 = vmatmul.mubr.f32.gmra.mrb[0].mxu0 %v3371
    %v3526 = vpop.f32.mrb[0].mxu0
    %v3527 = vpop.f32.mrb[0].mxu0
    %3528 = vmatprep.mubr.f32.mxu0 0.0
    %3529 = vmatmul.mubr.f32.gmra.mrb[0].mxu0 %v3372
    %v3530 = vpop.f32.mrb[0].mxu0
    %v3531 = vpop.f32.mrb[0].mxu0
    %3532 = vmatprep.mubr.f32.mxu0 0.0
    %3533 = vmatmul.mubr.f32.gmra.mrb[0].mxu0 %v3373
    %v3534 = vpop.f32.mrb[0].mxu0
    %v3535 = vpop.f32.mrb[0].mxu0
    %3536 = vmatprep.mubr.f32.mxu0 0.0
    %3537 = vmatmul.mubr.f32.gmra.mrb[0].mxu0 %v3374
    %v3538 = vpop.f32.mrb[0].mxu0
    %v3539 = vpop.f32.mrb[0].mxu0
    %3540 = vmatprep.mubr.f32.mxu0 0.0
    %3541 = vmatmul.mubr.f32.gmra.mrb[0].mxu0 %v3375
    %v3542 = vpop.f32.mrb[0].mxu0
    %v3543 = vadd.f32 0.0, %v3542
    %v3544 = vpop.f32.mrb[0].mxu0
    %3545 = vmatprep.mubr.f32.mxu0 0.0
    %3546 = vmatmul.mubr.f32.gmra.mrb[0].mxu0 %v3376
    %v3547 = vpop.f32.mrb[0].mxu0
    %v3548 = vadd.f32 0.0, %v3547
    %v3549 = vpop.f32.mrb[0].mxu0
    %3550 = vmatprep.mubr.f32.mxu0 0.0
    %3551 = vmatmul.mubr.f32.gmra.mrb[0].mxu0 %v3377
    %v3552 = vpop.f32.mrb[0].mxu0
    %v3553 = vadd.f32 0.0, %v3552
    %v3554 = vpop.f32.mrb[0].mxu0
    %3555 = vmatprep.mubr.f32.mxu0 0.0
    %3556 = vmatmul.mubr.f32.gmra.mrb[0].mxu0 %v3378
    %v3557 = vpop.f32.mrb[0].mxu0
    %v3558 = vadd.f32 0.0, %v3557
    %v3559 = vpop.f32.mrb[0].mxu0
    %3560 = vmatprep.mubr.f32.mxu0 0.0
    %3561 = vmatmul.mubr.f32.gmra.mrb[0].mxu0 %v3379
    %v3562 = vpop.f32.mrb[0].mxu0
    %v3563 = vpop.f32.mrb[0].mxu0
    %3564 = vmatprep.mubr.f32.mxu0 0.0
    %3565 = vmatmul.mubr.f32.gmra.mrb[0].mxu0 %v3380
    %v3566 = vpop.f32.mrb[0].mxu0
    %v3567 = vpop.f32.mrb[0].mxu0
    %3568 = vmatprep.mubr.f32.mxu0 0.0
    %3569 = vmatmul.mubr.f32.gmra.mrb[0].mxu0 %v3381
    %v3570 = vpop.f32.mrb[0].mxu0
    %v3571 = vpop.f32.mrb[0].mxu0
    %3572 = vmatprep.mubr.f32.mxu0 0.0
    %3573 = vmatmul.mubr.f32.gmra.mrb[0].mxu0 %v3382
    %v3574 = vpop.f32.mrb[0].mxu0
    %v3575 = vpop.f32.mrb[0].mxu0
    %3576 = vmatprep.mubr.f32.mxu0 0.0
    %3577 = vmatmul.mubr.f32.gmra.mrb[0].mxu0 %v3383
    %v3578 = vpop.f32.mrb[0].mxu0
    %v3579 = vadd.f32 0.0, %v3578
    %v3580 = vpop.f32.mrb[0].mxu0
    %3581 = vmatprep.mubr.f32.mxu0 0.0
    %3582 = vmatmul.mubr.f32.gmra.mrb[0].mxu0 %v3384
    %v3583 = vpop.f32.mrb[0].mxu0
    %v3584 = vadd.f32 0.0, %v3583
    %v3585 = vpop.f32.mrb[0].mxu0
    %3586 = vmatprep.mubr.f32.mxu0 0.0
    %3587 = vmatmul.mubr.f32.gmra.mrb[0].mxu0 %v3385
    %v3588 = vpop.f32.mrb[0].mxu0
    %v3589 = vadd.f32 0.0, %v3588
    %v3590 = vpop.f32.mrb[0].mxu0
    %3591 = vmatprep.mubr.f32.mxu0 0.0
    %3592 = vmatmul.mubr.f32.gmra.mrb[0].mxu0 %v3386
    %v3593 = vpop.f32.mrb[0].mxu0
    %v3594 = vadd.f32 0.0, %v3593
    %v3595 = vpop.f32.mrb[0].mxu0
    %3596 = vdwg.mxu0
    %3597 = vmatprep.subr.mxu0 0.0
    %3598 = vmatpush1.msra.mxu0 %v3315
    %3599 = vmatprep.subr.mxu0 0.0
    %3600 = vmatpush1.msra.mxu0 %v3316
    %3601 = vmatprep.subr.mxu0 0.0
    %3602 = vmatpush1.msra.mxu0 %v3317
    %3603 = vmatprep.subr.mxu0 0.0
    %3604 = vmatpush1.msra.mxu0 %v3318
    %3605 = vmatprep.subr.mxu0 0.0
    %3606 = vmatpush1.msra.mxu0 %v3319
    %3607 = vmatprep.subr.mxu0 0.0
    %3608 = vmatpush1.msra.mxu0 %v3320
    %3609 = vmatprep.subr.mxu0 0.0
    %3610 = vmatpush1.msra.mxu0 %v3321
    %3611 = vmatprep.subr.mxu0 0.0
    %3612 = vmatpush1.msra.mxu0 %v3322
    %3613 = vmatprep.subr.mxu0 0.0
    %3614 = vmatpush1.msra.mxu0 %v3323
    %3615 = vmatprep.subr.mxu0 0.0
    %3616 = vmatpush1.msra.mxu0 %v3324
    %3617 = vmatprep.subr.mxu0 0.0
    %3618 = vmatpush1.msra.mxu0 %v3325
    %3619 = vmatprep.subr.mxu0 0.0
    %3620 = vmatpush1.msra.mxu0 %v3326
    %3621 = vmatprep.subr.mxu0 0.0
    %3622 = vmatpush1.msra.mxu0 %v3327
    %3623 = vmatprep.subr.mxu0 0.0
    %3624 = vmatpush1.msra.mxu0 %v3328
    %3625 = vmatprep.subr.mxu0 0.0
    %3626 = vmatpush1.msra.mxu0 %v3329
    %3627 = vmatprep.subr.mxu0 0.0
    %3628 = vmatpush1.msra.mxu0 %v3330
    %3629 = vmatprep.subr.mxu0 0.0
    %3630 = vmatpush1.msra.mxu0 0.0
    %3631 = vmatprep.subr.mxu0 0.0
    %3632 = vmatpush1.msra.mxu0 0.0
    %3633 = vmatprep.subr.mxu0 0.0
    %3634 = vmatpush1.msra.mxu0 0.0
    %3635 = vmatprep.subr.mxu0 0.0
    %3636 = vmatpush1.msra.mxu0 0.0
    %3637 = vmatprep.subr.mxu0 0.0
    %3638 = vmatpush1.msra.mxu0 0.0
    %3639 = vmatprep.subr.mxu0 0.0
    %3640 = vmatpush1.msra.mxu0 0.0
    %3641 = vmatprep.subr.mxu0 0.0
    %3642 = vmatpush1.msra.mxu0 0.0
    %3643 = vmatprep.subr.mxu0 0.0
    %3644 = vmatpush1.msra.mxu0 0.0
    %3645 = vmatprep.subr.mxu0 0.0
    %3646 = vmatpush1.msra.mxu0 0.0
    %3647 = vmatprep.subr.mxu0 0.0
    %3648 = vmatpush1.msra.mxu0 0.0
    %3649 = vmatprep.subr.mxu0 0.0
    %3650 = vmatpush1.msra.mxu0 0.0
    %3651 = vmatprep.subr.mxu0 0.0
    %3652 = vmatpush1.msra.mxu0 0.0
    %3653 = vmatprep.subr.mxu0 0.0
    %3654 = vmatpush1.msra.mxu0 0.0
    %3655 = vmatprep.subr.mxu0 0.0
    %3656 = vmatpush1.msra.mxu0 0.0
    %3657 = vmatprep.subr.mxu0 0.0
    %3658 = vmatpush1.msra.mxu0 0.0
    %3659 = vmatprep.subr.mxu0 0.0
    %3660 = vmatpush1.msra.mxu0 0.0
    %3661 = vmatprep.mubr.f32.mxu0 0.0
    %3662 = vmatmul.mubr.f32.gmra.mrb[0].mxu0 %v3287
    %v3663 = vpop.f32.mrb[0].mxu0
    %v3664 = vadd.f32 %v3471, %v3663
    %v3665 = vpop.f32.mrb[0].mxu0
    %3666 = vmatprep.mubr.f32.mxu0 0.0
    %3667 = vmatmul.mubr.f32.gmra.mrb[0].mxu0 %v3288
    %v3668 = vpop.f32.mrb[0].mxu0
    %v3669 = vadd.f32 %v3476, %v3668
    %v3670 = vpop.f32.mrb[0].mxu0
    %3671 = vmatprep.mubr.f32.mxu0 0.0
    %3672 = vmatmul.mubr.f32.gmra.mrb[0].mxu0 %v3289
    %v3673 = vpop.f32.mrb[0].mxu0
    %v3674 = vadd.f32 %v3481, %v3673
    %v3675 = vpop.f32.mrb[0].mxu0
    %3676 = vmatprep.mubr.f32.mxu0 0.0
    %3677 = vmatmul.mubr.f32.gmra.mrb[0].mxu0 %v3290
    %v3678 = vpop.f32.mrb[0].mxu0
    %v3679 = vadd.f32 %v3486, %v3678
    %v3680 = vpop.f32.mrb[0].mxu0
    %3681 = vmatprep.mubr.f32.mxu0 0.0
    %3682 = vmatmul.mubr.f32.gmra.mrb[0].mxu0 %v3291
    %v3683 = vpop.f32.mrb[0].mxu0
    %v3684 = vpop.f32.mrb[0].mxu0
    %3685 = vmatprep.mubr.f32.mxu0 0.0
    %3686 = vmatmul.mubr.f32.gmra.mrb[0].mxu0 %v3292
    %v3687 = vpop.f32.mrb[0].mxu0
    %v3688 = vpop.f32.mrb[0].mxu0
    %3689 = vmatprep.mubr.f32.mxu0 0.0
    %3690 = vmatmul.mubr.f32.gmra.mrb[0].mxu0 %v3293
    %v3691 = vpop.f32.mrb[0].mxu0
    %v3692 = vpop.f32.mrb[0].mxu0
    %3693 = vmatprep.mubr.f32.mxu0 0.0
    %3694 = vmatmul.mubr.f32.gmra.mrb[0].mxu0 %v3294
    %v3695 = vpop.f32.mrb[0].mxu0
    %v3696 = vpop.f32.mrb[0].mxu0
    %3697 = vmatprep.mubr.f32.mxu0 0.0
    %3698 = vmatmul.mubr.f32.gmra.mrb[0].mxu0 %v3295
    %v3699 = vpop.f32.mrb[0].mxu0
    %v3700 = vadd.f32 %v3507, %v3699
    %v3701 = vpop.f32.mrb[0].mxu0
    %3702 = vmatprep.mubr.f32.mxu0 0.0
    %3703 = vmatmul.mubr.f32.gmra.mrb[0].mxu0 %v3296
    %v3704 = vpop.f32.mrb[0].mxu0
    %v3705 = vadd.f32 %v3512, %v3704
    %v3706 = vpop.f32.mrb[0].mxu0
    %3707 = vmatprep.mubr.f32.mxu0 0.0
    %3708 = vmatmul.mubr.f32.gmra.mrb[0].mxu0 %v3297
    %v3709 = vpop.f32.mrb[0].mxu0
    %v3710 = vadd.f32 %v3517, %v3709
    %v3711 = vpop.f32.mrb[0].mxu0
    %3712 = vmatprep.mubr.f32.mxu0 0.0
    %3713 = vmatmul.mubr.f32.gmra.mrb[0].mxu0 %v3298
    %v3714 = vpop.f32.mrb[0].mxu0
    %v3715 = vadd.f32 %v3522, %v3714
    %v3716 = vpop.f32.mrb[0].mxu0
    %3717 = vmatprep.mubr.f32.mxu0 0.0
    %3718 = vmatmul.mubr.f32.gmra.mrb[0].mxu0 %v3299
    %v3719 = vpop.f32.mrb[0].mxu0
    %v3720 = vpop.f32.mrb[0].mxu0
    %3721 = vmatprep.mubr.f32.mxu0 0.0
    %3722 = vmatmul.mubr.f32.gmra.mrb[0].mxu0 %v3300
    %v3723 = vpop.f32.mrb[0].mxu0
    %v3724 = vpop.f32.mrb[0].mxu0
    %3725 = vmatprep.mubr.f32.mxu0 0.0
    %3726 = vmatmul.mubr.f32.gmra.mrb[0].mxu0 %v3301
    %v3727 = vpop.f32.mrb[0].mxu0
    %v3728 = vpop.f32.mrb[0].mxu0
    %3729 = vmatprep.mubr.f32.mxu0 0.0
    %3730 = vmatmul.mubr.f32.gmra.mrb[0].mxu0 %v3302
    %v3731 = vpop.f32.mrb[0].mxu0
    %v3732 = vpop.f32.mrb[0].mxu0
    %3733 = vmatprep.mubr.f32.mxu0 0.0
    %3734 = vmatmul.mubr.f32.gmra.mrb[0].mxu0 %v3303
    %v3735 = vpop.f32.mrb[0].mxu0
    %v3736 = vadd.f32 %v3543, %v3735
    %v3737 = vpop.f32.mrb[0].mxu0
    %3738 = vmatprep.mubr.f32.mxu0 0.0
    %3739 = vmatmul.mubr.f32.gmra.mrb[0].mxu0 %v3304
    %v3740 = vpop.f32.mrb[0].mxu0
    %v3741 = vadd.f32 %v3548, %v3740
    %v3742 = vpop.f32.mrb[0].mxu0
    %3743 = vmatprep.mubr.f32.mxu0 0.0
    %3744 = vmatmul.mubr.f32.gmra.mrb[0].mxu0 %v3305
    %v3745 = vpop.f32.mrb[0].mxu0
    %v3746 = vadd.f32 %v3553, %v3745
    %v3747 = vpop.f32.mrb[0].mxu0
    %3748 = vmatprep.mubr.f32.mxu0 0.0
    %3749 = vmatmul.mubr.f32.gmra.mrb[0].mxu0 %v3306
    %v3750 = vpop.f32.mrb[0].mxu0
    %v3751 = vadd.f32 %v3558, %v3750
    %v3752 = vpop.f32.mrb[0].mxu0
    %3753 = vmatprep.mubr.f32.mxu0 0.0
    %3754 = vmatmul.mubr.f32.gmra.mrb[0].mxu0 %v3307
    %v3755 = vpop.f32.mrb[0].mxu0
    %v3756 = vpop.f32.mrb[0].mxu0
    %3757 = vmatprep.mubr.f32.mxu0 0.0
    %3758 = vmatmul.mubr.f32.gmra.mrb[0].mxu0 %v3308
    %v3759 = vpop.f32.mrb[0].mxu0
    %v3760 = vpop.f32.mrb[0].mxu0
    %3761 = vmatprep.mubr.f32.mxu0 0.0
    %3762 = vmatmul.mubr.f32.gmra.mrb[0].mxu0 %v3309
    %v3763 = vpop.f32.mrb[0].mxu0
    %v3764 = vpop.f32.mrb[0].mxu0
    %3765 = vmatprep.mubr.f32.mxu0 0.0
    %3766 = vmatmul.mubr.f32.gmra.mrb[0].mxu0 %v3310
    %v3767 = vpop.f32.mrb[0].mxu0
    %v3768 = vpop.f32.mrb[0].mxu0
    %3769 = vmatprep.mubr.f32.mxu0 0.0
    %3770 = vmatmul.mubr.f32.gmra.mrb[0].mxu0 %v3311
    %v3771 = vpop.f32.mrb[0].mxu0
    %v3772 = vadd.f32 %v3579, %v3771
    %v3773 = vpop.f32.mrb[0].mxu0
    %3774 = vmatprep.mubr.f32.mxu0 0.0
    %3775 = vmatmul.mubr.f32.gmra.mrb[0].mxu0 %v3312
    %v3776 = vpop.f32.mrb[0].mxu0
    %v3777 = vadd.f32 %v3584, %v3776
    %v3778 = vpop.f32.mrb[0].mxu0
    %3779 = vmatprep.mubr.f32.mxu0 0.0
    %3780 = vmatmul.mubr.f32.gmra.mrb[0].mxu0 %v3313
    %v3781 = vpop.f32.mrb[0].mxu0
    %v3782 = vadd.f32 %v3589, %v3781
    %v3783 = vpop.f32.mrb[0].mxu0
    %3784 = vmatprep.mubr.f32.mxu0 0.0
    %3785 = vmatmul.mubr.f32.gmra.mrb[0].mxu0 %v3314
    %v3786 = vpop.f32.mrb[0].mxu0
    %v3787 = vadd.f32 %v3594, %v3786
    %v3788 = vpop.f32.mrb[0].mxu0
    %3789 = vdwg.mxu0
    %3792 = vrot.lane.b32.xlu0 %v3165, 64
    %v3793 = vpop.permute.xlu0 %3792
    %3794 = vrot.lane.b32.xlu0 %v3166, 64
    %v3795 = vpop.permute.xlu0 %3794
    %v3798 = vsel %vm276, %v3157, %v3339
    %v3799 = vsel %vm276, %v3158, %v3341
    %v3800 = vsel %vm276, %v3159, %v3343
    %v3801 = vsel %vm276, %v3160, %v3345
    %v3802 = vsel %vm276, %v3161, %v3347
    %v3803 = vsel %vm276, %v3162, %v3349
    %v3804 = vsel %vm276, %v3163, %v3351
    %v3805 = vsel %vm276, %v3164, %v3793
    %v3806 = vsel %vm276, %v3165, %v3795
    %s3807 = scalar_lea.vmem %s4, 256
    %v3808 = vld [vmem:[%s3807] sm:$0xff]
    %v3809 = vld [vmem:[%s3807 + $0x8] sm:$0xff]
    %v3810 = vld [vmem:[%s3807 + $0x10] sm:$0xff]
    %v3811 = vld [vmem:[%s3807 + $0x18] sm:$0xff]
    %v3812 = vld [vmem:[%s3807 + $0x20] sm:$0xff]
    %v3813 = vld [vmem:[%s3807 + $0x28] sm:$0xff]
    %v3814 = vld [vmem:[%s3807 + $0x30] sm:$0xff]
    %v3815 = vld [vmem:[%s3807 + $0x38] sm:$0xff]
    %v3816 = vld [vmem:[%s3807 + $0x40] sm:$0xff]
    %v3817 = vld [vmem:[%s3807 + $0x48] sm:$0xff]
    %v3818 = vld [vmem:[%s3807 + $0x50] sm:$0xff]
    %v3819 = vld [vmem:[%s3807 + $0x58] sm:$0xff]
    %v3820 = vld [vmem:[%s3807 + $0x60] sm:$0xff]
    %v3821 = vld [vmem:[%s3807 + $0x68] sm:$0xff]
    %v3822 = vld [vmem:[%s3807 + $0x70] sm:$0xff]
    %v3823 = vld [vmem:[%s3807 + $0x78] sm:$0xff]
    %3824 = vmatprep.subr.mxu0 0.0
    %3825 = vmatpush1.msra.mxu0 %v3808
    %3826 = vmatprep.subr.mxu0 0.0
    %3827 = vmatpush1.msra.mxu0 %v3809
    %3828 = vmatprep.subr.mxu0 0.0
    %3829 = vmatpush1.msra.mxu0 %v3810
    %3830 = vmatprep.subr.mxu0 0.0
    %3831 = vmatpush1.msra.mxu0 %v3811
    %3832 = vmatprep.subr.mxu0 0.0
    %3833 = vmatpush1.msra.mxu0 %v3812
    %3834 = vmatprep.subr.mxu0 0.0
    %3835 = vmatpush1.msra.mxu0 %v3813
    %3836 = vmatprep.subr.mxu0 0.0
    %3837 = vmatpush1.msra.mxu0 %v3814
    %3838 = vmatprep.subr.mxu0 0.0
    %3839 = vmatpush1.msra.mxu0 %v3815
    %3840 = vmatprep.subr.mxu0 0.0
    %3841 = vmatpush1.msra.mxu0 %v3816
    %3842 = vmatprep.subr.mxu0 0.0
    %3843 = vmatpush1.msra.mxu0 %v3817
    %3844 = vmatprep.subr.mxu0 0.0
    %3845 = vmatpush1.msra.mxu0 %v3818
    %3846 = vmatprep.subr.mxu0 0.0
    %3847 = vmatpush1.msra.mxu0 %v3819
    %3848 = vmatprep.subr.mxu0 0.0
    %3849 = vmatpush1.msra.mxu0 %v3820
    %3850 = vmatprep.subr.mxu0 0.0
    %3851 = vmatpush1.msra.mxu0 %v3821
    %3852 = vmatprep.subr.mxu0 0.0
    %3853 = vmatpush1.msra.mxu0 %v3822
    %3854 = vmatprep.subr.mxu0 0.0
    %3855 = vmatpush1.msra.mxu0 %v3823
    %3856 = vmatprep.subr.mxu0 0.0
    %3857 = vmatpush1.msra.mxu0 0.0
    %3858 = vmatprep.subr.mxu0 0.0
    %3859 = vmatpush1.msra.mxu0 0.0
    %3860 = vmatprep.subr.mxu0 0.0
    %3861 = vmatpush1.msra.mxu0 0.0
    %3862 = vmatprep.subr.mxu0 0.0
    %3863 = vmatpush1.msra.mxu0 0.0
    %3864 = vmatprep.subr.mxu0 0.0
    %3865 = vmatpush1.msra.mxu0 0.0
    %3866 = vmatprep.subr.mxu0 0.0
    %3867 = vmatpush1.msra.mxu0 0.0
    %3868 = vmatprep.subr.mxu0 0.0
    %3869 = vmatpush1.msra.mxu0 0.0
    %3870 = vmatprep.subr.mxu0 0.0
    %3871 = vmatpush1.msra.mxu0 0.0
    %3872 = vmatprep.subr.mxu0 0.0
    %3873 = vmatpush1.msra.mxu0 0.0
    %3874 = vmatprep.subr.mxu0 0.0
    %3875 = vmatpush1.msra.mxu0 0.0
    %3876 = vmatprep.subr.mxu0 0.0
    %3877 = vmatpush1.msra.mxu0 0.0
    %3878 = vmatprep.subr.mxu0 0.0
    %3879 = vmatpush1.msra.mxu0 0.0
    %3880 = vmatprep.subr.mxu0 0.0
    %3881 = vmatpush1.msra.mxu0 0.0
    %3882 = vmatprep.subr.mxu0 0.0
    %3883 = vmatpush1.msra.mxu0 0.0
    %3884 = vmatprep.subr.mxu0 0.0
    %3885 = vmatpush1.msra.mxu0 0.0
    %3886 = vmatprep.subr.mxu0 0.0
    %3887 = vmatpush1.msra.mxu0 0.0
    %3888 = vmatprep.mubr.f32.mxu0 0.0
    %3889 = vmatmul.mubr.f32.gmra.mrb[0].mxu0 %v3296
    %v3890 = vpop.f32.mrb[0].mxu0
    %v3891 = vadd.f32 0.0, %v3890
    %v3892 = vpop.f32.mrb[0].mxu0
    %3893 = vmatprep.mubr.f32.mxu0 0.0
    %3894 = vmatmul.mubr.f32.gmra.mrb[0].mxu0 %v3297
    %v3895 = vpop.f32.mrb[0].mxu0
    %v3896 = vadd.f32 0.0, %v3895
    %v3897 = vpop.f32.mrb[0].mxu0
    %3898 = vmatprep.mubr.f32.mxu0 0.0
    %3899 = vmatmul.mubr.f32.gmra.mrb[0].mxu0 %v3298
    %v3900 = vpop.f32.mrb[0].mxu0
    %v3901 = vadd.f32 0.0, %v3900
    %v3902 = vpop.f32.mrb[0].mxu0
    %3903 = vmatprep.mubr.f32.mxu0 0.0
    %3904 = vmatmul.mubr.f32.gmra.mrb[0].mxu0 %v3299
    %v3905 = vpop.f32.mrb[0].mxu0
    %v3906 = vadd.f32 0.0, %v3905
    %v3907 = vpop.f32.mrb[0].mxu0
    %3908 = vmatprep.mubr.f32.mxu0 0.0
    %3909 = vmatmul.mubr.f32.gmra.mrb[0].mxu0 %v3300
    %v3910 = vpop.f32.mrb[0].mxu0
    %v3911 = vpop.f32.mrb[0].mxu0
    %3912 = vmatprep.mubr.f32.mxu0 0.0
    %3913 = vmatmul.mubr.f32.gmra.mrb[0].mxu0 %v3301
    %v3914 = vpop.f32.mrb[0].mxu0
    %v3915 = vpop.f32.mrb[0].mxu0
    %3916 = vmatprep.mubr.f32.mxu0 0.0
    %3917 = vmatmul.mubr.f32.gmra.mrb[0].mxu0 %v3302
    %v3918 = vpop.f32.mrb[0].mxu0
    %v3919 = vpop.f32.mrb[0].mxu0
    %3920 = vmatprep.mubr.f32.mxu0 0.0
    %3921 = vmatmul.mubr.f32.gmra.mrb[0].mxu0 %v3303
    %v3922 = vpop.f32.mrb[0].mxu0
    %v3923 = vpop.f32.mrb[0].mxu0
    %3924 = vmatprep.mubr.f32.mxu0 0.0
    %3925 = vmatmul.mubr.f32.gmra.mrb[0].mxu0 %v3304
    %v3926 = vpop.f32.mrb[0].mxu0
    %v3927 = vadd.f32 0.0, %v3926
    %v3928 = vpop.f32.mrb[0].mxu0
    %3929 = vmatprep.mubr.f32.mxu0 0.0
    %3930 = vmatmul.mubr.f32.gmra.mrb[0].mxu0 %v3305
    %v3931 = vpop.f32.mrb[0].mxu0
    %v3932 = vadd.f32 0.0, %v3931
    %v3933 = vpop.f32.mrb[0].mxu0
    %3934 = vmatprep.mubr.f32.mxu0 0.0
    %3935 = vmatmul.mubr.f32.gmra.mrb[0].mxu0 %v3306
    %v3936 = vpop.f32.mrb[0].mxu0
    %v3937 = vadd.f32 0.0, %v3936
    %v3938 = vpop.f32.mrb[0].mxu0
    %3939 = vmatprep.mubr.f32.mxu0 0.0
    %3940 = vmatmul.mubr.f32.gmra.mrb[0].mxu0 %v3307
    %v3941 = vpop.f32.mrb[0].mxu0
    %v3942 = vadd.f32 0.0, %v3941
    %v3943 = vpop.f32.mrb[0].mxu0
    %3944 = vmatprep.mubr.f32.mxu0 0.0
    %3945 = vmatmul.mubr.f32.gmra.mrb[0].mxu0 %v3308
    %v3946 = vpop.f32.mrb[0].mxu0
    %v3947 = vpop.f32.mrb[0].mxu0
    %3948 = vmatprep.mubr.f32.mxu0 0.0
    %3949 = vmatmul.mubr.f32.gmra.mrb[0].mxu0 %v3309
    %v3950 = vpop.f32.mrb[0].mxu0
    %v3951 = vpop.f32.mrb[0].mxu0
    %3952 = vmatprep.mubr.f32.mxu0 0.0
    %3953 = vmatmul.mubr.f32.gmra.mrb[0].mxu0 %v3310
    %v3954 = vpop.f32.mrb[0].mxu0
    %v3955 = vpop.f32.mrb[0].mxu0
    %3956 = vmatprep.mubr.f32.mxu0 0.0
    %3957 = vmatmul.mubr.f32.gmra.mrb[0].mxu0 %v3311
    %v3958 = vpop.f32.mrb[0].mxu0
    %v3959 = vpop.f32.mrb[0].mxu0
    %3960 = vmatprep.mubr.f32.mxu0 0.0
    %3961 = vmatmul.mubr.f32.gmra.mrb[0].mxu0 %v3312
    %v3962 = vpop.f32.mrb[0].mxu0
    %v3963 = vadd.f32 0.0, %v3962
    %v3964 = vpop.f32.mrb[0].mxu0
    %3965 = vmatprep.mubr.f32.mxu0 0.0
    %3966 = vmatmul.mubr.f32.gmra.mrb[0].mxu0 %v3313
    %v3967 = vpop.f32.mrb[0].mxu0
    %v3968 = vadd.f32 0.0, %v3967
    %v3969 = vpop.f32.mrb[0].mxu0
    %3970 = vmatprep.mubr.f32.mxu0 0.0
    %3971 = vmatmul.mubr.f32.gmra.mrb[0].mxu0 %v3314
    %v3972 = vpop.f32.mrb[0].mxu0
    %v3973 = vadd.f32 0.0, %v3972
    %v3974 = vpop.f32.mrb[0].mxu0
    %3975 = vmatprep.mubr.f32.mxu0 0.0
    %3976 = vmatmul.mubr.f32.gmra.mrb[0].mxu0 %v3798
    %v3977 = vpop.f32.mrb[0].mxu0
    %v3978 = vadd.f32 0.0, %v3977
    %v3979 = vpop.f32.mrb[0].mxu0
    %3980 = vmatprep.mubr.f32.mxu0 0.0
    %3981 = vmatmul.mubr.f32.gmra.mrb[0].mxu0 %v3799
    %v3982 = vpop.f32.mrb[0].mxu0
    %v3983 = vpop.f32.mrb[0].mxu0
    %3984 = vmatprep.mubr.f32.mxu0 0.0
    %3985 = vmatmul.mubr.f32.gmra.mrb[0].mxu0 %v3800
    %v3986 = vpop.f32.mrb[0].mxu0
    %v3987 = vpop.f32.mrb[0].mxu0
    %3988 = vmatprep.mubr.f32.mxu0 0.0
    %3989 = vmatmul.mubr.f32.gmra.mrb[0].mxu0 %v3801
    %v3990 = vpop.f32.mrb[0].mxu0
    %v3991 = vpop.f32.mrb[0].mxu0
    %3992 = vmatprep.mubr.f32.mxu0 0.0
    %3993 = vmatmul.mubr.f32.gmra.mrb[0].mxu0 %v3802
    %v3994 = vpop.f32.mrb[0].mxu0
    %v3995 = vpop.f32.mrb[0].mxu0
    %3996 = vmatprep.mubr.f32.mxu0 0.0
    %3997 = vmatmul.mubr.f32.gmra.mrb[0].mxu0 %v3803
    %v3998 = vpop.f32.mrb[0].mxu0
    %v3999 = vadd.f32 0.0, %v3998
    %v4000 = vpop.f32.mrb[0].mxu0
    %4001 = vmatprep.mubr.f32.mxu0 0.0
    %4002 = vmatmul.mubr.f32.gmra.mrb[0].mxu0 %v3804
    %v4003 = vpop.f32.mrb[0].mxu0
    %v4004 = vadd.f32 0.0, %v4003
    %v4005 = vpop.f32.mrb[0].mxu0
    %4006 = vmatprep.mubr.f32.mxu0 0.0
    %4007 = vmatmul.mubr.f32.gmra.mrb[0].mxu0 %v3805
    %v4008 = vpop.f32.mrb[0].mxu0
    %v4009 = vadd.f32 0.0, %v4008
    %v4010 = vpop.f32.mrb[0].mxu0
    %4011 = vmatprep.mubr.f32.mxu0 0.0
    %4012 = vmatmul.mubr.f32.gmra.mrb[0].mxu0 %v3806
    %v4013 = vpop.f32.mrb[0].mxu0
    %v4014 = vadd.f32 0.0, %v4013
    %v4015 = vpop.f32.mrb[0].mxu0
    %4016 = vdwg.mxu0
    %v4017 = vadd.f32 %v3664, %v3891
    %v4018 = vadd.f32 %v3669, %v3896
    %v4019 = vadd.f32 %v3674, %v3901
    %v4020 = vadd.f32 %v3679, %v3906
    %v4021 = vadd.f32 %v3700, %v3927
    %v4022 = vadd.f32 %v3705, %v3932
    %v4023 = vadd.f32 %v3710, %v3937
    %v4024 = vadd.f32 %v3715, %v3942
    %v4025 = vadd.f32 %v3736, %v3963
    %v4026 = vadd.f32 %v3741, %v3968
    %v4027 = vadd.f32 %v3746, %v3973
    %v4028 = vadd.f32 %v3751, %v3978
    %v4029 = vadd.f32 %v3772, %v3999
    %v4030 = vadd.f32 %v3777, %v4004
    %v4031 = vadd.f32 %v3782, %v4009
    %v4032 = vadd.f32 %v3787, %v4014
    %4040 = vrot.lane.b32.xlu0 %v3167, 64
    %v4041 = vpop.permute.xlu0 %4040
    %4042 = vrot.lane.b32.xlu0 %v3168, 64
    %v4043 = vpop.permute.xlu0 %4042
    %4044 = vrot.lane.b32.xlu0 %v3169, 64
    %v4045 = vpop.permute.xlu0 %4044
    %4046 = vrot.lane.b32.xlu0 %v3170, 64
    %v4047 = vpop.permute.xlu0 %4046
    %4048 = vrot.lane.b32.xlu0 %v3171, 64
    %v4049 = vpop.permute.xlu0 %4048
    %4050 = vrot.lane.b32.xlu0 %v3172, 64
    %v4051 = vpop.permute.xlu0 %4050
    %4052 = vrot.lane.b32.xlu0 %v3173, 64
    %v4053 = vpop.permute.xlu0 %4052
    %v4061 = vsel %vm276, %v3166, %v4041
    %v4062 = vsel %vm276, %v3167, %v4043
    %v4063 = vsel %vm276, %v3168, %v4045
    %v4064 = vsel %vm276, %v3169, %v4047
    %v4065 = vsel %vm276, %v3170, %v4049
    %v4066 = vsel %vm276, %v3171, %v4051
    %v4067 = vsel %vm276, %v3172, %v4053
    %s4068 = scalar_lea.vmem %s4, 384
    %v4069 = vld [vmem:[%s4068] sm:$0xff]
    %v4070 = vld [vmem:[%s4068 + $0x8] sm:$0xff]
    %v4071 = vld [vmem:[%s4068 + $0x10] sm:$0xff]
    %v4072 = vld [vmem:[%s4068 + $0x18] sm:$0xff]
    %v4073 = vld [vmem:[%s4068 + $0x20] sm:$0xff]
    %v4074 = vld [vmem:[%s4068 + $0x28] sm:$0xff]
    %v4075 = vld [vmem:[%s4068 + $0x30] sm:$0xff]
    %v4076 = vld [vmem:[%s4068 + $0x38] sm:$0xff]
    %v4077 = vld [vmem:[%s4068 + $0x40] sm:$0xff]
    %v4078 = vld [vmem:[%s4068 + $0x48] sm:$0xff]
    %v4079 = vld [vmem:[%s4068 + $0x50] sm:$0xff]
    %v4080 = vld [vmem:[%s4068 + $0x58] sm:$0xff]
    %v4081 = vld [vmem:[%s4068 + $0x60] sm:$0xff]
    %v4082 = vld [vmem:[%s4068 + $0x68] sm:$0xff]
    %v4083 = vld [vmem:[%s4068 + $0x70] sm:$0xff]
    %v4084 = vld [vmem:[%s4068 + $0x78] sm:$0xff]
    %4085 = vmatprep.subr.mxu0 0.0
    %4086 = vmatpush1.msra.mxu0 %v4069
    %4087 = vmatprep.subr.mxu0 0.0
    %4088 = vmatpush1.msra.mxu0 %v4070
    %4089 = vmatprep.subr.mxu0 0.0
    %4090 = vmatpush1.msra.mxu0 %v4071
    %4091 = vmatprep.subr.mxu0 0.0
    %4092 = vmatpush1.msra.mxu0 %v4072
    %4093 = vmatprep.subr.mxu0 0.0
    %4094 = vmatpush1.msra.mxu0 %v4073
    %4095 = vmatprep.subr.mxu0 0.0
    %4096 = vmatpush1.msra.mxu0 %v4074
    %4097 = vmatprep.subr.mxu0 0.0
    %4098 = vmatpush1.msra.mxu0 %v4075
    %4099 = vmatprep.subr.mxu0 0.0
    %4100 = vmatpush1.msra.mxu0 %v4076
    %4101 = vmatprep.subr.mxu0 0.0
    %4102 = vmatpush1.msra.mxu0 %v4077
    %4103 = vmatprep.subr.mxu0 0.0
    %4104 = vmatpush1.msra.mxu0 %v4078
    %4105 = vmatprep.subr.mxu0 0.0
    %4106 = vmatpush1.msra.mxu0 %v4079
    %4107 = vmatprep.subr.mxu0 0.0
    %4108 = vmatpush1.msra.mxu0 %v4080
    %4109 = vmatprep.subr.mxu0 0.0
    %4110 = vmatpush1.msra.mxu0 %v4081
    %4111 = vmatprep.subr.mxu0 0.0
    %4112 = vmatpush1.msra.mxu0 %v4082
    %4113 = vmatprep.subr.mxu0 0.0
    %4114 = vmatpush1.msra.mxu0 %v4083
    %4115 = vmatprep.subr.mxu0 0.0
    %4116 = vmatpush1.msra.mxu0 %v4084
    %4117 = vmatprep.subr.mxu0 0.0
    %4118 = vmatpush1.msra.mxu0 0.0
    %4119 = vmatprep.subr.mxu0 0.0
    %4120 = vmatpush1.msra.mxu0 0.0
    %4121 = vmatprep.subr.mxu0 0.0
    %4122 = vmatpush1.msra.mxu0 0.0
    %4123 = vmatprep.subr.mxu0 0.0
    %4124 = vmatpush1.msra.mxu0 0.0
    %4125 = vmatprep.subr.mxu0 0.0
    %4126 = vmatpush1.msra.mxu0 0.0
    %4127 = vmatprep.subr.mxu0 0.0
    %4128 = vmatpush1.msra.mxu0 0.0
    %4129 = vmatprep.subr.mxu0 0.0
    %4130 = vmatpush1.msra.mxu0 0.0
    %4131 = vmatprep.subr.mxu0 0.0
    %4132 = vmatpush1.msra.mxu0 0.0
    %4133 = vmatprep.subr.mxu0 0.0
    %4134 = vmatpush1.msra.mxu0 0.0
    %4135 = vmatprep.subr.mxu0 0.0
    %4136 = vmatpush1.msra.mxu0 0.0
    %4137 = vmatprep.subr.mxu0 0.0
    %4138 = vmatpush1.msra.mxu0 0.0
    %4139 = vmatprep.subr.mxu0 0.0
    %4140 = vmatpush1.msra.mxu0 0.0
    %4141 = vmatprep.subr.mxu0 0.0
    %4142 = vmatpush1.msra.mxu0 0.0
    %4143 = vmatprep.subr.mxu0 0.0
    %4144 = vmatpush1.msra.mxu0 0.0
    %4145 = vmatprep.subr.mxu0 0.0
    %4146 = vmatpush1.msra.mxu0 0.0
    %4147 = vmatprep.subr.mxu0 0.0
    %4148 = vmatpush1.msra.mxu0 0.0
    %4149 = vmatprep.mubr.f32.mxu0 0.0
    %4150 = vmatmul.mubr.f32.gmra.mrb[0].mxu0 %v3303
    %v4151 = vpop.f32.mrb[0].mxu0
    %v4152 = vadd.f32 0.0, %v4151
    %v4153 = vpop.f32.mrb[0].mxu0
    %4154 = vmatprep.mubr.f32.mxu0 0.0
    %4155 = vmatmul.mubr.f32.gmra.mrb[0].mxu0 %v3304
    %v4156 = vpop.f32.mrb[0].mxu0
    %v4157 = vadd.f32 0.0, %v4156
    %v4158 = vpop.f32.mrb[0].mxu0
    %4159 = vmatprep.mubr.f32.mxu0 0.0
    %4160 = vmatmul.mubr.f32.gmra.mrb[0].mxu0 %v3305
    %v4161 = vpop.f32.mrb[0].mxu0
    %v4162 = vadd.f32 0.0, %v4161
    %v4163 = vpop.f32.mrb[0].mxu0
    %4164 = vmatprep.mubr.f32.mxu0 0.0
    %4165 = vmatmul.mubr.f32.gmra.mrb[0].mxu0 %v3306
    %v4166 = vpop.f32.mrb[0].mxu0
    %v4167 = vadd.f32 0.0, %v4166
    %v4168 = vpop.f32.mrb[0].mxu0
    %4169 = vmatprep.mubr.f32.mxu0 0.0
    %4170 = vmatmul.mubr.f32.gmra.mrb[0].mxu0 %v3307
    %v4171 = vpop.f32.mrb[0].mxu0
    %v4172 = vpop.f32.mrb[0].mxu0
    %4173 = vmatprep.mubr.f32.mxu0 0.0
    %4174 = vmatmul.mubr.f32.gmra.mrb[0].mxu0 %v3308
    %v4175 = vpop.f32.mrb[0].mxu0
    %v4176 = vpop.f32.mrb[0].mxu0
    %4177 = vmatprep.mubr.f32.mxu0 0.0
    %4178 = vmatmul.mubr.f32.gmra.mrb[0].mxu0 %v3309
    %v4179 = vpop.f32.mrb[0].mxu0
    %v4180 = vpop.f32.mrb[0].mxu0
    %4181 = vmatprep.mubr.f32.mxu0 0.0
    %4182 = vmatmul.mubr.f32.gmra.mrb[0].mxu0 %v3310
    %v4183 = vpop.f32.mrb[0].mxu0
    %v4184 = vpop.f32.mrb[0].mxu0
    %4185 = vmatprep.mubr.f32.mxu0 0.0
    %4186 = vmatmul.mubr.f32.gmra.mrb[0].mxu0 %v3311
    %v4187 = vpop.f32.mrb[0].mxu0
    %v4188 = vadd.f32 0.0, %v4187
    %v4189 = vpop.f32.mrb[0].mxu0
    %4190 = vmatprep.mubr.f32.mxu0 0.0
    %4191 = vmatmul.mubr.f32.gmra.mrb[0].mxu0 %v3312
    %v4192 = vpop.f32.mrb[0].mxu0
    %v4193 = vadd.f32 0.0, %v4192
    %v4194 = vpop.f32.mrb[0].mxu0
    %4195 = vmatprep.mubr.f32.mxu0 0.0
    %4196 = vmatmul.mubr.f32.gmra.mrb[0].mxu0 %v3313
    %v4197 = vpop.f32.mrb[0].mxu0
    %v4198 = vadd.f32 0.0, %v4197
    %v4199 = vpop.f32.mrb[0].mxu0
    %4200 = vmatprep.mubr.f32.mxu0 0.0
    %4201 = vmatmul.mubr.f32.gmra.mrb[0].mxu0 %v3314
    %v4202 = vpop.f32.mrb[0].mxu0
    %v4203 = vadd.f32 0.0, %v4202
    %v4204 = vpop.f32.mrb[0].mxu0
    %4205 = vmatprep.mubr.f32.mxu0 0.0
    %4206 = vmatmul.mubr.f32.gmra.mrb[0].mxu0 %v3798
    %v4207 = vpop.f32.mrb[0].mxu0
    %v4208 = vpop.f32.mrb[0].mxu0
    %4209 = vmatprep.mubr.f32.mxu0 0.0
    %4210 = vmatmul.mubr.f32.gmra.mrb[0].mxu0 %v3799
    %v4211 = vpop.f32.mrb[0].mxu0
    %v4212 = vpop.f32.mrb[0].mxu0
    %4213 = vmatprep.mubr.f32.mxu0 0.0
    %4214 = vmatmul.mubr.f32.gmra.mrb[0].mxu0 %v3800
    %v4215 = vpop.f32.mrb[0].mxu0
    %v4216 = vpop.f32.mrb[0].mxu0
    %4217 = vmatprep.mubr.f32.mxu0 0.0
    %4218 = vmatmul.mubr.f32.gmra.mrb[0].mxu0 %v3801
    %v4219 = vpop.f32.mrb[0].mxu0
    %v4220 = vpop.f32.mrb[0].mxu0
    %4221 = vmatprep.mubr.f32.mxu0 0.0
    %4222 = vmatmul.mubr.f32.gmra.mrb[0].mxu0 %v3802
    %v4223 = vpop.f32.mrb[0].mxu0
    %v4224 = vadd.f32 0.0, %v4223
    %v4225 = vpop.f32.mrb[0].mxu0
    %4226 = vmatprep.mubr.f32.mxu0 0.0
    %4227 = vmatmul.mubr.f32.gmra.mrb[0].mxu0 %v3803
    %v4228 = vpop.f32.mrb[0].mxu0
    %v4229 = vadd.f32 0.0, %v4228
    %v4230 = vpop.f32.mrb[0].mxu0
    %4231 = vmatprep.mubr.f32.mxu0 0.0
    %4232 = vmatmul.mubr.f32.gmra.mrb[0].mxu0 %v3804
    %v4233 = vpop.f32.mrb[0].mxu0
    %v4234 = vadd.f32 0.0, %v4233
    %v4235 = vpop.f32.mrb[0].mxu0
    %4236 = vmatprep.mubr.f32.mxu0 0.0
    %4237 = vmatmul.mubr.f32.gmra.mrb[0].mxu0 %v3805
    %v4238 = vpop.f32.mrb[0].mxu0
    %v4239 = vadd.f32 0.0, %v4238
    %v4240 = vpop.f32.mrb[0].mxu0
    %4241 = vmatprep.mubr.f32.mxu0 0.0
    %4242 = vmatmul.mubr.f32.gmra.mrb[0].mxu0 %v3806
    %v4243 = vpop.f32.mrb[0].mxu0
    %v4244 = vpop.f32.mrb[0].mxu0
    %4245 = vmatprep.mubr.f32.mxu0 0.0
    %4246 = vmatmul.mubr.f32.gmra.mrb[0].mxu0 %v4061
    %v4247 = vpop.f32.mrb[0].mxu0
    %v4248 = vpop.f32.mrb[0].mxu0
    %4249 = vmatprep.mubr.f32.mxu0 0.0
    %4250 = vmatmul.mubr.f32.gmra.mrb[0].mxu0 %v4062
    %v4251 = vpop.f32.mrb[0].mxu0
    %v4252 = vpop.f32.mrb[0].mxu0
    %4253 = vmatprep.mubr.f32.mxu0 0.0
    %4254 = vmatmul.mubr.f32.gmra.mrb[0].mxu0 %v4063
    %v4255 = vpop.f32.mrb[0].mxu0
    %v4256 = vpop.f32.mrb[0].mxu0
    %4257 = vmatprep.mubr.f32.mxu0 0.0
    %4258 = vmatmul.mubr.f32.gmra.mrb[0].mxu0 %v4064
    %v4259 = vpop.f32.mrb[0].mxu0
    %v4260 = vadd.f32 0.0, %v4259
    %v4261 = vpop.f32.mrb[0].mxu0
    %4262 = vmatprep.mubr.f32.mxu0 0.0
    %4263 = vmatmul.mubr.f32.gmra.mrb[0].mxu0 %v4065
    %v4264 = vpop.f32.mrb[0].mxu0
    %v4265 = vadd.f32 0.0, %v4264
    %v4266 = vpop.f32.mrb[0].mxu0
    %4267 = vmatprep.mubr.f32.mxu0 0.0
    %4268 = vmatmul.mubr.f32.gmra.mrb[0].mxu0 %v4066
    %v4269 = vpop.f32.mrb[0].mxu0
    %v4270 = vadd.f32 0.0, %v4269
    %v4271 = vpop.f32.mrb[0].mxu0
    %4272 = vmatprep.mubr.f32.mxu0 0.0
    %4273 = vmatmul.mubr.f32.gmra.mrb[0].mxu0 %v4067
    %v4274 = vpop.f32.mrb[0].mxu0
    %v4275 = vadd.f32 0.0, %v4274
    %v4276 = vpop.f32.mrb[0].mxu0
    %4277 = vdwg.mxu0
    %v4278 = vadd.f32 %v4017, %v4152
    %v4279 = vadd.f32 %v4018, %v4157
    %v4280 = vadd.f32 %v4019, %v4162
    %v4281 = vadd.f32 %v4020, %v4167
    %v4282 = vadd.f32 %v4021, %v4188
    %v4283 = vadd.f32 %v4022, %v4193
    %v4284 = vadd.f32 %v4023, %v4198
    %v4285 = vadd.f32 %v4024, %v4203
    %v4286 = vadd.f32 %v4025, %v4224
    %v4287 = vadd.f32 %v4026, %v4229
    %v4288 = vadd.f32 %v4027, %v4234
    %v4289 = vadd.f32 %v4028, %v4239
    %v4290 = vadd.f32 %v4029, %v4260
    %v4291 = vadd.f32 %v4030, %v4265
    %v4292 = vadd.f32 %v4031, %v4270
    %v4293 = vadd.f32 %v4032, %v4275
    %4295 = vrot.lane.b32.xlu0 %v3174, 64
    %v4296 = vpop.permute.xlu0 %4295
    %v4298 = vsel %vm276, %v3147, %v3238
    %v4299 = vsel %vm276, %v3148, %v3240
    %v4300 = vsel %vm276, %v3149, %v3242
    %v4301 = vsel %vm276, %v3150, %v3244
    %v4302 = vsel %vm276, %v3151, %v3246
    %v4303 = vsel %vm276, %v3152, %v3248
    %v4304 = vsel %vm276, %v3153, %v3250
    %v4305 = vsel %vm276, %v3154, %v3252
    %v4306 = vsel %vm276, %v3155, %v3254
    %v4307 = vsel %vm276, %v3156, %v3256
    %v4308 = vsel %vm276, %v3157, %v3258
    %v4309 = vsel %vm276, %v3158, %v3339
    %v4310 = vsel %vm276, %v3159, %v3341
    %v4311 = vsel %vm276, %v3160, %v3343
    %v4312 = vsel %vm276, %v3161, %v3345
    %v4313 = vsel %vm276, %v3162, %v3347
    %v4314 = vsel %vm276, %v3163, %v3349
    %v4315 = vsel %vm276, %v3164, %v3351
    %v4316 = vsel %vm276, %v3165, %v3793
    %v4317 = vsel %vm276, %v3166, %v3795
    %v4318 = vsel %vm276, %v3167, %v4041
    %v4319 = vsel %vm276, %v3168, %v4043
    %v4320 = vsel %vm276, %v3169, %v4045
    %v4321 = vsel %vm276, %v3170, %v4047
    %v4322 = vsel %vm276, %v3171, %v4049
    %v4323 = vsel %vm276, %v3172, %v4051
    %v4324 = vsel %vm276, %v3173, %v4053
    %v4325 = vsel %vm276, %v3174, %v4296
    %s4326 = scalar_lea.vmem %s4, 512
    %v4327 = vld [vmem:[%s4326] sm:$0xff]
    %v4328 = vld [vmem:[%s4326 + $0x8] sm:$0xff]
    %v4329 = vld [vmem:[%s4326 + $0x10] sm:$0xff]
    %v4330 = vld [vmem:[%s4326 + $0x18] sm:$0xff]
    %v4331 = vld [vmem:[%s4326 + $0x20] sm:$0xff]
    %v4332 = vld [vmem:[%s4326 + $0x28] sm:$0xff]
    %v4333 = vld [vmem:[%s4326 + $0x30] sm:$0xff]
    %v4334 = vld [vmem:[%s4326 + $0x38] sm:$0xff]
    %v4335 = vld [vmem:[%s4326 + $0x40] sm:$0xff]
    %v4336 = vld [vmem:[%s4326 + $0x48] sm:$0xff]
    %v4337 = vld [vmem:[%s4326 + $0x50] sm:$0xff]
    %v4338 = vld [vmem:[%s4326 + $0x58] sm:$0xff]
    %v4339 = vld [vmem:[%s4326 + $0x60] sm:$0xff]
    %v4340 = vld [vmem:[%s4326 + $0x68] sm:$0xff]
    %v4341 = vld [vmem:[%s4326 + $0x70] sm:$0xff]
    %v4342 = vld [vmem:[%s4326 + $0x78] sm:$0xff]
    %4343 = vmatprep.subr.mxu0 0.0
    %4344 = vmatpush1.msra.mxu0 %v4327
    %4345 = vmatprep.subr.mxu0 0.0
    %4346 = vmatpush1.msra.mxu0 %v4328
    %4347 = vmatprep.subr.mxu0 0.0
    %4348 = vmatpush1.msra.mxu0 %v4329
    %4349 = vmatprep.subr.mxu0 0.0
    %4350 = vmatpush1.msra.mxu0 %v4330
    %4351 = vmatprep.subr.mxu0 0.0
    %4352 = vmatpush1.msra.mxu0 %v4331
    %4353 = vmatprep.subr.mxu0 0.0
    %4354 = vmatpush1.msra.mxu0 %v4332
    %4355 = vmatprep.subr.mxu0 0.0
    %4356 = vmatpush1.msra.mxu0 %v4333
    %4357 = vmatprep.subr.mxu0 0.0
    %4358 = vmatpush1.msra.mxu0 %v4334
    %4359 = vmatprep.subr.mxu0 0.0
    %4360 = vmatpush1.msra.mxu0 %v4335
    %4361 = vmatprep.subr.mxu0 0.0
    %4362 = vmatpush1.msra.mxu0 %v4336
    %4363 = vmatprep.subr.mxu0 0.0
    %4364 = vmatpush1.msra.mxu0 %v4337
    %4365 = vmatprep.subr.mxu0 0.0
    %4366 = vmatpush1.msra.mxu0 %v4338
    %4367 = vmatprep.subr.mxu0 0.0
    %4368 = vmatpush1.msra.mxu0 %v4339
    %4369 = vmatprep.subr.mxu0 0.0
    %4370 = vmatpush1.msra.mxu0 %v4340
    %4371 = vmatprep.subr.mxu0 0.0
    %4372 = vmatpush1.msra.mxu0 %v4341
    %4373 = vmatprep.subr.mxu0 0.0
    %4374 = vmatpush1.msra.mxu0 %v4342
    %4375 = vmatprep.subr.mxu0 0.0
    %4376 = vmatpush1.msra.mxu0 0.0
    %4377 = vmatprep.subr.mxu0 0.0
    %4378 = vmatpush1.msra.mxu0 0.0
    %4379 = vmatprep.subr.mxu0 0.0
    %4380 = vmatpush1.msra.mxu0 0.0
    %4381 = vmatprep.subr.mxu0 0.0
    %4382 = vmatpush1.msra.mxu0 0.0
    %4383 = vmatprep.subr.mxu0 0.0
    %4384 = vmatpush1.msra.mxu0 0.0
    %4385 = vmatprep.subr.mxu0 0.0
    %4386 = vmatpush1.msra.mxu0 0.0
    %4387 = vmatprep.subr.mxu0 0.0
    %4388 = vmatpush1.msra.mxu0 0.0
    %4389 = vmatprep.subr.mxu0 0.0
    %4390 = vmatpush1.msra.mxu0 0.0
    %4391 = vmatprep.subr.mxu0 0.0
    %4392 = vmatpush1.msra.mxu0 0.0
    %4393 = vmatprep.subr.mxu0 0.0
    %4394 = vmatpush1.msra.mxu0 0.0
    %4395 = vmatprep.subr.mxu0 0.0
    %4396 = vmatpush1.msra.mxu0 0.0
    %4397 = vmatprep.subr.mxu0 0.0
    %4398 = vmatpush1.msra.mxu0 0.0
    %4399 = vmatprep.subr.mxu0 0.0
    %4400 = vmatpush1.msra.mxu0 0.0
    %4401 = vmatprep.subr.mxu0 0.0
    %4402 = vmatpush1.msra.mxu0 0.0
    %4403 = vmatprep.subr.mxu0 0.0
    %4404 = vmatpush1.msra.mxu0 0.0
    %4405 = vmatprep.subr.mxu0 0.0
    %4406 = vmatpush1.msra.mxu0 0.0
    %4407 = vmatprep.mubr.f32.mxu0 0.0
    %4408 = vmatmul.mubr.f32.gmra.mrb[0].mxu0 %v4298
    %v4409 = vpop.f32.mrb[0].mxu0
    %v4410 = vadd.f32 0.0, %v4409
    %v4411 = vpop.f32.mrb[0].mxu0
    %4412 = vmatprep.mubr.f32.mxu0 0.0
    %4413 = vmatmul.mubr.f32.gmra.mrb[0].mxu0 %v4299
    %v4414 = vpop.f32.mrb[0].mxu0
    %v4415 = vadd.f32 0.0, %v4414
    %v4416 = vpop.f32.mrb[0].mxu0
    %4417 = vmatprep.mubr.f32.mxu0 0.0
    %4418 = vmatmul.mubr.f32.gmra.mrb[0].mxu0 %v4300
    %v4419 = vpop.f32.mrb[0].mxu0
    %v4420 = vadd.f32 0.0, %v4419
    %v4421 = vpop.f32.mrb[0].mxu0
    %4422 = vmatprep.mubr.f32.mxu0 0.0
    %4423 = vmatmul.mubr.f32.gmra.mrb[0].mxu0 %v4301
    %v4424 = vpop.f32.mrb[0].mxu0
    %v4425 = vadd.f32 0.0, %v4424
    %v4426 = vpop.f32.mrb[0].mxu0
    %4427 = vmatprep.mubr.f32.mxu0 0.0
    %4428 = vmatmul.mubr.f32.gmra.mrb[0].mxu0 %v4302
    %v4429 = vpop.f32.mrb[0].mxu0
    %v4430 = vpop.f32.mrb[0].mxu0
    %4431 = vmatprep.mubr.f32.mxu0 0.0
    %4432 = vmatmul.mubr.f32.gmra.mrb[0].mxu0 %v4303
    %v4433 = vpop.f32.mrb[0].mxu0
    %v4434 = vpop.f32.mrb[0].mxu0
    %4435 = vmatprep.mubr.f32.mxu0 0.0
    %4436 = vmatmul.mubr.f32.gmra.mrb[0].mxu0 %v4304
    %v4437 = vpop.f32.mrb[0].mxu0
    %v4438 = vpop.f32.mrb[0].mxu0
    %4439 = vmatprep.mubr.f32.mxu0 0.0
    %4440 = vmatmul.mubr.f32.gmra.mrb[0].mxu0 %v4305
    %v4441 = vpop.f32.mrb[0].mxu0
    %v4442 = vpop.f32.mrb[0].mxu0
    %4443 = vmatprep.mubr.f32.mxu0 0.0
    %4444 = vmatmul.mubr.f32.gmra.mrb[0].mxu0 %v4306
    %v4445 = vpop.f32.mrb[0].mxu0
    %v4446 = vadd.f32 0.0, %v4445
    %v4447 = vpop.f32.mrb[0].mxu0
    %4448 = vmatprep.mubr.f32.mxu0 0.0
    %4449 = vmatmul.mubr.f32.gmra.mrb[0].mxu0 %v4307
    %v4450 = vpop.f32.mrb[0].mxu0
    %v4451 = vadd.f32 0.0, %v4450
    %v4452 = vpop.f32.mrb[0].mxu0
    %4453 = vmatprep.mubr.f32.mxu0 0.0
    %4454 = vmatmul.mubr.f32.gmra.mrb[0].mxu0 %v4308
    %v4455 = vpop.f32.mrb[0].mxu0
    %v4456 = vadd.f32 0.0, %v4455
    %v4457 = vpop.f32.mrb[0].mxu0
    %4458 = vmatprep.mubr.f32.mxu0 0.0
    %4459 = vmatmul.mubr.f32.gmra.mrb[0].mxu0 %v4309
    %v4460 = vpop.f32.mrb[0].mxu0
    %v4461 = vadd.f32 0.0, %v4460
    %v4462 = vpop.f32.mrb[0].mxu0
    %4463 = vmatprep.mubr.f32.mxu0 0.0
    %4464 = vmatmul.mubr.f32.gmra.mrb[0].mxu0 %v4310
    %v4465 = vpop.f32.mrb[0].mxu0
    %v4466 = vpop.f32.mrb[0].mxu0
    %4467 = vmatprep.mubr.f32.mxu0 0.0
    %4468 = vmatmul.mubr.f32.gmra.mrb[0].mxu0 %v4311
    %v4469 = vpop.f32.mrb[0].mxu0
    %v4470 = vpop.f32.mrb[0].mxu0
    %4471 = vmatprep.mubr.f32.mxu0 0.0
    %4472 = vmatmul.mubr.f32.gmra.mrb[0].mxu0 %v4312
    %v4473 = vpop.f32.mrb[0].mxu0
    %v4474 = vpop.f32.mrb[0].mxu0
    %4475 = vmatprep.mubr.f32.mxu0 0.0
    %4476 = vmatmul.mubr.f32.gmra.mrb[0].mxu0 %v4313
    %v4477 = vpop.f32.mrb[0].mxu0
    %v4478 = vpop.f32.mrb[0].mxu0
    %4479 = vmatprep.mubr.f32.mxu0 0.0
    %4480 = vmatmul.mubr.f32.gmra.mrb[0].mxu0 %v4314
    %v4481 = vpop.f32.mrb[0].mxu0
    %v4482 = vadd.f32 0.0, %v4481
    %v4483 = vpop.f32.mrb[0].mxu0
    %4484 = vmatprep.mubr.f32.mxu0 0.0
    %4485 = vmatmul.mubr.f32.gmra.mrb[0].mxu0 %v4315
    %v4486 = vpop.f32.mrb[0].mxu0
    %v4487 = vadd.f32 0.0, %v4486
    %v4488 = vpop.f32.mrb[0].mxu0
    %4489 = vmatprep.mubr.f32.mxu0 0.0
    %4490 = vmatmul.mubr.f32.gmra.mrb[0].mxu0 %v4316
    %v4491 = vpop.f32.mrb[0].mxu0
    %v4492 = vadd.f32 0.0, %v4491
    %v4493 = vpop.f32.mrb[0].mxu0
    %4494 = vmatprep.mubr.f32.mxu0 0.0
    %4495 = vmatmul.mubr.f32.gmra.mrb[0].mxu0 %v4317
    %v4496 = vpop.f32.mrb[0].mxu0
    %v4497 = vadd.f32 0.0, %v4496
    %v4498 = vpop.f32.mrb[0].mxu0
    %4499 = vmatprep.mubr.f32.mxu0 0.0
    %4500 = vmatmul.mubr.f32.gmra.mrb[0].mxu0 %v4318
    %v4501 = vpop.f32.mrb[0].mxu0
    %v4502 = vpop.f32.mrb[0].mxu0
    %4503 = vmatprep.mubr.f32.mxu0 0.0
    %4504 = vmatmul.mubr.f32.gmra.mrb[0].mxu0 %v4319
    %v4505 = vpop.f32.mrb[0].mxu0
    %v4506 = vpop.f32.mrb[0].mxu0
    %4507 = vmatprep.mubr.f32.mxu0 0.0
    %4508 = vmatmul.mubr.f32.gmra.mrb[0].mxu0 %v4320
    %v4509 = vpop.f32.mrb[0].mxu0
    %v4510 = vpop.f32.mrb[0].mxu0
    %4511 = vmatprep.mubr.f32.mxu0 0.0
    %4512 = vmatmul.mubr.f32.gmra.mrb[0].mxu0 %v4321
    %v4513 = vpop.f32.mrb[0].mxu0
    %v4514 = vpop.f32.mrb[0].mxu0
    %4515 = vmatprep.mubr.f32.mxu0 0.0
    %4516 = vmatmul.mubr.f32.gmra.mrb[0].mxu0 %v4322
    %v4517 = vpop.f32.mrb[0].mxu0
    %v4518 = vadd.f32 0.0, %v4517
    %v4519 = vpop.f32.mrb[0].mxu0
    %4520 = vmatprep.mubr.f32.mxu0 0.0
    %4521 = vmatmul.mubr.f32.gmra.mrb[0].mxu0 %v4323
    %v4522 = vpop.f32.mrb[0].mxu0
    %v4523 = vadd.f32 0.0, %v4522
    %v4524 = vpop.f32.mrb[0].mxu0
    %4525 = vmatprep.mubr.f32.mxu0 0.0
    %4526 = vmatmul.mubr.f32.gmra.mrb[0].mxu0 %v4324
    %v4527 = vpop.f32.mrb[0].mxu0
    %v4528 = vadd.f32 0.0, %v4527
    %v4529 = vpop.f32.mrb[0].mxu0
    %4530 = vmatprep.mubr.f32.mxu0 0.0
    %4531 = vmatmul.mubr.f32.gmra.mrb[0].mxu0 %v4325
    %v4532 = vpop.f32.mrb[0].mxu0
    %v4533 = vadd.f32 0.0, %v4532
    %v4534 = vpop.f32.mrb[0].mxu0
    %4535 = vdwg.mxu0
    %v4536 = vadd.f32 %v4278, %v4410
    %v4537 = vadd.f32 %v4279, %v4415
    %v4538 = vadd.f32 %v4280, %v4420
    %v4539 = vadd.f32 %v4281, %v4425
    %v4540 = vadd.f32 %v4282, %v4446
    %v4541 = vadd.f32 %v4283, %v4451
    %v4542 = vadd.f32 %v4284, %v4456
    %v4543 = vadd.f32 %v4285, %v4461
    %v4544 = vadd.f32 %v4286, %v4482
    %v4545 = vadd.f32 %v4287, %v4487
    %v4546 = vadd.f32 %v4288, %v4492
    %v4547 = vadd.f32 %v4289, %v4497
    %v4548 = vadd.f32 %v4290, %v4518
    %v4549 = vadd.f32 %v4291, %v4523
    %v4550 = vadd.f32 %v4292, %v4528
    %v4551 = vadd.f32 %v4293, %v4533
    %v4552 = vld [vmem:[%s5] sm:$0x1]
    %v4554 = vlaneseq
    %v4555 = vshrl.u32 %v4554, 7
    %v4556 = vsub.s32 0, %v4555
    %v4557 = vrot.slane %v4552, %v4556
    %v4559 = vmul.f32 %v4536, %v4557
    %v4560 = vmul.f32 %v4537, %v4557
    %v4561 = vmul.f32 %v4538, %v4557
    %v4562 = vmul.f32 %v4539, %v4557
    %v4563 = vmul.f32 %v4540, %v4557
    %v4564 = vmul.f32 %v4541, %v4557
    %v4565 = vmul.f32 %v4542, %v4557
    %v4566 = vmul.f32 %v4543, %v4557
    %v4567 = vmul.f32 %v4544, %v4557
    %v4568 = vmul.f32 %v4545, %v4557
    %v4569 = vmul.f32 %v4546, %v4557
    %v4570 = vmul.f32 %v4547, %v4557
    %v4571 = vmul.f32 %v4548, %v4557
    %v4572 = vmul.f32 %v4549, %v4557
    %v4573 = vmul.f32 %v4550, %v4557
    %v4574 = vmul.f32 %v4551, %v4557
    %v4575 = vld [vmem:[%s6] sm:$0x1]
    %v4577 = vlaneseq
    %v4578 = vshrl.u32 %v4577, 7
    %v4579 = vsub.s32 0, %v4578
    %v4580 = vrot.slane %v4575, %v4579
    %v4582 = vadd.f32 %v4559, %v4580
    %v4583 = vadd.f32 %v4560, %v4580
    %v4584 = vadd.f32 %v4561, %v4580
    %v4585 = vadd.f32 %v4562, %v4580
    %v4586 = vadd.f32 %v4563, %v4580
    %v4587 = vadd.f32 %v4564, %v4580
    %v4588 = vadd.f32 %v4565, %v4580
    %v4589 = vadd.f32 %v4566, %v4580
    %v4590 = vadd.f32 %v4567, %v4580
    %v4591 = vadd.f32 %v4568, %v4580
    %v4592 = vadd.f32 %v4569, %v4580
    %v4593 = vadd.f32 %v4570, %v4580
    %v4594 = vadd.f32 %v4571, %v4580
    %v4595 = vadd.f32 %v4572, %v4580
    %v4596 = vadd.f32 %v4573, %v4580
    %v4597 = vadd.f32 %v4574, %v4580
    %vm4598 = vcmp.gt.f32.partialorder %v4582, 0.0
    %vm4599 = vcmp.gt.f32.partialorder %v4583, 0.0
    %vm4600 = vcmp.gt.f32.partialorder %v4584, 0.0
    %vm4601 = vcmp.gt.f32.partialorder %v4585, 0.0
    %vm4602 = vcmp.gt.f32.partialorder %v4586, 0.0
    %vm4603 = vcmp.gt.f32.partialorder %v4587, 0.0
    %vm4604 = vcmp.gt.f32.partialorder %v4588, 0.0
    %vm4605 = vcmp.gt.f32.partialorder %v4589, 0.0
    %vm4606 = vcmp.gt.f32.partialorder %v4590, 0.0
    %vm4607 = vcmp.gt.f32.partialorder %v4591, 0.0
    %vm4608 = vcmp.gt.f32.partialorder %v4592, 0.0
    %vm4609 = vcmp.gt.f32.partialorder %v4593, 0.0
    %vm4610 = vcmp.gt.f32.partialorder %v4594, 0.0
    %vm4611 = vcmp.gt.f32.partialorder %v4595, 0.0
    %vm4612 = vcmp.gt.f32.partialorder %v4596, 0.0
    %vm4613 = vcmp.gt.f32.partialorder %v4597, 0.0
    %v4614 = vmul.f32 %v4582, 0.1
    %v4615 = vmul.f32 %v4583, 0.1
    %v4616 = vmul.f32 %v4584, 0.1
    %v4617 = vmul.f32 %v4585, 0.1
    %v4618 = vmul.f32 %v4586, 0.1
    %v4619 = vmul.f32 %v4587, 0.1
    %v4620 = vmul.f32 %v4588, 0.1
    %v4621 = vmul.f32 %v4589, 0.1
    %v4622 = vmul.f32 %v4590, 0.1
    %v4623 = vmul.f32 %v4591, 0.1
    %v4624 = vmul.f32 %v4592, 0.1
    %v4625 = vmul.f32 %v4593, 0.1
    %v4626 = vmul.f32 %v4594, 0.1
    %v4627 = vmul.f32 %v4595, 0.1
    %v4628 = vmul.f32 %v4596, 0.1
    %v4629 = vmul.f32 %v4597, 0.1
    %v4630 = vsel %vm4598, %v4582, %v4614
    %v4631 = vsel %vm4599, %v4583, %v4615
    %v4632 = vsel %vm4600, %v4584, %v4616
    %v4633 = vsel %vm4601, %v4585, %v4617
    %v4634 = vsel %vm4602, %v4586, %v4618
    %v4635 = vsel %vm4603, %v4587, %v4619
    %v4636 = vsel %vm4604, %v4588, %v4620
    %v4637 = vsel %vm4605, %v4589, %v4621
    %v4638 = vsel %vm4606, %v4590, %v4622
    %v4639 = vsel %vm4607, %v4591, %v4623
    %v4640 = vsel %vm4608, %v4592, %v4624
    %v4641 = vsel %vm4609, %v4593, %v4625
    %v4642 = vsel %vm4610, %v4594, %v4626
    %v4643 = vsel %vm4611, %v4595, %v4627
    %v4644 = vsel %vm4612, %v4596, %v4628
    %v4645 = vsel %vm4613, %v4597, %v4629
    %4648 = vrot.lane.b32.xlu0 %v4631, 64
    %v4649 = vpop.permute.xlu0 %4648
    %4650 = vrot.lane.b32.xlu0 %v4632, 64
    %v4651 = vpop.permute.xlu0 %4650
    %v4654 = vsel %vm276, %v4630, %v4649
    %v4655 = vsel %vm276, %v4631, %v4651
    %v4656 = vld [vmem:[%s7] sm:$0xff]
    %v4657 = vld [vmem:[%s7 + $0x8] sm:$0xff]
    %v4658 = vld [vmem:[%s7 + $0x10] sm:$0xff]
    %v4659 = vld [vmem:[%s7 + $0x18] sm:$0xff]
    %v4660 = vld [vmem:[%s7 + $0x20] sm:$0xff]
    %v4661 = vld [vmem:[%s7 + $0x28] sm:$0xff]
    %v4662 = vld [vmem:[%s7 + $0x30] sm:$0xff]
    %v4663 = vld [vmem:[%s7 + $0x38] sm:$0xff]
    %v4664 = vld [vmem:[%s7 + $0x40] sm:$0xff]
    %v4665 = vld [vmem:[%s7 + $0x48] sm:$0xff]
    %v4666 = vld [vmem:[%s7 + $0x50] sm:$0xff]
    %v4667 = vld [vmem:[%s7 + $0x58] sm:$0xff]
    %v4668 = vld [vmem:[%s7 + $0x60] sm:$0xff]
    %v4669 = vld [vmem:[%s7 + $0x68] sm:$0xff]
    %v4670 = vld [vmem:[%s7 + $0x70] sm:$0xff]
    %v4671 = vld [vmem:[%s7 + $0x78] sm:$0xff]
    %4674 = vrot.lane.b32.xlu0 %v4634, 64
    %v4675 = vpop.permute.xlu0 %4674
    %4676 = vrot.lane.b32.xlu0 %v4635, 64
    %v4677 = vpop.permute.xlu0 %4676
    %v4680 = vsel %vm276, %v4632, %v4675
    %v4681 = vsel %vm276, %v4633, %v4677
    %s4682 = scalar_lea.vmem %s7, 128
    %v4683 = vld [vmem:[%s4682] sm:$0xff]
    %v4684 = vld [vmem:[%s4682 + $0x8] sm:$0xff]
    %v4685 = vld [vmem:[%s4682 + $0x10] sm:$0xff]
    %v4686 = vld [vmem:[%s4682 + $0x18] sm:$0xff]
    %v4687 = vld [vmem:[%s4682 + $0x20] sm:$0xff]
    %v4688 = vld [vmem:[%s4682 + $0x28] sm:$0xff]
    %v4689 = vld [vmem:[%s4682 + $0x30] sm:$0xff]
    %v4690 = vld [vmem:[%s4682 + $0x38] sm:$0xff]
    %v4691 = vld [vmem:[%s4682 + $0x40] sm:$0xff]
    %v4692 = vld [vmem:[%s4682 + $0x48] sm:$0xff]
    %v4693 = vld [vmem:[%s4682 + $0x50] sm:$0xff]
    %v4694 = vld [vmem:[%s4682 + $0x58] sm:$0xff]
    %v4695 = vld [vmem:[%s4682 + $0x60] sm:$0xff]
    %v4696 = vld [vmem:[%s4682 + $0x68] sm:$0xff]
    %v4697 = vld [vmem:[%s4682 + $0x70] sm:$0xff]
    %v4698 = vld [vmem:[%s4682 + $0x78] sm:$0xff]
    %4699 = vmatprep.subr.mxu0 0.0
    %4700 = vmatpush1.msra.mxu0 %v4683
    %4701 = vmatprep.subr.mxu0 0.0
    %4702 = vmatpush1.msra.mxu0 %v4684
    %4703 = vmatprep.subr.mxu0 0.0
    %4704 = vmatpush1.msra.mxu0 %v4685
    %4705 = vmatprep.subr.mxu0 0.0
    %4706 = vmatpush1.msra.mxu0 %v4686
    %4707 = vmatprep.subr.mxu0 0.0
    %4708 = vmatpush1.msra.mxu0 %v4687
    %4709 = vmatprep.subr.mxu0 0.0
    %4710 = vmatpush1.msra.mxu0 %v4688
    %4711 = vmatprep.subr.mxu0 0.0
    %4712 = vmatpush1.msra.mxu0 %v4689
    %4713 = vmatprep.subr.mxu0 0.0
    %4714 = vmatpush1.msra.mxu0 %v4690
    %4715 = vmatprep.subr.mxu0 0.0
    %4716 = vmatpush1.msra.mxu0 %v4691
    %4717 = vmatprep.subr.mxu0 0.0
    %4718 = vmatpush1.msra.mxu0 %v4692
    %4719 = vmatprep.subr.mxu0 0.0
    %4720 = vmatpush1.msra.mxu0 %v4693
    %4721 = vmatprep.subr.mxu0 0.0
    %4722 = vmatpush1.msra.mxu0 %v4694
    %4723 = vmatprep.subr.mxu0 0.0
    %4724 = vmatpush1.msra.mxu0 %v4695
    %4725 = vmatprep.subr.mxu0 0.0
    %4726 = vmatpush1.msra.mxu0 %v4696
    %4727 = vmatprep.subr.mxu0 0.0
    %4728 = vmatpush1.msra.mxu0 %v4697
    %4729 = vmatprep.subr.mxu0 0.0
    %4730 = vmatpush1.msra.mxu0 %v4698
    %4731 = vmatprep.subr.mxu0 0.0
    %4732 = vmatpush1.msra.mxu0 0.0
    %4733 = vmatprep.subr.mxu0 0.0
    %4734 = vmatpush1.msra.mxu0 0.0
    %4735 = vmatprep.subr.mxu0 0.0
    %4736 = vmatpush1.msra.mxu0 0.0
    %4737 = vmatprep.subr.mxu0 0.0
    %4738 = vmatpush1.msra.mxu0 0.0
    %4739 = vmatprep.subr.mxu0 0.0
    %4740 = vmatpush1.msra.mxu0 0.0
    %4741 = vmatprep.subr.mxu0 0.0
    %4742 = vmatpush1.msra.mxu0 0.0
    %4743 = vmatprep.subr.mxu0 0.0
    %4744 = vmatpush1.msra.mxu0 0.0
    %4745 = vmatprep.subr.mxu0 0.0
    %4746 = vmatpush1.msra.mxu0 0.0
    %4747 = vmatprep.subr.mxu0 0.0
    %4748 = vmatpush1.msra.mxu0 0.0
    %4749 = vmatprep.subr.mxu0 0.0
    %4750 = vmatpush1.msra.mxu0 0.0
    %4751 = vmatprep.subr.mxu0 0.0
    %4752 = vmatpush1.msra.mxu0 0.0
    %4753 = vmatprep.subr.mxu0 0.0
    %4754 = vmatpush1.msra.mxu0 0.0
    %4755 = vmatprep.subr.mxu0 0.0
    %4756 = vmatpush1.msra.mxu0 0.0
    %4757 = vmatprep.subr.mxu0 0.0
    %4758 = vmatpush1.msra.mxu0 0.0
    %4759 = vmatprep.subr.mxu0 0.0
    %4760 = vmatpush1.msra.mxu0 0.0
    %4761 = vmatprep.subr.mxu0 0.0
    %4762 = vmatpush1.msra.mxu0 0.0
    %4763 = vmatprep.mubr.f32.mxu0 0.0
    %4764 = vmatmul.mubr.f32.gmra.mrb[0].mxu0 %v4680
    %v4765 = vpop.f32.mrb[0].mxu0
    %v4766 = vadd.f32 0.0, %v4765
    %v4767 = vpop.f32.mrb[0].mxu0
    %4768 = vmatprep.mubr.f32.mxu0 0.0
    %4769 = vmatmul.mubr.f32.gmra.mrb[0].mxu0 %v4681
    %v4770 = vpop.f32.mrb[0].mxu0
    %v4771 = vadd.f32 0.0, %v4770
    %v4772 = vpop.f32.mrb[0].mxu0
    %4773 = vdwg.mxu0
    %4774 = vmatprep.subr.mxu0 0.0
    %4775 = vmatpush1.msra.mxu0 %v4656
    %4776 = vmatprep.subr.mxu0 0.0
    %4777 = vmatpush1.msra.mxu0 %v4657
    %4778 = vmatprep.subr.mxu0 0.0
    %4779 = vmatpush1.msra.mxu0 %v4658
    %4780 = vmatprep.subr.mxu0 0.0
    %4781 = vmatpush1.msra.mxu0 %v4659
    %4782 = vmatprep.subr.mxu0 0.0
    %4783 = vmatpush1.msra.mxu0 %v4660
    %4784 = vmatprep.subr.mxu0 0.0
    %4785 = vmatpush1.msra.mxu0 %v4661
    %4786 = vmatprep.subr.mxu0 0.0
    %4787 = vmatpush1.msra.mxu0 %v4662
    %4788 = vmatprep.subr.mxu0 0.0
    %4789 = vmatpush1.msra.mxu0 %v4663
    %4790 = vmatprep.subr.mxu0 0.0
    %4791 = vmatpush1.msra.mxu0 %v4664
    %4792 = vmatprep.subr.mxu0 0.0
    %4793 = vmatpush1.msra.mxu0 %v4665
    %4794 = vmatprep.subr.mxu0 0.0
    %4795 = vmatpush1.msra.mxu0 %v4666
    %4796 = vmatprep.subr.mxu0 0.0
    %4797 = vmatpush1.msra.mxu0 %v4667
    %4798 = vmatprep.subr.mxu0 0.0
    %4799 = vmatpush1.msra.mxu0 %v4668
    %4800 = vmatprep.subr.mxu0 0.0
    %4801 = vmatpush1.msra.mxu0 %v4669
    %4802 = vmatprep.subr.mxu0 0.0
    %4803 = vmatpush1.msra.mxu0 %v4670
    %4804 = vmatprep.subr.mxu0 0.0
    %4805 = vmatpush1.msra.mxu0 %v4671
    %4806 = vmatprep.subr.mxu0 0.0
    %4807 = vmatpush1.msra.mxu0 0.0
    %4808 = vmatprep.subr.mxu0 0.0
    %4809 = vmatpush1.msra.mxu0 0.0
    %4810 = vmatprep.subr.mxu0 0.0
    %4811 = vmatpush1.msra.mxu0 0.0
    %4812 = vmatprep.subr.mxu0 0.0
    %4813 = vmatpush1.msra.mxu0 0.0
    %4814 = vmatprep.subr.mxu0 0.0
    %4815 = vmatpush1.msra.mxu0 0.0
    %4816 = vmatprep.subr.mxu0 0.0
    %4817 = vmatpush1.msra.mxu0 0.0
    %4818 = vmatprep.subr.mxu0 0.0
    %4819 = vmatpush1.msra.mxu0 0.0
    %4820 = vmatprep.subr.mxu0 0.0
    %4821 = vmatpush1.msra.mxu0 0.0
    %4822 = vmatprep.subr.mxu0 0.0
    %4823 = vmatpush1.msra.mxu0 0.0
    %4824 = vmatprep.subr.mxu0 0.0
    %4825 = vmatpush1.msra.mxu0 0.0
    %4826 = vmatprep.subr.mxu0 0.0
    %4827 = vmatpush1.msra.mxu0 0.0
    %4828 = vmatprep.subr.mxu0 0.0
    %4829 = vmatpush1.msra.mxu0 0.0
    %4830 = vmatprep.subr.mxu0 0.0
    %4831 = vmatpush1.msra.mxu0 0.0
    %4832 = vmatprep.subr.mxu0 0.0
    %4833 = vmatpush1.msra.mxu0 0.0
    %4834 = vmatprep.subr.mxu0 0.0
    %4835 = vmatpush1.msra.mxu0 0.0
    %4836 = vmatprep.subr.mxu0 0.0
    %4837 = vmatpush1.msra.mxu0 0.0
    %4838 = vmatprep.mubr.f32.mxu0 0.0
    %4839 = vmatmul.mubr.f32.gmra.mrb[0].mxu0 %v4654
    %v4840 = vpop.f32.mrb[0].mxu0
    %v4841 = vadd.f32 %v4766, %v4840
    %v4842 = vpop.f32.mrb[0].mxu0
    %4843 = vmatprep.mubr.f32.mxu0 0.0
    %4844 = vmatmul.mubr.f32.gmra.mrb[0].mxu0 %v4655
    %v4845 = vpop.f32.mrb[0].mxu0
    %v4846 = vadd.f32 %v4771, %v4845
    %v4847 = vpop.f32.mrb[0].mxu0
    %4848 = vdwg.mxu0
    %4851 = vrot.lane.b32.xlu0 %v4636, 64
    %v4852 = vpop.permute.xlu0 %4851
    %4853 = vrot.lane.b32.xlu0 %v4637, 64
    %v4854 = vpop.permute.xlu0 %4853
    %v4857 = vsel %vm276, %v4635, %v4852
    %v4858 = vsel %vm276, %v4636, %v4854
    %s4859 = scalar_lea.vmem %s7, 256
    %v4860 = vld [vmem:[%s4859] sm:$0xff]
    %v4861 = vld [vmem:[%s4859 + $0x8] sm:$0xff]
    %v4862 = vld [vmem:[%s4859 + $0x10] sm:$0xff]
    %v4863 = vld [vmem:[%s4859 + $0x18] sm:$0xff]
    %v4864 = vld [vmem:[%s4859 + $0x20] sm:$0xff]
    %v4865 = vld [vmem:[%s4859 + $0x28] sm:$0xff]
    %v4866 = vld [vmem:[%s4859 + $0x30] sm:$0xff]
    %v4867 = vld [vmem:[%s4859 + $0x38] sm:$0xff]
    %v4868 = vld [vmem:[%s4859 + $0x40] sm:$0xff]
    %v4869 = vld [vmem:[%s4859 + $0x48] sm:$0xff]
    %v4870 = vld [vmem:[%s4859 + $0x50] sm:$0xff]
    %v4871 = vld [vmem:[%s4859 + $0x58] sm:$0xff]
    %v4872 = vld [vmem:[%s4859 + $0x60] sm:$0xff]
    %v4873 = vld [vmem:[%s4859 + $0x68] sm:$0xff]
    %v4874 = vld [vmem:[%s4859 + $0x70] sm:$0xff]
    %v4875 = vld [vmem:[%s4859 + $0x78] sm:$0xff]
    %4876 = vmatprep.subr.mxu0 0.0
    %4877 = vmatpush1.msra.mxu0 %v4860
    %4878 = vmatprep.subr.mxu0 0.0
    %4879 = vmatpush1.msra.mxu0 %v4861
    %4880 = vmatprep.subr.mxu0 0.0
    %4881 = vmatpush1.msra.mxu0 %v4862
    %4882 = vmatprep.subr.mxu0 0.0
    %4883 = vmatpush1.msra.mxu0 %v4863
    %4884 = vmatprep.subr.mxu0 0.0
    %4885 = vmatpush1.msra.mxu0 %v4864
    %4886 = vmatprep.subr.mxu0 0.0
    %4887 = vmatpush1.msra.mxu0 %v4865
    %4888 = vmatprep.subr.mxu0 0.0
    %4889 = vmatpush1.msra.mxu0 %v4866
    %4890 = vmatprep.subr.mxu0 0.0
    %4891 = vmatpush1.msra.mxu0 %v4867
    %4892 = vmatprep.subr.mxu0 0.0
    %4893 = vmatpush1.msra.mxu0 %v4868
    %4894 = vmatprep.subr.mxu0 0.0
    %4895 = vmatpush1.msra.mxu0 %v4869
    %4896 = vmatprep.subr.mxu0 0.0
    %4897 = vmatpush1.msra.mxu0 %v4870
    %4898 = vmatprep.subr.mxu0 0.0
    %4899 = vmatpush1.msra.mxu0 %v4871
    %4900 = vmatprep.subr.mxu0 0.0
    %4901 = vmatpush1.msra.mxu0 %v4872
    %4902 = vmatprep.subr.mxu0 0.0
    %4903 = vmatpush1.msra.mxu0 %v4873
    %4904 = vmatprep.subr.mxu0 0.0
    %4905 = vmatpush1.msra.mxu0 %v4874
    %4906 = vmatprep.subr.mxu0 0.0
    %4907 = vmatpush1.msra.mxu0 %v4875
    %4908 = vmatprep.subr.mxu0 0.0
    %4909 = vmatpush1.msra.mxu0 0.0
    %4910 = vmatprep.subr.mxu0 0.0
    %4911 = vmatpush1.msra.mxu0 0.0
    %4912 = vmatprep.subr.mxu0 0.0
    %4913 = vmatpush1.msra.mxu0 0.0
    %4914 = vmatprep.subr.mxu0 0.0
    %4915 = vmatpush1.msra.mxu0 0.0
    %4916 = vmatprep.subr.mxu0 0.0
    %4917 = vmatpush1.msra.mxu0 0.0
    %4918 = vmatprep.subr.mxu0 0.0
    %4919 = vmatpush1.msra.mxu0 0.0
    %4920 = vmatprep.subr.mxu0 0.0
    %4921 = vmatpush1.msra.mxu0 0.0
    %4922 = vmatprep.subr.mxu0 0.0
    %4923 = vmatpush1.msra.mxu0 0.0
    %4924 = vmatprep.subr.mxu0 0.0
    %4925 = vmatpush1.msra.mxu0 0.0
    %4926 = vmatprep.subr.mxu0 0.0
    %4927 = vmatpush1.msra.mxu0 0.0
    %4928 = vmatprep.subr.mxu0 0.0
    %4929 = vmatpush1.msra.mxu0 0.0
    %4930 = vmatprep.subr.mxu0 0.0
    %4931 = vmatpush1.msra.mxu0 0.0
    %4932 = vmatprep.subr.mxu0 0.0
    %4933 = vmatpush1.msra.mxu0 0.0
    %4934 = vmatprep.subr.mxu0 0.0
    %4935 = vmatpush1.msra.mxu0 0.0
    %4936 = vmatprep.subr.mxu0 0.0
    %4937 = vmatpush1.msra.mxu0 0.0
    %4938 = vmatprep.subr.mxu0 0.0
    %4939 = vmatpush1.msra.mxu0 0.0
    %4940 = vmatprep.mubr.f32.mxu0 0.0
    %4941 = vmatmul.mubr.f32.gmra.mrb[0].mxu0 %v4857
    %v4942 = vpop.f32.mrb[0].mxu0
    %v4943 = vadd.f32 0.0, %v4942
    %v4944 = vpop.f32.mrb[0].mxu0
    %4945 = vmatprep.mubr.f32.mxu0 0.0
    %4946 = vmatmul.mubr.f32.gmra.mrb[0].mxu0 %v4858
    %v4947 = vpop.f32.mrb[0].mxu0
    %v4948 = vadd.f32 0.0, %v4947
    %v4949 = vpop.f32.mrb[0].mxu0
    %4950 = vdwg.mxu0
    %v4951 = vadd.f32 %v4841, %v4943
    %v4952 = vadd.f32 %v4846, %v4948
    %4955 = vrot.lane.b32.xlu0 %v4639, 64
    %v4956 = vpop.permute.xlu0 %4955
    %4957 = vrot.lane.b32.xlu0 %v4640, 64
    %v4958 = vpop.permute.xlu0 %4957
    %v4961 = vsel %vm276, %v4638, %v4956
    %v4962 = vsel %vm276, %v4639, %v4958
    %s4963 = scalar_lea.vmem %s7, 384
    %v4964 = vld [vmem:[%s4963] sm:$0xff]
    %v4965 = vld [vmem:[%s4963 + $0x8] sm:$0xff]
    %v4966 = vld [vmem:[%s4963 + $0x10] sm:$0xff]
    %v4967 = vld [vmem:[%s4963 + $0x18] sm:$0xff]
    %v4968 = vld [vmem:[%s4963 + $0x20] sm:$0xff]
    %v4969 = vld [vmem:[%s4963 + $0x28] sm:$0xff]
    %v4970 = vld [vmem:[%s4963 + $0x30] sm:$0xff]
    %v4971 = vld [vmem:[%s4963 + $0x38] sm:$0xff]
    %v4972 = vld [vmem:[%s4963 + $0x40] sm:$0xff]
    %v4973 = vld [vmem:[%s4963 + $0x48] sm:$0xff]
    %v4974 = vld [vmem:[%s4963 + $0x50] sm:$0xff]
    %v4975 = vld [vmem:[%s4963 + $0x58] sm:$0xff]
    %v4976 = vld [vmem:[%s4963 + $0x60] sm:$0xff]
    %v4977 = vld [vmem:[%s4963 + $0x68] sm:$0xff]
    %v4978 = vld [vmem:[%s4963 + $0x70] sm:$0xff]
    %v4979 = vld [vmem:[%s4963 + $0x78] sm:$0xff]
    %4980 = vmatprep.subr.mxu0 0.0
    %4981 = vmatpush1.msra.mxu0 %v4964
    %4982 = vmatprep.subr.mxu0 0.0
    %4983 = vmatpush1.msra.mxu0 %v4965
    %4984 = vmatprep.subr.mxu0 0.0
    %4985 = vmatpush1.msra.mxu0 %v4966
    %4986 = vmatprep.subr.mxu0 0.0
    %4987 = vmatpush1.msra.mxu0 %v4967
    %4988 = vmatprep.subr.mxu0 0.0
    %4989 = vmatpush1.msra.mxu0 %v4968
    %4990 = vmatprep.subr.mxu0 0.0
    %4991 = vmatpush1.msra.mxu0 %v4969
    %4992 = vmatprep.subr.mxu0 0.0
    %4993 = vmatpush1.msra.mxu0 %v4970
    %4994 = vmatprep.subr.mxu0 0.0
    %4995 = vmatpush1.msra.mxu0 %v4971
    %4996 = vmatprep.subr.mxu0 0.0
    %4997 = vmatpush1.msra.mxu0 %v4972
    %4998 = vmatprep.subr.mxu0 0.0
    %4999 = vmatpush1.msra.mxu0 %v4973
    %5000 = vmatprep.subr.mxu0 0.0
    %5001 = vmatpush1.msra.mxu0 %v4974
    %5002 = vmatprep.subr.mxu0 0.0
    %5003 = vmatpush1.msra.mxu0 %v4975
    %5004 = vmatprep.subr.mxu0 0.0
    %5005 = vmatpush1.msra.mxu0 %v4976
    %5006 = vmatprep.subr.mxu0 0.0
    %5007 = vmatpush1.msra.mxu0 %v4977
    %5008 = vmatprep.subr.mxu0 0.0
    %5009 = vmatpush1.msra.mxu0 %v4978
    %5010 = vmatprep.subr.mxu0 0.0
    %5011 = vmatpush1.msra.mxu0 %v4979
    %5012 = vmatprep.subr.mxu0 0.0
    %5013 = vmatpush1.msra.mxu0 0.0
    %5014 = vmatprep.subr.mxu0 0.0
    %5015 = vmatpush1.msra.mxu0 0.0
    %5016 = vmatprep.subr.mxu0 0.0
    %5017 = vmatpush1.msra.mxu0 0.0
    %5018 = vmatprep.subr.mxu0 0.0
    %5019 = vmatpush1.msra.mxu0 0.0
    %5020 = vmatprep.subr.mxu0 0.0
    %5021 = vmatpush1.msra.mxu0 0.0
    %5022 = vmatprep.subr.mxu0 0.0
    %5023 = vmatpush1.msra.mxu0 0.0
    %5024 = vmatprep.subr.mxu0 0.0
    %5025 = vmatpush1.msra.mxu0 0.0
    %5026 = vmatprep.subr.mxu0 0.0
    %5027 = vmatpush1.msra.mxu0 0.0
    %5028 = vmatprep.subr.mxu0 0.0
    %5029 = vmatpush1.msra.mxu0 0.0
    %5030 = vmatprep.subr.mxu0 0.0
    %5031 = vmatpush1.msra.mxu0 0.0
    %5032 = vmatprep.subr.mxu0 0.0
    %5033 = vmatpush1.msra.mxu0 0.0
    %5034 = vmatprep.subr.mxu0 0.0
    %5035 = vmatpush1.msra.mxu0 0.0
    %5036 = vmatprep.subr.mxu0 0.0
    %5037 = vmatpush1.msra.mxu0 0.0
    %5038 = vmatprep.subr.mxu0 0.0
    %5039 = vmatpush1.msra.mxu0 0.0
    %5040 = vmatprep.subr.mxu0 0.0
    %5041 = vmatpush1.msra.mxu0 0.0
    %5042 = vmatprep.subr.mxu0 0.0
    %5043 = vmatpush1.msra.mxu0 0.0
    %5044 = vmatprep.mubr.f32.mxu0 0.0
    %5045 = vmatmul.mubr.f32.gmra.mrb[0].mxu0 %v4961
    %v5046 = vpop.f32.mrb[0].mxu0
    %v5047 = vadd.f32 0.0, %v5046
    %v5048 = vpop.f32.mrb[0].mxu0
    %5049 = vmatprep.mubr.f32.mxu0 0.0
    %5050 = vmatmul.mubr.f32.gmra.mrb[0].mxu0 %v4962
    %v5051 = vpop.f32.mrb[0].mxu0
    %v5052 = vadd.f32 0.0, %v5051
    %v5053 = vpop.f32.mrb[0].mxu0
    %5054 = vdwg.mxu0
    %v5055 = vadd.f32 %v4951, %v5047
    %v5056 = vadd.f32 %v4952, %v5052
    %5058 = vrot.lane.b32.xlu0 %v4641, 64
    %v5059 = vpop.permute.xlu0 %5058
    %v5061 = vsel %vm276, %v4640, %v4958
    %v5062 = vsel %vm276, %v4641, %v5059
    %s5063 = scalar_lea.vmem %s7, 512
    %v5064 = vld [vmem:[%s5063] sm:$0xff]
    %v5065 = vld [vmem:[%s5063 + $0x8] sm:$0xff]
    %v5066 = vld [vmem:[%s5063 + $0x10] sm:$0xff]
    %v5067 = vld [vmem:[%s5063 + $0x18] sm:$0xff]
    %v5068 = vld [vmem:[%s5063 + $0x20] sm:$0xff]
    %v5069 = vld [vmem:[%s5063 + $0x28] sm:$0xff]
    %v5070 = vld [vmem:[%s5063 + $0x30] sm:$0xff]
    %v5071 = vld [vmem:[%s5063 + $0x38] sm:$0xff]
    %v5072 = vld [vmem:[%s5063 + $0x40] sm:$0xff]
    %v5073 = vld [vmem:[%s5063 + $0x48] sm:$0xff]
    %v5074 = vld [vmem:[%s5063 + $0x50] sm:$0xff]
    %v5075 = vld [vmem:[%s5063 + $0x58] sm:$0xff]
    %v5076 = vld [vmem:[%s5063 + $0x60] sm:$0xff]
    %v5077 = vld [vmem:[%s5063 + $0x68] sm:$0xff]
    %v5078 = vld [vmem:[%s5063 + $0x70] sm:$0xff]
    %v5079 = vld [vmem:[%s5063 + $0x78] sm:$0xff]
    %5080 = vmatprep.subr.mxu0 0.0
    %5081 = vmatpush1.msra.mxu0 %v5064
    %5082 = vmatprep.subr.mxu0 0.0
    %5083 = vmatpush1.msra.mxu0 %v5065
    %5084 = vmatprep.subr.mxu0 0.0
    %5085 = vmatpush1.msra.mxu0 %v5066
    %5086 = vmatprep.subr.mxu0 0.0
    %5087 = vmatpush1.msra.mxu0 %v5067
    %5088 = vmatprep.subr.mxu0 0.0
    %5089 = vmatpush1.msra.mxu0 %v5068
    %5090 = vmatprep.subr.mxu0 0.0
    %5091 = vmatpush1.msra.mxu0 %v5069
    %5092 = vmatprep.subr.mxu0 0.0
    %5093 = vmatpush1.msra.mxu0 %v5070
    %5094 = vmatprep.subr.mxu0 0.0
    %5095 = vmatpush1.msra.mxu0 %v5071
    %5096 = vmatprep.subr.mxu0 0.0
    %5097 = vmatpush1.msra.mxu0 %v5072
    %5098 = vmatprep.subr.mxu0 0.0
    %5099 = vmatpush1.msra.mxu0 %v5073
    %5100 = vmatprep.subr.mxu0 0.0
    %5101 = vmatpush1.msra.mxu0 %v5074
    %5102 = vmatprep.subr.mxu0 0.0
    %5103 = vmatpush1.msra.mxu0 %v5075
    %5104 = vmatprep.subr.mxu0 0.0
    %5105 = vmatpush1.msra.mxu0 %v5076
    %5106 = vmatprep.subr.mxu0 0.0
    %5107 = vmatpush1.msra.mxu0 %v5077
    %5108 = vmatprep.subr.mxu0 0.0
    %5109 = vmatpush1.msra.mxu0 %v5078
    %5110 = vmatprep.subr.mxu0 0.0
    %5111 = vmatpush1.msra.mxu0 %v5079
    %5112 = vmatprep.subr.mxu0 0.0
    %5113 = vmatpush1.msra.mxu0 0.0
    %5114 = vmatprep.subr.mxu0 0.0
    %5115 = vmatpush1.msra.mxu0 0.0
    %5116 = vmatprep.subr.mxu0 0.0
    %5117 = vmatpush1.msra.mxu0 0.0
    %5118 = vmatprep.subr.mxu0 0.0
    %5119 = vmatpush1.msra.mxu0 0.0
    %5120 = vmatprep.subr.mxu0 0.0
    %5121 = vmatpush1.msra.mxu0 0.0
    %5122 = vmatprep.subr.mxu0 0.0
    %5123 = vmatpush1.msra.mxu0 0.0
    %5124 = vmatprep.subr.mxu0 0.0
    %5125 = vmatpush1.msra.mxu0 0.0
    %5126 = vmatprep.subr.mxu0 0.0
    %5127 = vmatpush1.msra.mxu0 0.0
    %5128 = vmatprep.subr.mxu0 0.0
    %5129 = vmatpush1.msra.mxu0 0.0
    %5130 = vmatprep.subr.mxu0 0.0
    %5131 = vmatpush1.msra.mxu0 0.0
    %5132 = vmatprep.subr.mxu0 0.0
    %5133 = vmatpush1.msra.mxu0 0.0
    %5134 = vmatprep.subr.mxu0 0.0
    %5135 = vmatpush1.msra.mxu0 0.0
    %5136 = vmatprep.subr.mxu0 0.0
    %5137 = vmatpush1.msra.mxu0 0.0
    %5138 = vmatprep.subr.mxu0 0.0
    %5139 = vmatpush1.msra.mxu0 0.0
    %5140 = vmatprep.subr.mxu0 0.0
    %5141 = vmatpush1.msra.mxu0 0.0
    %5142 = vmatprep.subr.mxu0 0.0
    %5143 = vmatpush1.msra.mxu0 0.0
    %5144 = vmatprep.mubr.f32.mxu0 0.0
    %5145 = vmatmul.mubr.f32.gmra.mrb[0].mxu0 %v5061
    %v5146 = vpop.f32.mrb[0].mxu0
    %v5147 = vadd.f32 0.0, %v5146
    %v5148 = vpop.f32.mrb[0].mxu0
    %5149 = vmatprep.mubr.f32.mxu0 0.0
    %5150 = vmatmul.mubr.f32.gmra.mrb[0].mxu0 %v5062
    %v5151 = vpop.f32.mrb[0].mxu0
    %v5152 = vadd.f32 0.0, %v5151
    %v5153 = vpop.f32.mrb[0].mxu0
    %5154 = vdwg.mxu0
    %v5155 = vadd.f32 %v5055, %v5147
    %v5156 = vadd.f32 %v5056, %v5152
    %v5157 = vld [vmem:[%s8] sm:$0x1]
    %v5159 = vlaneseq
    %v5160 = vshrl.u32 %v5159, 7
    %v5161 = vsub.s32 0, %v5160
    %v5162 = vrot.slane %v5157, %v5161
    %v5164 = vmul.f32 %v5155, %v5162
    %v5165 = vmul.f32 %v5156, %v5162
    %v5166 = vld [vmem:[%s9] sm:$0x1]
    %v5168 = vlaneseq
    %v5169 = vshrl.u32 %v5168, 7
    %v5170 = vsub.s32 0, %v5169
    %v5171 = vrot.slane %v5166, %v5170
    %v5173 = vadd.f32 %v5164, %v5171
    %v5174 = vadd.f32 %v5165, %v5171
    %vm5175 = vcmp.gt.f32.partialorder %v5173, 0.0
    %vm5176 = vcmp.gt.f32.partialorder %v5174, 0.0
    %v5177 = vmul.f32 %v5173, 0.1
    %v5178 = vmul.f32 %v5174, 0.1
    %v5179 = vsel %vm5175, %v5173, %v5177
    %v5180 = vsel %vm5176, %v5174, %v5178
    %v5181 = vsel %vm276, %v4634, %v4677
    %5183 = vrot.lane.b32.xlu0 %v4638, 64
    %v5184 = vpop.permute.xlu0 %5183
    %v5186 = vsel %vm276, %v4636, %v5184
    %v5187 = vsel %vm276, %v4637, %v4956
    %5188 = vmatprep.subr.mxu0 0.0
    %5189 = vmatpush1.msra.mxu0 %v4683
    %5190 = vmatprep.subr.mxu0 0.0
    %5191 = vmatpush1.msra.mxu0 %v4684
    %5192 = vmatprep.subr.mxu0 0.0
    %5193 = vmatpush1.msra.mxu0 %v4685
    %5194 = vmatprep.subr.mxu0 0.0
    %5195 = vmatpush1.msra.mxu0 %v4686
    %5196 = vmatprep.subr.mxu0 0.0
    %5197 = vmatpush1.msra.mxu0 %v4687
    %5198 = vmatprep.subr.mxu0 0.0
    %5199 = vmatpush1.msra.mxu0 %v4688
    %5200 = vmatprep.subr.mxu0 0.0
    %5201 = vmatpush1.msra.mxu0 %v4689
    %5202 = vmatprep.subr.mxu0 0.0
    %5203 = vmatpush1.msra.mxu0 %v4690
    %5204 = vmatprep.subr.mxu0 0.0
    %5205 = vmatpush1.msra.mxu0 %v4691
    %5206 = vmatprep.subr.mxu0 0.0
    %5207 = vmatpush1.msra.mxu0 %v4692
    %5208 = vmatprep.subr.mxu0 0.0
    %5209 = vmatpush1.msra.mxu0 %v4693
    %5210 = vmatprep.subr.mxu0 0.0
    %5211 = vmatpush1.msra.mxu0 %v4694
    %5212 = vmatprep.subr.mxu0 0.0
    %5213 = vmatpush1.msra.mxu0 %v4695
    %5214 = vmatprep.subr.mxu0 0.0
    %5215 = vmatpush1.msra.mxu0 %v4696
    %5216 = vmatprep.subr.mxu0 0.0
    %5217 = vmatpush1.msra.mxu0 %v4697
    %5218 = vmatprep.subr.mxu0 0.0
    %5219 = vmatpush1.msra.mxu0 %v4698
    %5220 = vmatprep.subr.mxu0 0.0
    %5221 = vmatpush1.msra.mxu0 0.0
    %5222 = vmatprep.subr.mxu0 0.0
    %5223 = vmatpush1.msra.mxu0 0.0
    %5224 = vmatprep.subr.mxu0 0.0
    %5225 = vmatpush1.msra.mxu0 0.0
    %5226 = vmatprep.subr.mxu0 0.0
    %5227 = vmatpush1.msra.mxu0 0.0
    %5228 = vmatprep.subr.mxu0 0.0
    %5229 = vmatpush1.msra.mxu0 0.0
    %5230 = vmatprep.subr.mxu0 0.0
    %5231 = vmatpush1.msra.mxu0 0.0
    %5232 = vmatprep.subr.mxu0 0.0
    %5233 = vmatpush1.msra.mxu0 0.0
    %5234 = vmatprep.subr.mxu0 0.0
    %5235 = vmatpush1.msra.mxu0 0.0
    %5236 = vmatprep.subr.mxu0 0.0
    %5237 = vmatpush1.msra.mxu0 0.0
    %5238 = vmatprep.subr.mxu0 0.0
    %5239 = vmatpush1.msra.mxu0 0.0
    %5240 = vmatprep.subr.mxu0 0.0
    %5241 = vmatpush1.msra.mxu0 0.0
    %5242 = vmatprep.subr.mxu0 0.0
    %5243 = vmatpush1.msra.mxu0 0.0
    %5244 = vmatprep.subr.mxu0 0.0
    %5245 = vmatpush1.msra.mxu0 0.0
    %5246 = vmatprep.subr.mxu0 0.0
    %5247 = vmatpush1.msra.mxu0 0.0
    %5248 = vmatprep.subr.mxu0 0.0
    %5249 = vmatpush1.msra.mxu0 0.0
    %5250 = vmatprep.subr.mxu0 0.0
    %5251 = vmatpush1.msra.mxu0 0.0
    %5252 = vmatprep.mubr.f32.mxu0 0.0
    %5253 = vmatmul.mubr.f32.gmra.mrb[0].mxu0 %v5186
    %v5254 = vpop.f32.mrb[0].mxu0
    %v5255 = vadd.f32 0.0, %v5254
    %v5256 = vpop.f32.mrb[0].mxu0
    %5257 = vmatprep.mubr.f32.mxu0 0.0
    %5258 = vmatmul.mubr.f32.gmra.mrb[0].mxu0 %v5187
    %v5259 = vpop.f32.mrb[0].mxu0
    %v5260 = vadd.f32 0.0, %v5259
    %v5261 = vpop.f32.mrb[0].mxu0
    %5262 = vdwg.mxu0
    %5263 = vmatprep.subr.mxu0 0.0
    %5264 = vmatpush1.msra.mxu0 %v4656
    %5265 = vmatprep.subr.mxu0 0.0
    %5266 = vmatpush1.msra.mxu0 %v4657
    %5267 = vmatprep.subr.mxu0 0.0
    %5268 = vmatpush1.msra.mxu0 %v4658
    %5269 = vmatprep.subr.mxu0 0.0
    %5270 = vmatpush1.msra.mxu0 %v4659
    %5271 = vmatprep.subr.mxu0 0.0
    %5272 = vmatpush1.msra.mxu0 %v4660
    %5273 = vmatprep.subr.mxu0 0.0
    %5274 = vmatpush1.msra.mxu0 %v4661
    %5275 = vmatprep.subr.mxu0 0.0
    %5276 = vmatpush1.msra.mxu0 %v4662
    %5277 = vmatprep.subr.mxu0 0.0
    %5278 = vmatpush1.msra.mxu0 %v4663
    %5279 = vmatprep.subr.mxu0 0.0
    %5280 = vmatpush1.msra.mxu0 %v4664
    %5281 = vmatprep.subr.mxu0 0.0
    %5282 = vmatpush1.msra.mxu0 %v4665
    %5283 = vmatprep.subr.mxu0 0.0
    %5284 = vmatpush1.msra.mxu0 %v4666
    %5285 = vmatprep.subr.mxu0 0.0
    %5286 = vmatpush1.msra.mxu0 %v4667
    %5287 = vmatprep.subr.mxu0 0.0
    %5288 = vmatpush1.msra.mxu0 %v4668
    %5289 = vmatprep.subr.mxu0 0.0
    %5290 = vmatpush1.msra.mxu0 %v4669
    %5291 = vmatprep.subr.mxu0 0.0
    %5292 = vmatpush1.msra.mxu0 %v4670
    %5293 = vmatprep.subr.mxu0 0.0
    %5294 = vmatpush1.msra.mxu0 %v4671
    %5295 = vmatprep.subr.mxu0 0.0
    %5296 = vmatpush1.msra.mxu0 0.0
    %5297 = vmatprep.subr.mxu0 0.0
    %5298 = vmatpush1.msra.mxu0 0.0
    %5299 = vmatprep.subr.mxu0 0.0
    %5300 = vmatpush1.msra.mxu0 0.0
    %5301 = vmatprep.subr.mxu0 0.0
    %5302 = vmatpush1.msra.mxu0 0.0
    %5303 = vmatprep.subr.mxu0 0.0
    %5304 = vmatpush1.msra.mxu0 0.0
    %5305 = vmatprep.subr.mxu0 0.0
    %5306 = vmatpush1.msra.mxu0 0.0
    %5307 = vmatprep.subr.mxu0 0.0
    %5308 = vmatpush1.msra.mxu0 0.0
    %5309 = vmatprep.subr.mxu0 0.0
    %5310 = vmatpush1.msra.mxu0 0.0
    %5311 = vmatprep.subr.mxu0 0.0
    %5312 = vmatpush1.msra.mxu0 0.0
    %5313 = vmatprep.subr.mxu0 0.0
    %5314 = vmatpush1.msra.mxu0 0.0
    %5315 = vmatprep.subr.mxu0 0.0
    %5316 = vmatpush1.msra.mxu0 0.0
    %5317 = vmatprep.subr.mxu0 0.0
    %5318 = vmatpush1.msra.mxu0 0.0
    %5319 = vmatprep.subr.mxu0 0.0
    %5320 = vmatpush1.msra.mxu0 0.0
    %5321 = vmatprep.subr.mxu0 0.0
    %5322 = vmatpush1.msra.mxu0 0.0
    %5323 = vmatprep.subr.mxu0 0.0
    %5324 = vmatpush1.msra.mxu0 0.0
    %5325 = vmatprep.subr.mxu0 0.0
    %5326 = vmatpush1.msra.mxu0 0.0
    %5327 = vmatprep.mubr.f32.mxu0 0.0
    %5328 = vmatmul.mubr.f32.gmra.mrb[0].mxu0 %v5181
    %v5329 = vpop.f32.mrb[0].mxu0
    %v5330 = vadd.f32 %v5255, %v5329
    %v5331 = vpop.f32.mrb[0].mxu0
    %5332 = vmatprep.mubr.f32.mxu0 0.0
    %5333 = vmatmul.mubr.f32.gmra.mrb[0].mxu0 %v4857
    %v5334 = vpop.f32.mrb[0].mxu0
    %v5335 = vadd.f32 %v5260, %v5334
    %v5336 = vpop.f32.mrb[0].mxu0
    %5337 = vdwg.mxu0
    %v5338 = vsel %vm276, %v4640, %v5059
    %5339 = vmatprep.subr.mxu0 0.0
    %5340 = vmatpush1.msra.mxu0 %v4860
    %5341 = vmatprep.subr.mxu0 0.0
    %5342 = vmatpush1.msra.mxu0 %v4861
    %5343 = vmatprep.subr.mxu0 0.0
    %5344 = vmatpush1.msra.mxu0 %v4862
    %5345 = vmatprep.subr.mxu0 0.0
    %5346 = vmatpush1.msra.mxu0 %v4863
    %5347 = vmatprep.subr.mxu0 0.0
    %5348 = vmatpush1.msra.mxu0 %v4864
    %5349 = vmatprep.subr.mxu0 0.0
    %5350 = vmatpush1.msra.mxu0 %v4865
    %5351 = vmatprep.subr.mxu0 0.0
    %5352 = vmatpush1.msra.mxu0 %v4866
    %5353 = vmatprep.subr.mxu0 0.0
    %5354 = vmatpush1.msra.mxu0 %v4867
    %5355 = vmatprep.subr.mxu0 0.0
    %5356 = vmatpush1.msra.mxu0 %v4868
    %5357 = vmatprep.subr.mxu0 0.0
    %5358 = vmatpush1.msra.mxu0 %v4869
    %5359 = vmatprep.subr.mxu0 0.0
    %5360 = vmatpush1.msra.mxu0 %v4870
    %5361 = vmatprep.subr.mxu0 0.0
    %5362 = vmatpush1.msra.mxu0 %v4871
    %5363 = vmatprep.subr.mxu0 0.0
    %5364 = vmatpush1.msra.mxu0 %v4872
    %5365 = vmatprep.subr.mxu0 0.0
    %5366 = vmatpush1.msra.mxu0 %v4873
    %5367 = vmatprep.subr.mxu0 0.0
    %5368 = vmatpush1.msra.mxu0 %v4874
    %5369 = vmatprep.subr.mxu0 0.0
    %5370 = vmatpush1.msra.mxu0 %v4875
    %5371 = vmatprep.subr.mxu0 0.0
    %5372 = vmatpush1.msra.mxu0 0.0
    %5373 = vmatprep.subr.mxu0 0.0
    %5374 = vmatpush1.msra.mxu0 0.0
    %5375 = vmatprep.subr.mxu0 0.0
    %5376 = vmatpush1.msra.mxu0 0.0
    %5377 = vmatprep.subr.mxu0 0.0
    %5378 = vmatpush1.msra.mxu0 0.0
    %5379 = vmatprep.subr.mxu0 0.0
    %5380 = vmatpush1.msra.mxu0 0.0
    %5381 = vmatprep.subr.mxu0 0.0
    %5382 = vmatpush1.msra.mxu0 0.0
    %5383 = vmatprep.subr.mxu0 0.0
    %5384 = vmatpush1.msra.mxu0 0.0
    %5385 = vmatprep.subr.mxu0 0.0
    %5386 = vmatpush1.msra.mxu0 0.0
    %5387 = vmatprep.subr.mxu0 0.0
    %5388 = vmatpush1.msra.mxu0 0.0
    %5389 = vmatprep.subr.mxu0 0.0
    %5390 = vmatpush1.msra.mxu0 0.0
    %5391 = vmatprep.subr.mxu0 0.0
    %5392 = vmatpush1.msra.mxu0 0.0
    %5393 = vmatprep.subr.mxu0 0.0
    %5394 = vmatpush1.msra.mxu0 0.0
    %5395 = vmatprep.subr.mxu0 0.0
    %5396 = vmatpush1.msra.mxu0 0.0
    %5397 = vmatprep.subr.mxu0 0.0
    %5398 = vmatpush1.msra.mxu0 0.0
    %5399 = vmatprep.subr.mxu0 0.0
    %5400 = vmatpush1.msra.mxu0 0.0
    %5401 = vmatprep.subr.mxu0 0.0
    %5402 = vmatpush1.msra.mxu0 0.0
    %5403 = vmatprep.mubr.f32.mxu0 0.0
    %5404 = vmatmul.mubr.f32.gmra.mrb[0].mxu0 %v4962
    %v5405 = vpop.f32.mrb[0].mxu0
    %v5406 = vadd.f32 0.0, %v5405
    %v5407 = vpop.f32.mrb[0].mxu0
    %5408 = vmatprep.mubr.f32.mxu0 0.0
    %5409 = vmatmul.mubr.f32.gmra.mrb[0].mxu0 %v5338
    %v5410 = vpop.f32.mrb[0].mxu0
    %v5411 = vadd.f32 0.0, %v5410
    %v5412 = vpop.f32.mrb[0].mxu0
    %5413 = vdwg.mxu0
    %v5414 = vadd.f32 %v5330, %v5406
    %v5415 = vadd.f32 %v5335, %v5411
    %5418 = vrot.lane.b32.xlu0 %v4643, 64
    %v5419 = vpop.permute.xlu0 %5418
    %5420 = vrot.lane.b32.xlu0 %v4644, 64
    %v5421 = vpop.permute.xlu0 %5420
    %v5424 = vsel %vm276, %v4642, %v5419
    %v5425 = vsel %vm276, %v4643, %v5421
    %5426 = vmatprep.subr.mxu0 0.0
    %5427 = vmatpush1.msra.mxu0 %v4964
    %5428 = vmatprep.subr.mxu0 0.0
    %5429 = vmatpush1.msra.mxu0 %v4965
    %5430 = vmatprep.subr.mxu0 0.0
    %5431 = vmatpush1.msra.mxu0 %v4966
    %5432 = vmatprep.subr.mxu0 0.0
    %5433 = vmatpush1.msra.mxu0 %v4967
    %5434 = vmatprep.subr.mxu0 0.0
    %5435 = vmatpush1.msra.mxu0 %v4968
    %5436 = vmatprep.subr.mxu0 0.0
    %5437 = vmatpush1.msra.mxu0 %v4969
    %5438 = vmatprep.subr.mxu0 0.0
    %5439 = vmatpush1.msra.mxu0 %v4970
    %5440 = vmatprep.subr.mxu0 0.0
    %5441 = vmatpush1.msra.mxu0 %v4971
    %5442 = vmatprep.subr.mxu0 0.0
    %5443 = vmatpush1.msra.mxu0 %v4972
    %5444 = vmatprep.subr.mxu0 0.0
    %5445 = vmatpush1.msra.mxu0 %v4973
    %5446 = vmatprep.subr.mxu0 0.0
    %5447 = vmatpush1.msra.mxu0 %v4974
    %5448 = vmatprep.subr.mxu0 0.0
    %5449 = vmatpush1.msra.mxu0 %v4975
    %5450 = vmatprep.subr.mxu0 0.0
    %5451 = vmatpush1.msra.mxu0 %v4976
    %5452 = vmatprep.subr.mxu0 0.0
    %5453 = vmatpush1.msra.mxu0 %v4977
    %5454 = vmatprep.subr.mxu0 0.0
    %5455 = vmatpush1.msra.mxu0 %v4978
    %5456 = vmatprep.subr.mxu0 0.0
    %5457 = vmatpush1.msra.mxu0 %v4979
    %5458 = vmatprep.subr.mxu0 0.0
    %5459 = vmatpush1.msra.mxu0 0.0
    %5460 = vmatprep.subr.mxu0 0.0
    %5461 = vmatpush1.msra.mxu0 0.0
    %5462 = vmatprep.subr.mxu0 0.0
    %5463 = vmatpush1.msra.mxu0 0.0
    %5464 = vmatprep.subr.mxu0 0.0
    %5465 = vmatpush1.msra.mxu0 0.0
    %5466 = vmatprep.subr.mxu0 0.0
    %5467 = vmatpush1.msra.mxu0 0.0
    %5468 = vmatprep.subr.mxu0 0.0
    %5469 = vmatpush1.msra.mxu0 0.0
    %5470 = vmatprep.subr.mxu0 0.0
    %5471 = vmatpush1.msra.mxu0 0.0
    %5472 = vmatprep.subr.mxu0 0.0
    %5473 = vmatpush1.msra.mxu0 0.0
    %5474 = vmatprep.subr.mxu0 0.0
    %5475 = vmatpush1.msra.mxu0 0.0
    %5476 = vmatprep.subr.mxu0 0.0
    %5477 = vmatpush1.msra.mxu0 0.0
    %5478 = vmatprep.subr.mxu0 0.0
    %5479 = vmatpush1.msra.mxu0 0.0
    %5480 = vmatprep.subr.mxu0 0.0
    %5481 = vmatpush1.msra.mxu0 0.0
    %5482 = vmatprep.subr.mxu0 0.0
    %5483 = vmatpush1.msra.mxu0 0.0
    %5484 = vmatprep.subr.mxu0 0.0
    %5485 = vmatpush1.msra.mxu0 0.0
    %5486 = vmatprep.subr.mxu0 0.0
    %5487 = vmatpush1.msra.mxu0 0.0
    %5488 = vmatprep.subr.mxu0 0.0
    %5489 = vmatpush1.msra.mxu0 0.0
    %5490 = vmatprep.mubr.f32.mxu0 0.0
    %5491 = vmatmul.mubr.f32.gmra.mrb[0].mxu0 %v5424
    %v5492 = vpop.f32.mrb[0].mxu0
    %v5493 = vadd.f32 0.0, %v5492
    %v5494 = vpop.f32.mrb[0].mxu0
    %5495 = vmatprep.mubr.f32.mxu0 0.0
    %5496 = vmatmul.mubr.f32.gmra.mrb[0].mxu0 %v5425
    %v5497 = vpop.f32.mrb[0].mxu0
    %v5498 = vadd.f32 0.0, %v5497
    %v5499 = vpop.f32.mrb[0].mxu0
    %5500 = vdwg.mxu0
    %v5501 = vadd.f32 %v5414, %v5493
    %v5502 = vadd.f32 %v5415, %v5498
    %5504 = vrot.lane.b32.xlu0 %v4645, 64
    %v5505 = vpop.permute.xlu0 %5504
    %v5507 = vsel %vm276, %v4644, %v5421
    %v5508 = vsel %vm276, %v4645, %v5505
    %5509 = vmatprep.subr.mxu0 0.0
    %5510 = vmatpush1.msra.mxu0 %v5064
    %5511 = vmatprep.subr.mxu0 0.0
    %5512 = vmatpush1.msra.mxu0 %v5065
    %5513 = vmatprep.subr.mxu0 0.0
    %5514 = vmatpush1.msra.mxu0 %v5066
    %5515 = vmatprep.subr.mxu0 0.0
    %5516 = vmatpush1.msra.mxu0 %v5067
    %5517 = vmatprep.subr.mxu0 0.0
    %5518 = vmatpush1.msra.mxu0 %v5068
    %5519 = vmatprep.subr.mxu0 0.0
    %5520 = vmatpush1.msra.mxu0 %v5069
    %5521 = vmatprep.subr.mxu0 0.0
    %5522 = vmatpush1.msra.mxu0 %v5070
    %5523 = vmatprep.subr.mxu0 0.0
    %5524 = vmatpush1.msra.mxu0 %v5071
    %5525 = vmatprep.subr.mxu0 0.0
    %5526 = vmatpush1.msra.mxu0 %v5072
    %5527 = vmatprep.subr.mxu0 0.0
    %5528 = vmatpush1.msra.mxu0 %v5073
    %5529 = vmatprep.subr.mxu0 0.0
    %5530 = vmatpush1.msra.mxu0 %v5074
    %5531 = vmatprep.subr.mxu0 0.0
    %5532 = vmatpush1.msra.mxu0 %v5075
    %5533 = vmatprep.subr.mxu0 0.0
    %5534 = vmatpush1.msra.mxu0 %v5076
    %5535 = vmatprep.subr.mxu0 0.0
    %5536 = vmatpush1.msra.mxu0 %v5077
    %5537 = vmatprep.subr.mxu0 0.0
    %5538 = vmatpush1.msra.mxu0 %v5078
    %5539 = vmatprep.subr.mxu0 0.0
    %5540 = vmatpush1.msra.mxu0 %v5079
    %5541 = vmatprep.subr.mxu0 0.0
    %5542 = vmatpush1.msra.mxu0 0.0
    %5543 = vmatprep.subr.mxu0 0.0
    %5544 = vmatpush1.msra.mxu0 0.0
    %5545 = vmatprep.subr.mxu0 0.0
    %5546 = vmatpush1.msra.mxu0 0.0
    %5547 = vmatprep.subr.mxu0 0.0
    %5548 = vmatpush1.msra.mxu0 0.0
    %5549 = vmatprep.subr.mxu0 0.0
    %5550 = vmatpush1.msra.mxu0 0.0
    %5551 = vmatprep.subr.mxu0 0.0
    %5552 = vmatpush1.msra.mxu0 0.0
    %5553 = vmatprep.subr.mxu0 0.0
    %5554 = vmatpush1.msra.mxu0 0.0
    %5555 = vmatprep.subr.mxu0 0.0
    %5556 = vmatpush1.msra.mxu0 0.0
    %5557 = vmatprep.subr.mxu0 0.0
    %5558 = vmatpush1.msra.mxu0 0.0
    %5559 = vmatprep.subr.mxu0 0.0
    %5560 = vmatpush1.msra.mxu0 0.0
    %5561 = vmatprep.subr.mxu0 0.0
    %5562 = vmatpush1.msra.mxu0 0.0
    %5563 = vmatprep.subr.mxu0 0.0
    %5564 = vmatpush1.msra.mxu0 0.0
    %5565 = vmatprep.subr.mxu0 0.0
    %5566 = vmatpush1.msra.mxu0 0.0
    %5567 = vmatprep.subr.mxu0 0.0
    %5568 = vmatpush1.msra.mxu0 0.0
    %5569 = vmatprep.subr.mxu0 0.0
    %5570 = vmatpush1.msra.mxu0 0.0
    %5571 = vmatprep.subr.mxu0 0.0
    %5572 = vmatpush1.msra.mxu0 0.0
    %5573 = vmatprep.mubr.f32.mxu0 0.0
    %5574 = vmatmul.mubr.f32.gmra.mrb[0].mxu0 %v5507
    %v5575 = vpop.f32.mrb[0].mxu0
    %v5576 = vadd.f32 0.0, %v5575
    %v5577 = vpop.f32.mrb[0].mxu0
    %5578 = vmatprep.mubr.f32.mxu0 0.0
    %5579 = vmatmul.mubr.f32.gmra.mrb[0].mxu0 %v5508
    %v5580 = vpop.f32.mrb[0].mxu0
    %v5581 = vadd.f32 0.0, %v5580
    %v5582 = vpop.f32.mrb[0].mxu0
    %5583 = vdwg.mxu0
    %v5584 = vadd.f32 %v5501, %v5576
    %v5585 = vadd.f32 %v5502, %v5581
    %v5586 = vmul.f32 %v5584, %v5162
    %v5587 = vmul.f32 %v5585, %v5162
    %v5588 = vadd.f32 %v5586, %v5171
    %v5589 = vadd.f32 %v5587, %v5171
    %vm5590 = vcmp.gt.f32.partialorder %v5588, 0.0
    %vm5591 = vcmp.gt.f32.partialorder %v5589, 0.0
    %v5592 = vmul.f32 %v5588, 0.1
    %v5593 = vmul.f32 %v5589, 0.1
    %v5594 = vsel %vm5590, %v5588, %v5592
    %v5595 = vsel %vm5591, %v5589, %v5593
    %v5596 = vadd.f32 %v5179, %v5180
    %v5597 = vadd.f32 %v5596, %v5594
    %v5598 = vadd.f32 %v5597, %v5595
    %v5599 = vmul.f32 %v5598, 0.25
    %v5600 = vld [vmem:[%s10] sm:$0xff]
    %v5601 = vld [vmem:[%s10 + $0x8] sm:$0xff]
    %v5602 = vld [vmem:[%s10 + $0x10] sm:$0xff]
    %v5603 = vld [vmem:[%s10 + $0x18] sm:$0xff]
    %v5604 = vld [vmem:[%s10 + $0x20] sm:$0xff]
    %v5605 = vld [vmem:[%s10 + $0x28] sm:$0xff]
    %v5606 = vld [vmem:[%s10 + $0x30] sm:$0xff]
    %v5607 = vld [vmem:[%s10 + $0x38] sm:$0xff]
    %v5609 = vsel %vm276, %v5599, 0
    %5611 = vmatprep.subr.mxu0 0.0
    %5612 = vmatpush1.msra.mxu0 %v5600
    %5613 = vmatprep.subr.mxu0 0.0
    %5614 = vmatpush1.msra.mxu0 %v5601
    %5615 = vmatprep.subr.mxu0 0.0
    %5616 = vmatpush1.msra.mxu0 %v5602
    %5617 = vmatprep.subr.mxu0 0.0
    %5618 = vmatpush1.msra.mxu0 %v5603
    %5619 = vmatprep.subr.mxu0 0.0
    %5620 = vmatpush1.msra.mxu0 %v5604
    %5621 = vmatprep.subr.mxu0 0.0
    %5622 = vmatpush1.msra.mxu0 %v5605
    %5623 = vmatprep.subr.mxu0 0.0
    %5624 = vmatpush1.msra.mxu0 %v5606
    %5625 = vmatprep.subr.mxu0 0.0
    %5626 = vmatpush1.msra.mxu0 %v5607
    %5627 = vmatprep.subr.mxu0 0.0
    %5628 = vmatpush1.msra.mxu0 0.0
    %5629 = vmatprep.subr.mxu0 0.0
    %5630 = vmatpush1.msra.mxu0 0.0
    %5631 = vmatprep.subr.mxu0 0.0
    %5632 = vmatpush1.msra.mxu0 0.0
    %5633 = vmatprep.subr.mxu0 0.0
    %5634 = vmatpush1.msra.mxu0 0.0
    %5635 = vmatprep.subr.mxu0 0.0
    %5636 = vmatpush1.msra.mxu0 0.0
    %5637 = vmatprep.subr.mxu0 0.0
    %5638 = vmatpush1.msra.mxu0 0.0
    %5639 = vmatprep.subr.mxu0 0.0
    %5640 = vmatpush1.msra.mxu0 0.0
    %5641 = vmatprep.subr.mxu0 0.0
    %5642 = vmatpush1.msra.mxu0 0.0
    %5643 = vmatprep.subr.mxu0 0.0
    %5644 = vmatpush1.msra.mxu0 0.0
    %5645 = vmatprep.subr.mxu0 0.0
    %5646 = vmatpush1.msra.mxu0 0.0
    %5647 = vmatprep.subr.mxu0 0.0
    %5648 = vmatpush1.msra.mxu0 0.0
    %5649 = vmatprep.subr.mxu0 0.0
    %5650 = vmatpush1.msra.mxu0 0.0
    %5651 = vmatprep.subr.mxu0 0.0
    %5652 = vmatpush1.msra.mxu0 0.0
    %5653 = vmatprep.subr.mxu0 0.0
    %5654 = vmatpush1.msra.mxu0 0.0
    %5655 = vmatprep.subr.mxu0 0.0
    %5656 = vmatpush1.msra.mxu0 0.0
    %5657 = vmatprep.subr.mxu0 0.0
    %5658 = vmatpush1.msra.mxu0 0.0
    %5659 = vmatprep.subr.mxu0 0.0
    %5660 = vmatpush1.msra.mxu0 0.0
    %5661 = vmatprep.subr.mxu0 0.0
    %5662 = vmatpush1.msra.mxu0 0.0
    %5663 = vmatprep.subr.mxu0 0.0
    %5664 = vmatpush1.msra.mxu0 0.0
    %5665 = vmatprep.subr.mxu0 0.0
    %5666 = vmatpush1.msra.mxu0 0.0
    %5667 = vmatprep.subr.mxu0 0.0
    %5668 = vmatpush1.msra.mxu0 0.0
    %5669 = vmatprep.subr.mxu0 0.0
    %5670 = vmatpush1.msra.mxu0 0.0
    %5671 = vmatprep.subr.mxu0 0.0
    %5672 = vmatpush1.msra.mxu0 0.0
    %5673 = vmatprep.subr.mxu0 0.0
    %5674 = vmatpush1.msra.mxu0 0.0
    %5675 = vmatprep.mubr.f32.mxu0 0.0
    %5676 = vmatmul.mubr.f32.gmra.mrb[0].mxu0 %v5609
    %v5677 = vpop.f32.mrb[0].mxu0
    %v5678 = vadd.f32 0.0, %v5677
    %v5679 = vpop.f32.mrb[0].mxu0
    %5680 = vdwg.mxu0
    %v5681 = vld [vmem:[%s11] sm:$0x1]
    %v5683 = vlaneseq
    %v5684 = vshrl.u32 %v5683, 7
    %v5685 = vsub.s32 0, %v5684
    %v5686 = vrot.slane %v5681, %v5685
    %v5688 = vmul.f32 %v5678, %v5686
    %v5689 = vld [vmem:[%s12] sm:$0x1]
    %v5691 = vlaneseq
    %v5692 = vshrl.u32 %v5691, 7
    %v5693 = vsub.s32 0, %v5692
    %v5694 = vrot.slane %v5689, %v5693
    %v5696 = vadd.f32 %v5688, %v5694
    %5697 = vst [vmem:[#allocation2] sm:$0xff] %v5696
    // Predicated region
    $region54: #{tpu_custom_call.1} parent=1 // pred_check
      _
    $region55: #{tpu_custom_call.1} parent=1 // pred_check_branch
      %5699 = sbr.rel (0) target = $region57
    $region56: #{tpu_custom_call.1} parent=1 // pred_region
      %s5701 = ssub.s32 128, 128
      %5702 = vsyncadd [#allocation3], %s5701
      %s5704 = sshll.u32 [#allocation2], 4
      %s5705 = int_to_ptr.vmem [resolvable:$true] %s5704
      %5707 = dma.vmem_to_hbm [thread:$0]  %s5705, 128, %s13, [#allocation3]
    $region57: #{tpu_custom_call.1} parent=1 // pred_fallthru
      _
    // Predicated region
    $region58: #{tpu_custom_call.1} parent=1 // pred_check
      _
    $region59: #{tpu_custom_call.1} parent=1 // pred_check_branch
      %5709 = sbr.rel (0) target = $region61
    $region60: #{tpu_custom_call.1} parent=1 // pred_region
      %5710 = dma.done [#allocation3], 128
    $region61: #{tpu_custom_call.1} parent=1 // pred_fallthru
      _
    %5711 = vsyncpa [#allocation3], 1

</llo_original>
